<compile_context>
chip_gen: v7x
topology: tpu7x:2x2x1
jax: 0.10.0
libtpu: 0.0.40
codegen_flags: <defaults>
</compile_context>

<pallas_src>
import jax
import jax.numpy as jnp
import numpy as np
from jax.experimental import pallas as pl
from jax.experimental.pallas import tpu as pltpu

# ---------------------------------------------------------------------------
# Problem sizes: RIM(input_size=16, hidden_size=32, output_size=8, time_max=4)
# ---------------------------------------------------------------------------
OUTPUT_SIZE = 8
INPUT_SIZE = 2 * OUTPUT_SIZE        # forward() concatenates ht with 0*gradient
HIDDEN_SIZE = 32
TIME_MAX = 4

LANES = 128                         # lane-dense packing width for weights
KDIM = 2 * HIDDEN_SIZE              # per-layer row-block size in the weight slab

BATCH = 256                         # independent sequences per call
TILE_B = 128                        # batch rows per grid step (fills MXU rows)


# ---------------------------------------------------------------------------
# Fused Pallas kernel: full forward_sequence recurrence for one batch tile
# ---------------------------------------------------------------------------
def rim_sequence_kernel(x0_ref, xtrue_ref, w_ref, b_ref,
                        xt_ref, st_ref, loss_ref):
    f32 = jnp.float32
    H, O = HIDDEN_SIZE, OUTPUT_SIZE
    TB = x0_ref.shape[0]

    ht = x0_ref[...]                          # (TB, O)
    x_true = xtrue_ref[...]                   # (TB, O)

    zeros_h = jnp.zeros((TB, H), f32)
    s0 = zeros_h                              # init_hidden()
    s1 = zeros_h
    s2 = zeros_h

    # Bias rows loaded once outside the time loop (1 vreg each).  The add
    # below broadcasts (1, LANES) across TB sublanes — a cheap sublane
    # replicate per use; hoisting full (TB, LANES) broadcasts would pin
    # ~48 vregs live across the unrolled body and force spills instead.
    b1 = b_ref[0:1, :]
    b2 = b_ref[1:2, :]
    b3o = b_ref[2:3, :]

    xt_ref[0] = ht                            # list_xt[0] = x0 (stored as produced)
    sq_acc = jnp.zeros((TB, O), f32)          # running sum of squared errors

    # Static unroll: TIME_MAX is tiny; state stays in vregs / VMEM throughout.
    for t in range(TIME_MAX):
        # h1 = relu(h1_layer(cat(x, s0))), x = [ht, 0*gradient(ht, y)].
        # The gradient half multiplies exactly-zero weight rows (dropped in
        # pack_params), so the activation is just the 2-piece concat [ht, s0].
        act1 = jnp.concatenate([ht, s0], axis=1)                    # (TB, O+H)
        z1 = jnp.dot(act1, w_ref[0:O + H, :],
                     preferred_element_type=f32) + b1
        h1 = jnp.maximum(z1[:, :H], 0.0)

        # h2 = relu(h2_layer(cat(h1, s1)))
        act2 = jnp.concatenate([h1, s1], axis=1)                    # (TB, 2H)
        z2 = jnp.dot(act2, w_ref[KDIM:KDIM + 2 * H, :],
                     preferred_element_type=f32) + b2
        h2 = jnp.maximum(z2[:, :H], 0.0)

        # h3 = relu(h3_layer(cat(h2, s2)));  output = output_layer(cat(h2, s2))
        # (both share combined_h3 -> fused into one dot: cols 0:H | H:H+O)
        act3 = jnp.concatenate([h2, s2], axis=1)                    # (TB, 2H)
        z3 = jnp.dot(act3, w_ref[2 * KDIM:2 * KDIM + 2 * H, :],
                     preferred_element_type=f32) + b3o
        h3 = jnp.maximum(z3[:, :H], 0.0)
        dh = z3[:, H:H + O]

        # forward_sequence: ht = ht + dh ; xt = psi(ht) = clip(ht, 0, 1)
        ht = ht + dh
        xt = jnp.minimum(jnp.maximum(ht, 0.0), 1.0)
        xt_ref[t + 1] = xt                    # per-step store (idle vst slot)
        sq_acc = sq_acc + (xt - x_true) ** 2  # fused MSE accumulation
        s0, s1, s2 = h1, h2, h3

    st_ref[0] = s0                            # final st[0]
    st_ref[1] = s1                            # final st[1]
    st_ref[2] = s2                            # final st[2]
    # loss = (1/T) * sum_t weight_loss * mean_O((xt - x_true)^2), weight_loss==1
    loss_ref[...] = jnp.sum(sq_acc, axis=1, keepdims=True) * (
        1.0 / (OUTPUT_SIZE * TIME_MAX))


# ---------------------------------------------------------------------------
# Wrapper: one pallas_call for the whole batched sequence, zero post-processing
# ---------------------------------------------------------------------------
@jax.jit
def rim_forward_sequence(x0, x_true, w_slab, b_slab):
    B = x0.shape[0]
    assert B % TILE_B == 0
    grid = (B // TILE_B,)

    xt_out, st_out, loss_out = pl.pallas_call(
        rim_sequence_kernel,
        out_shape=(
            jax.ShapeDtypeStruct((TIME_MAX + 1, B, OUTPUT_SIZE), jnp.float32),
            jax.ShapeDtypeStruct((3, B, HIDDEN_SIZE), jnp.float32),
            jax.ShapeDtypeStruct((B, 1), jnp.float32),
        ),
        grid_spec=pltpu.PrefetchScalarGridSpec(
            num_scalar_prefetch=0,
            grid=grid,
            in_specs=[
                pl.BlockSpec((TILE_B, OUTPUT_SIZE), lambda i: (i, 0)),     # x0
                pl.BlockSpec((TILE_B, OUTPUT_SIZE), lambda i: (i, 0)),     # x_true
                pl.BlockSpec((3 * KDIM, LANES), lambda i: (0, 0)),         # weights (resident)
                pl.BlockSpec((3, LANES), lambda i: (0, 0)),                # biases  (resident)
            ],
            out_specs=(
                pl.BlockSpec((TIME_MAX + 1, TILE_B, OUTPUT_SIZE),
                             lambda i: (0, i, 0)),                          # list_xt
                pl.BlockSpec((3, TILE_B, HIDDEN_SIZE), lambda i: (0, i, 0)),  # final st
                pl.BlockSpec((TILE_B, 1), lambda i: (i, 0)),               # per-sample loss
            ),
        ),
        compiler_params=pltpu.CompilerParams(
            dimension_semantics=("parallel",)),       # shards tiles across v7x TCs
    )(x0, x_true, w_slab, b_slab)

    return xt_out, st_out, loss_out[:, 0]


# ---------------------------------------------------------------------------
# Deterministic parameter init (torch layout) and packing into the two slabs
# ---------------------------------------------------------------------------
def _xavier_normal(key, out_f, in_f, gain=0.1):
    std = gain * np.sqrt(2.0 / (in_f + out_f))
    return std * jax.random.normal(key, (out_f, in_f), dtype=jnp.float32)


def init_raw_params(key):
    I, H, O = INPUT_SIZE, HIDDEN_SIZE, OUTPUT_SIZE
    ks = jax.random.split(key, 8)
    return {
        "w1": _xavier_normal(ks[0], H, I + H),           # h1_layer.weight
        "w2": _xavier_normal(ks[1], H, 2 * H),           # h2_layer.weight
        "w3": _xavier_normal(ks[2], H, 2 * H),           # h3_layer.weight
        "wo": _xavier_normal(ks[3], O, 2 * H),           # output_layer.weight
        "b1": 0.01 * jax.random.normal(ks[4], (H,), dtype=jnp.float32),
        "b2": 0.01 * jax.random.normal(ks[5], (H,), dtype=jnp.float32),
        "b3": 0.01 * jax.random.normal(ks[6], (H,), dtype=jnp.float32),
        "bo": 0.01 * jax.random.normal(ks[7], (O,), dtype=jnp.float32),
    }


def pack_params(raw):
    """Pack transposed weights into a lane-dense (3*KDIM, 128) slab.

    Layer-1 rows are reordered so the kernel activation is the contiguous
    2-piece concat [ht, s0]: the input columns that multiply the
    0*gradient(ht, y) term are exactly zero and are dropped from the slab.
    """
    I, H, O, L = INPUT_SIZE, HIDDEN_SIZE, OUTPUT_SIZE, LANES
    w_slab = np.zeros((3 * KDIM, L), np.float32)

    w1 = np.asarray(raw["w1"])                            # (H, I + H)
    w_slab[0:O, :H] = w1[:, :O].T                         # ht part of layer 1
    w_slab[O:O + H, :H] = w1[:, I:I + H].T                # s0 part of layer 1
    # rows KDIM:2*KDIM   -> layer 2
    w_slab[KDIM:KDIM + 2 * H, :H] = np.asarray(raw["w2"]).T
    # rows 2*KDIM:3*KDIM -> layer 3 (cols 0:H) and output layer (cols H:H+O)
    w_slab[2 * KDIM:2 * KDIM + 2 * H, :H] = np.asarray(raw["w3"]).T
    w_slab[2 * KDIM:2 * KDIM + 2 * H, H:H + O] = np.asarray(raw["wo"]).T

    b_slab = np.zeros((3, L), np.float32)
    b_slab[0, :H] = np.asarray(raw["b1"])
    b_slab[1, :H] = np.asarray(raw["b2"])
    b_slab[2, :H] = np.asarray(raw["b3"])
    b_slab[2, H:H + O] = np.asarray(raw["bo"])
    return jnp.asarray(w_slab), jnp.asarray(b_slab)


# ---------------------------------------------------------------------------
# Pure-JAX batched reference mirroring the PyTorch module (correctness check)
# ---------------------------------------------------------------------------
def _psi_ref(h):
    x = jnp.maximum(h, 0.0)
    return 1.0 - jnp.maximum(-x + 1.0, 0.0)


@jax.jit
def rim_forward_sequence_ref(x0, y, x_true, raw):
    B = x0.shape[0]
    ht = x0
    st = [jnp.zeros((B, HIDDEN_SIZE), jnp.float32) for _ in range(3)]
    list_xt = [x0]
    loss = jnp.zeros((B,), jnp.float32)
    for _ in range(TIME_MAX):
        # 0 * gradient(ht, y) == 0 for finite inputs (kept for faithfulness)
        inp = jnp.concatenate([ht, 0.0 * (ht - y)], axis=1)        # (B, 16)
        c1 = jnp.concatenate([inp, st[0]], axis=1)
        h1 = jnp.maximum(c1 @ raw["w1"].T + raw["b1"], 0.0)
        c2 = jnp.concatenate([h1, st[1]], axis=1)
        h2 = jnp.maximum(c2 @ raw["w2"].T + raw["b2"], 0.0)
        c3 = jnp.concatenate([h2, st[2]], axis=1)
        h3 = jnp.maximum(c3 @ raw["w3"].T + raw["b3"], 0.0)
        out = c3 @ raw["wo"].T + raw["bo"]                         # output_layer
        st = [h1, h2, h3]
        ht = ht + out
        xt = _psi_ref(ht)
        list_xt.append(xt)
        loss = loss + jnp.mean((xt - x_true) ** 2, axis=1)
    return jnp.stack(list_xt, axis=0), jnp.stack(st, axis=0), loss / TIME_MAX


# ---------------------------------------------------------------------------
if __name__ == "__main__":
    key = jax.random.PRNGKey(0)
    kp, kx0, ky, kxt = jax.random.split(key, 4)
    raw = init_raw_params(kp)
    w_slab, b_slab = pack_params(raw)

    x0 = jax.random.normal(kx0, (BATCH, OUTPUT_SIZE), dtype=jnp.float32)
    y = jax.random.normal(ky, (BATCH, OUTPUT_SIZE), dtype=jnp.float32)   # unused: 0*grad
    x_true = jax.random.uniform(kxt, (BATCH, OUTPUT_SIZE), dtype=jnp.float32)

    list_xt, st, loss = rim_forward_sequence(x0, x_true, w_slab, b_slab)
    list_xt = jax.block_until_ready(list_xt)
    st = jax.block_until_ready(st)
    loss = jax.block_until_ready(loss)

    list_ref, st_ref, loss_ref = rim_forward_sequence_ref(x0, y, x_true, raw)

    assert np.allclose(np.asarray(list_xt), np.asarray(list_ref),
                       rtol=1e-3, atol=1e-4), "list_xt mismatch"
    assert np.allclose(np.asarray(st), np.asarray(st_ref),
                       rtol=1e-3, atol=1e-4), "hidden state mismatch"
    assert np.allclose(np.asarray(loss), np.asarray(loss_ref),
                       rtol=1e-3, atol=1e-4), "loss mismatch"

    print("KERNEL_OK")
</pallas_src>

<mosaic_0001>
module attributes {stable_mosaic.version = 11 : i64} {
  func.func @rim_sequence_kernel(%arg0: i32, %arg1: memref<128x8xf32, #tpu.memory_space<vmem>>, %arg2: memref<128x8xf32, #tpu.memory_space<vmem>>, %arg3: memref<192x128xf32, #tpu.memory_space<vmem>>, %arg4: memref<3x128xf32, #tpu.memory_space<vmem>>, %arg5: memref<5x128x8xf32, #tpu.memory_space<vmem>>, %arg6: memref<3x128x32xf32, #tpu.memory_space<vmem>>, %arg7: memref<128x1xf32, #tpu.memory_space<vmem>>) attributes {dimension_semantics = [#tpu.dimension_semantics<parallel>], iteration_bounds = array<i64: 2>, scalar_prefetch = 0 : i64, scratch_operands = 0 : i64, tpu.core_type = #tpu.core_type<tc>, window_params = [{transform_indices = @transform_0, window_bounds = array<i64: 128, 8>}, {transform_indices = @transform_1, window_bounds = array<i64: 128, 8>}, {pipeline_mode = #tpu.pipeline_mode<synchronous>, transform_indices = @transform_2, window_bounds = array<i64: 192, 128>}, {pipeline_mode = #tpu.pipeline_mode<synchronous>, transform_indices = @transform_3, window_bounds = array<i64: 3, 128>}, {transform_indices = @transform_4, window_bounds = array<i64: 5, 128, 8>}, {transform_indices = @transform_5, window_bounds = array<i64: 3, 128, 32>}, {transform_indices = @transform_6, window_bounds = array<i64: 128, 1>}]} {
    %c0 = arith.constant 0 : index
    %c0_0 = arith.constant 0 : index
    %0 = vector.load %arg1[%c0, %c0_0] : memref<128x8xf32, #tpu.memory_space<vmem>>, vector<128x8xf32>
    %c0_1 = arith.constant 0 : index
    %c0_2 = arith.constant 0 : index
    %1 = vector.load %arg2[%c0_1, %c0_2] : memref<128x8xf32, #tpu.memory_space<vmem>>, vector<128x8xf32>
    %cst = arith.constant 0.000000e+00 : f32
    %2 = vector.broadcast %cst : f32 to vector<128x32xf32>
    %c0_3 = arith.constant 0 : index
    %c0_4 = arith.constant 0 : index
    %3 = vector.load %arg4[%c0_3, %c0_4] : memref<3x128xf32, #tpu.memory_space<vmem>>, vector<1x128xf32>
    %c1 = arith.constant 1 : index
    %c0_5 = arith.constant 0 : index
    %4 = vector.load %arg4[%c1, %c0_5] : memref<3x128xf32, #tpu.memory_space<vmem>>, vector<1x128xf32>
    %c2 = arith.constant 2 : index
    %c0_6 = arith.constant 0 : index
    %5 = vector.load %arg4[%c2, %c0_6] : memref<3x128xf32, #tpu.memory_space<vmem>>, vector<1x128xf32>
    %c0_7 = arith.constant 0 : index
    %c0_8 = arith.constant 0 : index
    %c0_9 = arith.constant 0 : index
    %6 = vector.load %arg5[%c0_7, %c0_8, %c0_9] : memref<5x128x8xf32, #tpu.memory_space<vmem>>, vector<1x128x8xf32>
    %7 = vector.shape_cast %6 : vector<1x128x8xf32> to vector<128x8xf32>
    %8 = vector.shape_cast %0 : vector<128x8xf32> to vector<1x128x8xf32>
    tpu.vector_store %arg5[%c0_7, %c0_8, %c0_9], %8 {strides = array<i32>} : memref<5x128x8xf32, #tpu.memory_space<vmem>>, vector<1x128x8xf32>,
    %cst_10 = arith.constant 0.000000e+00 : f32
    %9 = vector.broadcast %cst_10 : f32 to vector<128x8xf32>
    %10 = tpu.concatenate %0, %2 in 1 : vector<128x8xf32>, vector<128x32xf32> -> vector<128x40xf32>
    %c0_11 = arith.constant 0 : index
    %c0_12 = arith.constant 0 : index
    %11 = vector.load %arg3[%c0_11, %c0_12] : memref<192x128xf32, #tpu.memory_space<vmem>>, vector<40x128xf32>
    %cst_13 = arith.constant dense<0.000000e+00> : vector<128x128xf32>
    %12 = tpu.matmul %10, %11, %cst_13 {dimension_numbers = #tpu.dot_dimension_numbers<[1], [0], [0], [1], [0, 0, 1, 1], [], []>} : vector<128x40xf32>, vector<40x128xf32>, vector<128x128xf32> -> vector<128x128xf32>
    %13 = vector.broadcast %3 : vector<1x128xf32> to vector<128x128xf32>
    %14 = arith.addf %12, %13 : vector<128x128xf32>
    %15 = vector.extract_strided_slice %14 {offsets = [0, 0], sizes = [128, 32], strides = [1, 1]} : vector<128x128xf32> to vector<128x32xf32>
    %cst_14 = arith.constant 0.000000e+00 : f32
    %16 = vector.broadcast %cst_14 : f32 to vector<128x32xf32>
    %17 = arith.maximumf %15, %16 : vector<128x32xf32>
    %18 = tpu.concatenate %17, %2 in 1 : vector<128x32xf32>, vector<128x32xf32> -> vector<128x64xf32>
    %c64 = arith.constant 64 : index
    %c0_15 = arith.constant 0 : index
    %19 = vector.load %arg3[%c64, %c0_15] : memref<192x128xf32, #tpu.memory_space<vmem>>, vector<64x128xf32>
    %cst_16 = arith.constant dense<0.000000e+00> : vector<128x128xf32>
    %20 = tpu.matmul %18, %19, %cst_16 {dimension_numbers = #tpu.dot_dimension_numbers<[1], [0], [0], [1], [0, 0, 1, 1], [], []>} : vector<128x64xf32>, vector<64x128xf32>, vector<128x128xf32> -> vector<128x128xf32>
    %21 = vector.broadcast %4 : vector<1x128xf32> to vector<128x128xf32>
    %22 = arith.addf %20, %21 : vector<128x128xf32>
    %23 = vector.extract_strided_slice %22 {offsets = [0, 0], sizes = [128, 32], strides = [1, 1]} : vector<128x128xf32> to vector<128x32xf32>
    %cst_17 = arith.constant 0.000000e+00 : f32
    %24 = vector.broadcast %cst_17 : f32 to vector<128x32xf32>
    %25 = arith.maximumf %23, %24 : vector<128x32xf32>
    %26 = tpu.concatenate %25, %2 in 1 : vector<128x32xf32>, vector<128x32xf32> -> vector<128x64xf32>
    %c128 = arith.constant 128 : index
    %c0_18 = arith.constant 0 : index
    %27 = vector.load %arg3[%c128, %c0_18] : memref<192x128xf32, #tpu.memory_space<vmem>>, vector<64x128xf32>
    %cst_19 = arith.constant dense<0.000000e+00> : vector<128x128xf32>
    %28 = tpu.matmul %26, %27, %cst_19 {dimension_numbers = #tpu.dot_dimension_numbers<[1], [0], [0], [1], [0, 0, 1, 1], [], []>} : vector<128x64xf32>, vector<64x128xf32>, vector<128x128xf32> -> vector<128x128xf32>
    %29 = vector.broadcast %5 : vector<1x128xf32> to vector<128x128xf32>
    %30 = arith.addf %28, %29 : vector<128x128xf32>
    %31 = vector.extract_strided_slice %30 {offsets = [0, 0], sizes = [128, 32], strides = [1, 1]} : vector<128x128xf32> to vector<128x32xf32>
    %cst_20 = arith.constant 0.000000e+00 : f32
    %32 = vector.broadcast %cst_20 : f32 to vector<128x32xf32>
    %33 = arith.maximumf %31, %32 : vector<128x32xf32>
    %34 = vector.extract_strided_slice %30 {offsets = [0, 32], sizes = [128, 8], strides = [1, 1]} : vector<128x128xf32> to vector<128x8xf32>
    %35 = arith.addf %0, %34 : vector<128x8xf32>
    %cst_21 = arith.constant 0.000000e+00 : f32
    %36 = vector.broadcast %cst_21 : f32 to vector<128x8xf32>
    %37 = arith.maximumf %35, %36 : vector<128x8xf32>
    %cst_22 = arith.constant 1.000000e+00 : f32
    %38 = vector.broadcast %cst_22 : f32 to vector<128x8xf32>
    %39 = arith.minimumf %37, %38 : vector<128x8xf32>
    %c1_23 = arith.constant 1 : index
    %c0_24 = arith.constant 0 : index
    %c0_25 = arith.constant 0 : index
    %40 = vector.load %arg5[%c1_23, %c0_24, %c0_25] : memref<5x128x8xf32, #tpu.memory_space<vmem>>, vector<1x128x8xf32>
    %41 = vector.shape_cast %40 : vector<1x128x8xf32> to vector<128x8xf32>
    %42 = vector.shape_cast %39 : vector<128x8xf32> to vector<1x128x8xf32>
    tpu.vector_store %arg5[%c1_23, %c0_24, %c0_25], %42 {strides = array<i32>} : memref<5x128x8xf32, #tpu.memory_space<vmem>>, vector<1x128x8xf32>,
    %43 = arith.subf %39, %1 : vector<128x8xf32>
    %44 = arith.mulf %43, %43 : vector<128x8xf32>
    %45 = arith.addf %9, %44 : vector<128x8xf32>
    %46 = tpu.concatenate %35, %17 in 1 : vector<128x8xf32>, vector<128x32xf32> -> vector<128x40xf32>
    %c0_26 = arith.constant 0 : index
    %c0_27 = arith.constant 0 : index
    %47 = vector.load %arg3[%c0_26, %c0_27] : memref<192x128xf32, #tpu.memory_space<vmem>>, vector<40x128xf32>
    %cst_28 = arith.constant dense<0.000000e+00> : vector<128x128xf32>
    %48 = tpu.matmul %46, %47, %cst_28 {dimension_numbers = #tpu.dot_dimension_numbers<[1], [0], [0], [1], [0, 0, 1, 1], [], []>} : vector<128x40xf32>, vector<40x128xf32>, vector<128x128xf32> -> vector<128x128xf32>
    %49 = vector.broadcast %3 : vector<1x128xf32> to vector<128x128xf32>
    %50 = arith.addf %48, %49 : vector<128x128xf32>
    %51 = vector.extract_strided_slice %50 {offsets = [0, 0], sizes = [128, 32], strides = [1, 1]} : vector<128x128xf32> to vector<128x32xf32>
    %cst_29 = arith.constant 0.000000e+00 : f32
    %52 = vector.broadcast %cst_29 : f32 to vector<128x32xf32>
    %53 = arith.maximumf %51, %52 : vector<128x32xf32>
    %54 = tpu.concatenate %53, %25 in 1 : vector<128x32xf32>, vector<128x32xf32> -> vector<128x64xf32>
    %c64_30 = arith.constant 64 : index
    %c0_31 = arith.constant 0 : index
    %55 = vector.load %arg3[%c64_30, %c0_31] : memref<192x128xf32, #tpu.memory_space<vmem>>, vector<64x128xf32>
    %cst_32 = arith.constant dense<0.000000e+00> : vector<128x128xf32>
    %56 = tpu.matmul %54, %55, %cst_32 {dimension_numbers = #tpu.dot_dimension_numbers<[1], [0], [0], [1], [0, 0, 1, 1], [], []>} : vector<128x64xf32>, vector<64x128xf32>, vector<128x128xf32> -> vector<128x128xf32>
    %57 = vector.broadcast %4 : vector<1x128xf32> to vector<128x128xf32>
    %58 = arith.addf %56, %57 : vector<128x128xf32>
    %59 = vector.extract_strided_slice %58 {offsets = [0, 0], sizes = [128, 32], strides = [1, 1]} : vector<128x128xf32> to vector<128x32xf32>
    %cst_33 = arith.constant 0.000000e+00 : f32
    %60 = vector.broadcast %cst_33 : f32 to vector<128x32xf32>
    %61 = arith.maximumf %59, %60 : vector<128x32xf32>
    %62 = tpu.concatenate %61, %33 in 1 : vector<128x32xf32>, vector<128x32xf32> -> vector<128x64xf32>
    %c128_34 = arith.constant 128 : index
    %c0_35 = arith.constant 0 : index
    %63 = vector.load %arg3[%c128_34, %c0_35] : memref<192x128xf32, #tpu.memory_space<vmem>>, vector<64x128xf32>
    %cst_36 = arith.constant dense<0.000000e+00> : vector<128x128xf32>
    %64 = tpu.matmul %62, %63, %cst_36 {dimension_numbers = #tpu.dot_dimension_numbers<[1], [0], [0], [1], [0, 0, 1, 1], [], []>} : vector<128x64xf32>, vector<64x128xf32>, vector<128x128xf32> -> vector<128x128xf32>
    %65 = vector.broadcast %5 : vector<1x128xf32> to vector<128x128xf32>
    %66 = arith.addf %64, %65 : vector<128x128xf32>
    %67 = vector.extract_strided_slice %66 {offsets = [0, 0], sizes = [128, 32], strides = [1, 1]} : vector<128x128xf32> to vector<128x32xf32>
    %cst_37 = arith.constant 0.000000e+00 : f32
    %68 = vector.broadcast %cst_37 : f32 to vector<128x32xf32>
    %69 = arith.maximumf %67, %68 : vector<128x32xf32>
    %70 = vector.extract_strided_slice %66 {offsets = [0, 32], sizes = [128, 8], strides = [1, 1]} : vector<128x128xf32> to vector<128x8xf32>
    %71 = arith.addf %35, %70 : vector<128x8xf32>
    %cst_38 = arith.constant 0.000000e+00 : f32
    %72 = vector.broadcast %cst_38 : f32 to vector<128x8xf32>
    %73 = arith.maximumf %71, %72 : vector<128x8xf32>
    %cst_39 = arith.constant 1.000000e+00 : f32
    %74 = vector.broadcast %cst_39 : f32 to vector<128x8xf32>
    %75 = arith.minimumf %73, %74 : vector<128x8xf32>
    %c2_40 = arith.constant 2 : index
    %c0_41 = arith.constant 0 : index
    %c0_42 = arith.constant 0 : index
    %76 = vector.load %arg5[%c2_40, %c0_41, %c0_42] : memref<5x128x8xf32, #tpu.memory_space<vmem>>, vector<1x128x8xf32>
    %77 = vector.shape_cast %76 : vector<1x128x8xf32> to vector<128x8xf32>
    %78 = vector.shape_cast %75 : vector<128x8xf32> to vector<1x128x8xf32>
    tpu.vector_store %arg5[%c2_40, %c0_41, %c0_42], %78 {strides = array<i32>} : memref<5x128x8xf32, #tpu.memory_space<vmem>>, vector<1x128x8xf32>,
    %79 = arith.subf %75, %1 : vector<128x8xf32>
    %80 = arith.mulf %79, %79 : vector<128x8xf32>
    %81 = arith.addf %45, %80 : vector<128x8xf32>
    %82 = tpu.concatenate %71, %53 in 1 : vector<128x8xf32>, vector<128x32xf32> -> vector<128x40xf32>
    %c0_43 = arith.constant 0 : index
    %c0_44 = arith.constant 0 : index
    %83 = vector.load %arg3[%c0_43, %c0_44] : memref<192x128xf32, #tpu.memory_space<vmem>>, vector<40x128xf32>
    %cst_45 = arith.constant dense<0.000000e+00> : vector<128x128xf32>
    %84 = tpu.matmul %82, %83, %cst_45 {dimension_numbers = #tpu.dot_dimension_numbers<[1], [0], [0], [1], [0, 0, 1, 1], [], []>} : vector<128x40xf32>, vector<40x128xf32>, vector<128x128xf32> -> vector<128x128xf32>
    %85 = vector.broadcast %3 : vector<1x128xf32> to vector<128x128xf32>
    %86 = arith.addf %84, %85 : vector<128x128xf32>
    %87 = vector.extract_strided_slice %86 {offsets = [0, 0], sizes = [128, 32], strides = [1, 1]} : vector<128x128xf32> to vector<128x32xf32>
    %cst_46 = arith.constant 0.000000e+00 : f32
    %88 = vector.broadcast %cst_46 : f32 to vector<128x32xf32>
    %89 = arith.maximumf %87, %88 : vector<128x32xf32>
    %90 = tpu.concatenate %89, %61 in 1 : vector<128x32xf32>, vector<128x32xf32> -> vector<128x64xf32>
    %c64_47 = arith.constant 64 : index
    %c0_48 = arith.constant 0 : index
    %91 = vector.load %arg3[%c64_47, %c0_48] : memref<192x128xf32, #tpu.memory_space<vmem>>, vector<64x128xf32>
    %cst_49 = arith.constant dense<0.000000e+00> : vector<128x128xf32>
    %92 = tpu.matmul %90, %91, %cst_49 {dimension_numbers = #tpu.dot_dimension_numbers<[1], [0], [0], [1], [0, 0, 1, 1], [], []>} : vector<128x64xf32>, vector<64x128xf32>, vector<128x128xf32> -> vector<128x128xf32>
    %93 = vector.broadcast %4 : vector<1x128xf32> to vector<128x128xf32>
    %94 = arith.addf %92, %93 : vector<128x128xf32>
    %95 = vector.extract_strided_slice %94 {offsets = [0, 0], sizes = [128, 32], strides = [1, 1]} : vector<128x128xf32> to vector<128x32xf32>
    %cst_50 = arith.constant 0.000000e+00 : f32
    %96 = vector.broadcast %cst_50 : f32 to vector<128x32xf32>
    %97 = arith.maximumf %95, %96 : vector<128x32xf32>
    %98 = tpu.concatenate %97, %69 in 1 : vector<128x32xf32>, vector<128x32xf32> -> vector<128x64xf32>
    %c128_51 = arith.constant 128 : index
    %c0_52 = arith.constant 0 : index
    %99 = vector.load %arg3[%c128_51, %c0_52] : memref<192x128xf32, #tpu.memory_space<vmem>>, vector<64x128xf32>
    %cst_53 = arith.constant dense<0.000000e+00> : vector<128x128xf32>
    %100 = tpu.matmul %98, %99, %cst_53 {dimension_numbers = #tpu.dot_dimension_numbers<[1], [0], [0], [1], [0, 0, 1, 1], [], []>} : vector<128x64xf32>, vector<64x128xf32>, vector<128x128xf32> -> vector<128x128xf32>
    %101 = vector.broadcast %5 : vector<1x128xf32> to vector<128x128xf32>
    %102 = arith.addf %100, %101 : vector<128x128xf32>
    %103 = vector.extract_strided_slice %102 {offsets = [0, 0], sizes = [128, 32], strides = [1, 1]} : vector<128x128xf32> to vector<128x32xf32>
    %cst_54 = arith.constant 0.000000e+00 : f32
    %104 = vector.broadcast %cst_54 : f32 to vector<128x32xf32>
    %105 = arith.maximumf %103, %104 : vector<128x32xf32>
    %106 = vector.extract_strided_slice %102 {offsets = [0, 32], sizes = [128, 8], strides = [1, 1]} : vector<128x128xf32> to vector<128x8xf32>
    %107 = arith.addf %71, %106 : vector<128x8xf32>
    %cst_55 = arith.constant 0.000000e+00 : f32
    %108 = vector.broadcast %cst_55 : f32 to vector<128x8xf32>
    %109 = arith.maximumf %107, %108 : vector<128x8xf32>
    %cst_56 = arith.constant 1.000000e+00 : f32
    %110 = vector.broadcast %cst_56 : f32 to vector<128x8xf32>
    %111 = arith.minimumf %109, %110 : vector<128x8xf32>
    %c3 = arith.constant 3 : index
    %c0_57 = arith.constant 0 : index
    %c0_58 = arith.constant 0 : index
    %112 = vector.load %arg5[%c3, %c0_57, %c0_58] : memref<5x128x8xf32, #tpu.memory_space<vmem>>, vector<1x128x8xf32>
    %113 = vector.shape_cast %112 : vector<1x128x8xf32> to vector<128x8xf32>
    %114 = vector.shape_cast %111 : vector<128x8xf32> to vector<1x128x8xf32>
    tpu.vector_store %arg5[%c3, %c0_57, %c0_58], %114 {strides = array<i32>} : memref<5x128x8xf32, #tpu.memory_space<vmem>>, vector<1x128x8xf32>,
    %115 = arith.subf %111, %1 : vector<128x8xf32>
    %116 = arith.mulf %115, %115 : vector<128x8xf32>
    %117 = arith.addf %81, %116 : vector<128x8xf32>
    %118 = tpu.concatenate %107, %89 in 1 : vector<128x8xf32>, vector<128x32xf32> -> vector<128x40xf32>
    %c0_59 = arith.constant 0 : index
    %c0_60 = arith.constant 0 : index
    %119 = vector.load %arg3[%c0_59, %c0_60] : memref<192x128xf32, #tpu.memory_space<vmem>>, vector<40x128xf32>
    %cst_61 = arith.constant dense<0.000000e+00> : vector<128x128xf32>
    %120 = tpu.matmul %118, %119, %cst_61 {dimension_numbers = #tpu.dot_dimension_numbers<[1], [0], [0], [1], [0, 0, 1, 1], [], []>} : vector<128x40xf32>, vector<40x128xf32>, vector<128x128xf32> -> vector<128x128xf32>
    %121 = vector.broadcast %3 : vector<1x128xf32> to vector<128x128xf32>
    %122 = arith.addf %120, %121 : vector<128x128xf32>
    %123 = vector.extract_strided_slice %122 {offsets = [0, 0], sizes = [128, 32], strides = [1, 1]} : vector<128x128xf32> to vector<128x32xf32>
    %cst_62 = arith.constant 0.000000e+00 : f32
    %124 = vector.broadcast %cst_62 : f32 to vector<128x32xf32>
    %125 = arith.maximumf %123, %124 : vector<128x32xf32>
    %126 = tpu.concatenate %125, %97 in 1 : vector<128x32xf32>, vector<128x32xf32> -> vector<128x64xf32>
    %c64_63 = arith.constant 64 : index
    %c0_64 = arith.constant 0 : index
    %127 = vector.load %arg3[%c64_63, %c0_64] : memref<192x128xf32, #tpu.memory_space<vmem>>, vector<64x128xf32>
    %cst_65 = arith.constant dense<0.000000e+00> : vector<128x128xf32>
    %128 = tpu.matmul %126, %127, %cst_65 {dimension_numbers = #tpu.dot_dimension_numbers<[1], [0], [0], [1], [0, 0, 1, 1], [], []>} : vector<128x64xf32>, vector<64x128xf32>, vector<128x128xf32> -> vector<128x128xf32>
    %129 = vector.broadcast %4 : vector<1x128xf32> to vector<128x128xf32>
    %130 = arith.addf %128, %129 : vector<128x128xf32>
    %131 = vector.extract_strided_slice %130 {offsets = [0, 0], sizes = [128, 32], strides = [1, 1]} : vector<128x128xf32> to vector<128x32xf32>
    %cst_66 = arith.constant 0.000000e+00 : f32
    %132 = vector.broadcast %cst_66 : f32 to vector<128x32xf32>
    %133 = arith.maximumf %131, %132 : vector<128x32xf32>
    %134 = tpu.concatenate %133, %105 in 1 : vector<128x32xf32>, vector<128x32xf32> -> vector<128x64xf32>
    %c128_67 = arith.constant 128 : index
    %c0_68 = arith.constant 0 : index
    %135 = vector.load %arg3[%c128_67, %c0_68] : memref<192x128xf32, #tpu.memory_space<vmem>>, vector<64x128xf32>
    %cst_69 = arith.constant dense<0.000000e+00> : vector<128x128xf32>
    %136 = tpu.matmul %134, %135, %cst_69 {dimension_numbers = #tpu.dot_dimension_numbers<[1], [0], [0], [1], [0, 0, 1, 1], [], []>} : vector<128x64xf32>, vector<64x128xf32>, vector<128x128xf32> -> vector<128x128xf32>
    %137 = vector.broadcast %5 : vector<1x128xf32> to vector<128x128xf32>
    %138 = arith.addf %136, %137 : vector<128x128xf32>
    %139 = vector.extract_strided_slice %138 {offsets = [0, 0], sizes = [128, 32], strides = [1, 1]} : vector<128x128xf32> to vector<128x32xf32>
    %cst_70 = arith.constant 0.000000e+00 : f32
    %140 = vector.broadcast %cst_70 : f32 to vector<128x32xf32>
    %141 = arith.maximumf %139, %140 : vector<128x32xf32>
    %142 = vector.extract_strided_slice %138 {offsets = [0, 32], sizes = [128, 8], strides = [1, 1]} : vector<128x128xf32> to vector<128x8xf32>
    %143 = arith.addf %107, %142 : vector<128x8xf32>
    %cst_71 = arith.constant 0.000000e+00 : f32
    %144 = vector.broadcast %cst_71 : f32 to vector<128x8xf32>
    %145 = arith.maximumf %143, %144 : vector<128x8xf32>
    %cst_72 = arith.constant 1.000000e+00 : f32
    %146 = vector.broadcast %cst_72 : f32 to vector<128x8xf32>
    %147 = arith.minimumf %145, %146 : vector<128x8xf32>
    %c4 = arith.constant 4 : index
    %c0_73 = arith.constant 0 : index
    %c0_74 = arith.constant 0 : index
    %148 = vector.load %arg5[%c4, %c0_73, %c0_74] : memref<5x128x8xf32, #tpu.memory_space<vmem>>, vector<1x128x8xf32>
    %149 = vector.shape_cast %148 : vector<1x128x8xf32> to vector<128x8xf32>
    %150 = vector.shape_cast %147 : vector<128x8xf32> to vector<1x128x8xf32>
    tpu.vector_store %arg5[%c4, %c0_73, %c0_74], %150 {strides = array<i32>} : memref<5x128x8xf32, #tpu.memory_space<vmem>>, vector<1x128x8xf32>,
    %151 = arith.subf %147, %1 : vector<128x8xf32>
    %152 = arith.mulf %151, %151 : vector<128x8xf32>
    %153 = arith.addf %117, %152 : vector<128x8xf32>
    %c0_75 = arith.constant 0 : index
    %c0_76 = arith.constant 0 : index
    %c0_77 = arith.constant 0 : index
    %154 = vector.load %arg6[%c0_75, %c0_76, %c0_77] : memref<3x128x32xf32, #tpu.memory_space<vmem>>, vector<1x128x32xf32>
    %155 = vector.shape_cast %154 : vector<1x128x32xf32> to vector<128x32xf32>
    %156 = vector.shape_cast %125 : vector<128x32xf32> to vector<1x128x32xf32>
    tpu.vector_store %arg6[%c0_75, %c0_76, %c0_77], %156 {strides = array<i32>} : memref<3x128x32xf32, #tpu.memory_space<vmem>>, vector<1x128x32xf32>,
    %c1_78 = arith.constant 1 : index
    %c0_79 = arith.constant 0 : index
    %c0_80 = arith.constant 0 : index
    %157 = vector.load %arg6[%c1_78, %c0_79, %c0_80] : memref<3x128x32xf32, #tpu.memory_space<vmem>>, vector<1x128x32xf32>
    %158 = vector.shape_cast %157 : vector<1x128x32xf32> to vector<128x32xf32>
    %159 = vector.shape_cast %133 : vector<128x32xf32> to vector<1x128x32xf32>
    tpu.vector_store %arg6[%c1_78, %c0_79, %c0_80], %159 {strides = array<i32>} : memref<3x128x32xf32, #tpu.memory_space<vmem>>, vector<1x128x32xf32>,
    %c2_81 = arith.constant 2 : index
    %c0_82 = arith.constant 0 : index
    %c0_83 = arith.constant 0 : index
    %160 = vector.load %arg6[%c2_81, %c0_82, %c0_83] : memref<3x128x32xf32, #tpu.memory_space<vmem>>, vector<1x128x32xf32>
    %161 = vector.shape_cast %160 : vector<1x128x32xf32> to vector<128x32xf32>
    %162 = vector.shape_cast %141 : vector<128x32xf32> to vector<1x128x32xf32>
    tpu.vector_store %arg6[%c2_81, %c0_82, %c0_83], %162 {strides = array<i32>} : memref<3x128x32xf32, #tpu.memory_space<vmem>>, vector<1x128x32xf32>,
    %cst_84 = arith.constant dense<0.000000e+00> : vector<128xf32>
    %163 = vector.multi_reduction <add>, %153, %cst_84 [1] : vector<128x8xf32> to vector<128xf32>
    %164 = vector.shape_cast %163 : vector<128xf32> to vector<128x1xf32>
    %cst_85 = arith.constant 3.125000e-02 : f32
    %165 = vector.broadcast %cst_85 : f32 to vector<128x1xf32>
    %166 = arith.mulf %164, %165 : vector<128x1xf32>
    %c0_86 = arith.constant 0 : index
    %c0_87 = arith.constant 0 : index
    %167 = vector.load %arg7[%c0_86, %c0_87] : memref<128x1xf32, #tpu.memory_space<vmem>>, vector<128x1xf32>
    tpu.vector_store %arg7[%c0_86, %c0_87], %166 {strides = array<i32>} : memref<128x1xf32, #tpu.memory_space<vmem>>, vector<128x1xf32>,
    return
  }
  func.func @transform_0(%arg0: i32) -> (i32, i32) {
    %c0_i32 = arith.constant 0 : i32
    %c0_i32_0 = arith.constant 0 : i32
    return %arg0, %c0_i32 : i32, i32
  }
  func.func @transform_1(%arg0: i32) -> (i32, i32) {
    %c0_i32 = arith.constant 0 : i32
    %c0_i32_0 = arith.constant 0 : i32
    return %arg0, %c0_i32 : i32, i32
  }
  func.func @transform_2(%arg0: i32) -> (i32, i32) {
    %c0_i32 = arith.constant 0 : i32
    %c0_i32_0 = arith.constant 0 : i32
    %c0_i32_1 = arith.constant 0 : i32
    return %c0_i32, %c0_i32_0 : i32, i32
  }
  func.func @transform_3(%arg0: i32) -> (i32, i32) {
    %c0_i32 = arith.constant 0 : i32
    %c0_i32_0 = arith.constant 0 : i32
    %c0_i32_1 = arith.constant 0 : i32
    return %c0_i32, %c0_i32_0 : i32, i32
  }
  func.func @transform_4(%arg0: i32) -> (i32, i32, i32) {
    %c0_i32 = arith.constant 0 : i32
    %c0_i32_0 = arith.constant 0 : i32
    %c0_i32_1 = arith.constant 0 : i32
    return %c0_i32, %arg0, %c0_i32_0 : i32, i32, i32
  }
  func.func @transform_5(%arg0: i32) -> (i32, i32, i32) {
    %c0_i32 = arith.constant 0 : i32
    %c0_i32_0 = arith.constant 0 : i32
    %c0_i32_1 = arith.constant 0 : i32
    return %c0_i32, %arg0, %c0_i32_0 : i32, i32, i32
  }
  func.func @transform_6(%arg0: i32) -> (i32, i32) {
    %c0_i32 = arith.constant 0 : i32
    %c0_i32_0 = arith.constant 0 : i32
    return %arg0, %c0_i32 : i32, i32
  }
}

</mosaic_0001>

<llo_original>
// kernel: rim_forward_sequence.1
$region0: #{rim_forward_sequence.1}
  #allocation0 [shape = 'u32[]', space=smem, size = 0x4, offset = 0x4, fixed_abs, tag = 'smem constant byte address 0x4 - core index']
  #allocation1 [shape = 'u32[144,128]{1,0:T(1,128)}', space=vmem, size = 0x12000, scoped, tag = 'internal scratch']
  %s0 = inlined_call_operand.vmem [shape: f32[256,8], index: 0, kind: input, shape index: {}]
  %s1 = inlined_call_operand.vmem [shape: f32[256,8], index: 1, kind: input, shape index: {}]
  %s2 = inlined_call_operand.vmem [shape: f32[192,128], index: 2, kind: input, shape index: {}]
  %s3 = inlined_call_operand.vmem [shape: f32[3,128], index: 3, kind: input, shape index: {}]
  %s4 = inlined_call_operand.vmem [shape: f32[5,256,8], index: 4, kind: output, shape index: {0}]
  %s5 = inlined_call_operand.vmem [shape: f32[3,256,32], index: 5, kind: output, shape index: {1}]
  %s6 = inlined_call_operand.vmem [shape: f32[256,1], index: 6, kind: output, shape index: {2}]
  %7 = xla_tuple %s4, %s5, %s6
  %s8 = sld [smem:[#allocation0]]
  $region133: #{rim_forward_sequence.1} parent=0
    _
  %s10 = ssub.s32 1, %s8
  %s11 = scalar_select 0, %s10, %s8
  $region1: #{rim_forward_sequence.1} parent=0
    #allocation2 [shape = 'u8[655360]{0}', space=vmem, size = 0xa0000, scoped, tag = 'output window, operand 0']
    #allocation3 [shape = 'u8[393216]{0}', space=vmem, size = 0x60000, scoped, tag = 'output window, operand 1']
    loop: start=0, step=1, limit=4
    $region2: #{rim_forward_sequence.1} parent=1 // loop_pre_header
      _
    $region3: #{rim_forward_sequence.1} parent=1 // loop_header
      %s13 = sphi 0, %s17
      %p14 = scmp.ge.s32.totalorder %s13, 4
      %s23 = sphi 0, %s25
      %s26 = sphi 0, %s23
      %s27 = sphi 0, %s26
      %s43 = sphi 0, %s27
      %s49 = sphi 0, %s51
      %s52 = sphi 0, %s49
      %s53 = sphi 0, %s52
      %s69 = sphi 0, %s53
      %s73 = sphi 0, %s73
      %s75 = sphi 0, %s73
      %s76 = sphi 0, %s75
      %s90 = sphi 0, %s76
      %s94 = sphi 0, %s94
      %s96 = sphi 0, %s94
      %s97 = sphi 0, %s96
      %s111 = sphi 0, %s97
      %s117 = sphi 0, %s119
      %s120 = sphi 0, %s117
      %s121 = sphi 0, %s120
      %s137 = sphi 0, %s121
      %s143 = sphi 0, %s145
      %s146 = sphi 0, %s143
      %s147 = sphi 0, %s146
      %s163 = sphi 0, %s147
      %s169 = sphi 0, %s171
      %s172 = sphi 0, %s169
      %s173 = sphi 0, %s172
      %s189 = sphi 0, %s173
    $region4: #{rim_forward_sequence.1} parent=1 // loop_header_branch
      %16 = sbr.rel (%p14) target = $region8
    $region5: #{rim_forward_sequence.1} parent=1 // loop_body
      %s18 = ssub.s32 %s13, 1
      %s19 = ssub.s32 %s13, 2
      %s20 = sadd.s32 %s13, 1
      %s21 = ssub.s32 %s13, %s20
      %p22 = scmp.eq.s32.totalorder %s21, 0
      %s24 = sadd.s32 %s23, 1
      %s25 = scalar_select %p22, %s23, %s24
      %p28 = pneg %p22
      %p29 = scmp.eq.s32.totalorder %s13, 1
      %p30 = por %p28, %p29
      %p31 = scmp.ne.s32.totalorder %s23, %s26
      %p32 = scmp.eq.s32.totalorder %s13, 0
      %p33 = por %p31, %p32
      %p34 = scmp.ne.s32.totalorder %s23, %s26
      %p35 = scmp.eq.s32.totalorder %s18, 1
      %p36 = por %p34, %p35
      %p37 = scmp.ne.s32.totalorder %s26, %s27
      %p38 = scmp.eq.s32.totalorder %s18, 0
      %p39 = por %p37, %p38
      %p40 = scmp.ne.s32.totalorder %s26, %s27
      %p41 = scmp.eq.s32.totalorder %s19, 1
      %p42 = por %p40, %p41
      %p44 = scmp.ne.s32.totalorder %s27, %s43
      %p45 = scmp.eq.s32.totalorder %s19, 0
      %p46 = por %p44, %p45
      %s47 = ssub.s32 %s13, %s20
      %p48 = scmp.eq.s32.totalorder %s47, 0
      %s50 = sadd.s32 %s49, 1
      %s51 = scalar_select %p48, %s49, %s50
      %p54 = pneg %p48
      %p55 = scmp.eq.s32.totalorder %s13, 1
      %p56 = por %p54, %p55
      %p57 = scmp.ne.s32.totalorder %s49, %s52
      %p58 = scmp.eq.s32.totalorder %s13, 0
      %p59 = por %p57, %p58
      %p60 = scmp.ne.s32.totalorder %s49, %s52
      %p61 = scmp.eq.s32.totalorder %s18, 1
      %p62 = por %p60, %p61
      %p63 = scmp.ne.s32.totalorder %s52, %s53
      %p64 = scmp.eq.s32.totalorder %s18, 0
      %p65 = por %p63, %p64
      %p66 = scmp.ne.s32.totalorder %s52, %s53
      %p67 = scmp.eq.s32.totalorder %s19, 1
      %p68 = por %p66, %p67
      %p70 = scmp.ne.s32.totalorder %s53, %s69
      %p71 = scmp.eq.s32.totalorder %s19, 0
      %p72 = por %p70, %p71
      %s74 = sadd.s32 %s73, 1
      %p77 = scmp.eq.s32.totalorder %s13, 1
      %p78 = scmp.ne.s32.totalorder %s73, %s75
      %p79 = scmp.eq.s32.totalorder %s13, 0
      %p80 = por %p78, %p79
      %p81 = scmp.ne.s32.totalorder %s73, %s75
      %p82 = scmp.eq.s32.totalorder %s18, 1
      %p83 = por %p81, %p82
      %p84 = scmp.ne.s32.totalorder %s75, %s76
      %p85 = scmp.eq.s32.totalorder %s18, 0
      %p86 = por %p84, %p85
      %p87 = scmp.ne.s32.totalorder %s75, %s76
      %p88 = scmp.eq.s32.totalorder %s19, 1
      %p89 = por %p87, %p88
      %p91 = scmp.ne.s32.totalorder %s76, %s90
      %p92 = scmp.eq.s32.totalorder %s19, 0
      %p93 = por %p91, %p92
      %s95 = sadd.s32 %s94, 1
      %p98 = scmp.eq.s32.totalorder %s13, 1
      %p99 = scmp.ne.s32.totalorder %s94, %s96
      %p100 = scmp.eq.s32.totalorder %s13, 0
      %p101 = por %p99, %p100
      %p102 = scmp.ne.s32.totalorder %s94, %s96
      %p103 = scmp.eq.s32.totalorder %s18, 1
      %p104 = por %p102, %p103
      %p105 = scmp.ne.s32.totalorder %s96, %s97
      %p106 = scmp.eq.s32.totalorder %s18, 0
      %p107 = por %p105, %p106
      %p108 = scmp.ne.s32.totalorder %s96, %s97
      %p109 = scmp.eq.s32.totalorder %s19, 1
      %p110 = por %p108, %p109
      %p112 = scmp.ne.s32.totalorder %s97, %s111
      %p113 = scmp.eq.s32.totalorder %s19, 0
      %p114 = por %p112, %p113
      %s115 = ssub.s32 %s13, %s20
      %p116 = scmp.eq.s32.totalorder %s115, 0
      %s118 = sadd.s32 %s117, 1
      %s119 = scalar_select %p116, %s117, %s118
      %p122 = pneg %p116
      %p123 = scmp.eq.s32.totalorder %s13, 1
      %p124 = por %p122, %p123
      %p125 = scmp.ne.s32.totalorder %s117, %s120
      %p126 = scmp.eq.s32.totalorder %s13, 0
      %p127 = por %p125, %p126
      %p128 = scmp.ne.s32.totalorder %s117, %s120
      %p129 = scmp.eq.s32.totalorder %s18, 1
      %p130 = por %p128, %p129
      %p131 = scmp.ne.s32.totalorder %s120, %s121
      %p132 = scmp.eq.s32.totalorder %s18, 0
      %p133 = por %p131, %p132
      %p134 = scmp.ne.s32.totalorder %s120, %s121
      %p135 = scmp.eq.s32.totalorder %s19, 1
      %p136 = por %p134, %p135
      %p138 = scmp.ne.s32.totalorder %s121, %s137
      %p139 = scmp.eq.s32.totalorder %s19, 0
      %p140 = por %p138, %p139
      %s141 = ssub.s32 %s13, %s20
      %p142 = scmp.eq.s32.totalorder %s141, 0
      %s144 = sadd.s32 %s143, 1
      %s145 = scalar_select %p142, %s143, %s144
      %p148 = pneg %p142
      %p149 = scmp.eq.s32.totalorder %s13, 1
      %p150 = por %p148, %p149
      %p151 = scmp.ne.s32.totalorder %s143, %s146
      %p152 = scmp.eq.s32.totalorder %s13, 0
      %p153 = por %p151, %p152
      %p154 = scmp.ne.s32.totalorder %s143, %s146
      %p155 = scmp.eq.s32.totalorder %s18, 1
      %p156 = por %p154, %p155
      %p157 = scmp.ne.s32.totalorder %s146, %s147
      %p158 = scmp.eq.s32.totalorder %s18, 0
      %p159 = por %p157, %p158
      %p160 = scmp.ne.s32.totalorder %s146, %s147
      %p161 = scmp.eq.s32.totalorder %s19, 1
      %p162 = por %p160, %p161
      %p164 = scmp.ne.s32.totalorder %s147, %s163
      %p165 = scmp.eq.s32.totalorder %s19, 0
      %p166 = por %p164, %p165
      %s167 = ssub.s32 %s13, %s20
      %p168 = scmp.eq.s32.totalorder %s167, 0
      %s170 = sadd.s32 %s169, 1
      %s171 = scalar_select %p168, %s169, %s170
      %p174 = pneg %p168
      %p175 = scmp.eq.s32.totalorder %s13, 1
      %p176 = por %p174, %p175
      %p177 = scmp.ne.s32.totalorder %s169, %s172
      %p178 = scmp.eq.s32.totalorder %s13, 0
      %p179 = por %p177, %p178
      %p180 = scmp.ne.s32.totalorder %s169, %s172
      %p181 = scmp.eq.s32.totalorder %s18, 1
      %p182 = por %p180, %p181
      %p183 = scmp.ne.s32.totalorder %s172, %s173
      %p184 = scmp.eq.s32.totalorder %s18, 0
      %p185 = por %p183, %p184
      %p186 = scmp.ne.s32.totalorder %s172, %s173
      %p187 = scmp.eq.s32.totalorder %s19, 1
      %p188 = por %p186, %p187
      %p190 = scmp.ne.s32.totalorder %s173, %s189
      %p191 = scmp.eq.s32.totalorder %s19, 0
      %p192 = por %p190, %p191
      %p193 = scmp.le.s32.totalorder 1, %s13
      %p194 = scmp.lt.s32.totalorder %s13, 3
      %p195 = pnand %p193, %p194
      %p196 = pneg %p195
      // Predicated region
      $region9: #{rim_forward_sequence.1} parent=5 // pred_check
        _
      $region10: #{rim_forward_sequence.1} parent=5 // pred_check_branch
        %198 = sbr.rel (%p195) target = $region12
      $region11: #{rim_forward_sequence.1} parent=5 // pred_region
        %s199 = ssub.s32 %s13, 1
        // Predicated region
        $region13: #{rim_forward_sequence.1} parent=11 // pred_check
          %p200 = pneg %p86
        $region14: #{rim_forward_sequence.1} parent=11 // pred_check_branch
          %202 = sbr.rel (%p200) target = $region16
        $region15: #{rim_forward_sequence.1} parent=11 // pred_region
          _
        $region16: #{rim_forward_sequence.1} parent=11 // pred_fallthru
          _
        // Predicated region
        $region17: #{rim_forward_sequence.1} parent=11 // pred_check
          %p203 = pneg %p107
        $region18: #{rim_forward_sequence.1} parent=11 // pred_check_branch
          %205 = sbr.rel (%p203) target = $region20
        $region19: #{rim_forward_sequence.1} parent=11 // pred_region
          _
        $region20: #{rim_forward_sequence.1} parent=11 // pred_fallthru
          _
      $region12: #{rim_forward_sequence.1} parent=5 // pred_fallthru
        _
      %p206 = scmp.lt.s32.totalorder %s13, 2
      // Predicated region
      $region21: #{rim_forward_sequence.1} parent=5 // pred_check
        %p207 = pneg %p206
      $region22: #{rim_forward_sequence.1} parent=5 // pred_check_branch
        %209 = sbr.rel (%p207) target = $region24
      $region23: #{rim_forward_sequence.1} parent=5 // pred_region
        // Predicated region
        $region25: #{rim_forward_sequence.1} parent=23 // pred_check
          %p210 = pneg %p33
        $region26: #{rim_forward_sequence.1} parent=23 // pred_check_branch
          %212 = sbr.rel (%p210) target = $region28
        $region27: #{rim_forward_sequence.1} parent=23 // pred_region
          %s213 = smul.u32 16, %s13
          %p214 = scmp.lt.s32.totalorder %s213, 31
          %s215 = scalar_select %p214, %s213, 31
          %s216 = smul.addr %s215, 8
          %s217 = scalar_lea.vmem %s0, %s216
          %s218 = smul.u32 16, %s13
        $region28: #{rim_forward_sequence.1} parent=23 // pred_fallthru
          _
        // Predicated region
        $region29: #{rim_forward_sequence.1} parent=23 // pred_check
          %p219 = pneg %p59
        $region30: #{rim_forward_sequence.1} parent=23 // pred_check_branch
          %221 = sbr.rel (%p219) target = $region32
        $region31: #{rim_forward_sequence.1} parent=23 // pred_region
          %s222 = smul.u32 16, %s13
          %p223 = scmp.lt.s32.totalorder %s222, 31
          %s224 = scalar_select %p223, %s222, 31
          %s225 = smul.addr %s224, 8
          %s226 = scalar_lea.vmem %s1, %s225
          %s227 = smul.u32 16, %s13
        $region32: #{rim_forward_sequence.1} parent=23 // pred_fallthru
          _
      $region24: #{rim_forward_sequence.1} parent=5 // pred_fallthru
        _
      %p228 = scmp.le.s32.totalorder 1, %s13
      %p229 = scmp.lt.s32.totalorder %s13, 3
      %p230 = pnand %p228, %p229
      %p231 = pneg %p230
      // Predicated region
      $region33: #{rim_forward_sequence.1} parent=5 // pred_check
        _
      $region34: #{rim_forward_sequence.1} parent=5 // pred_check_branch
        %233 = sbr.rel (%p230) target = $region36
      $region35: #{rim_forward_sequence.1} parent=5 // pred_region
        %s234 = ssub.s32 %s13, 1
        %s235 = smul.u32 16, %s18
        %p236 = scmp.lt.s32.totalorder %s235, 31
        %s237 = scalar_select %p236, %s235, 31
        %s238 = smul.addr %s237, 8
        %s239 = scalar_lea.vmem %s0, %s238
        %p240 = pneg %p39
        %p241 = pneg %p36
        %s242 = smul.u32 16, %s18
        %p243 = scmp.lt.s32.totalorder %s242, 31
        %s244 = scalar_select %p243, %s242, 31
        %s245 = smul.addr %s244, 8
        %s246 = scalar_lea.vmem %s1, %s245
        %p247 = pneg %p65
        %p248 = pneg %p62
        %p249 = pneg %p86
        %p250 = pneg %p83
        %p251 = pneg %p107
        %p252 = pneg %p104
        %p253 = pneg %p133
        %p254 = pneg %p130
        %s255 = sand.u32 %s120, 1
        %s256 = sand.u32 %s120, 1
        %s257 = smul.addr %s256, 640
        %s258 = scalar_lea.vmem [#allocation2], %s257
        %p259 = pneg %p159
        %p260 = pneg %p156
        %s261 = sand.u32 %s146, 1
        %s262 = sand.u32 %s146, 1
        %s263 = smul.addr %s262, 384
        %s264 = scalar_lea.vmem [#allocation3], %s263
        %p265 = pneg %p185
        %p266 = pneg %p182
        %s267 = smul.u32 16, %s18
        %p268 = scmp.lt.s32.totalorder %s267, 31
        %s269 = scalar_select %p268, %s267, 31
        %s270 = smul.addr %s269, 8
        %s271 = scalar_lea.vmem %s6, %s270
        %s272 = smul.u32 16, %s18
        %p273 = scmp.lt.s32.totalorder %s272, 31
        %s274 = scalar_select %p273, %s272, 31
        %s275 = smul.addr %s274, 8
        %s276 = scalar_lea.vmem %s0, %s275
        %s277 = smul.u32 16, %s18
        %s278 = smul.u32 16, %s18
        %p279 = scmp.lt.s32.totalorder %s278, 31
        %s280 = scalar_select %p279, %s278, 31
        %s281 = smul.addr %s280, 8
        %s282 = scalar_lea.vmem %s1, %s281
        %s283 = smul.u32 16, %s18
        %s284 = smul.u32 16, %s18
        %s285 = smul.u32 16, %s18
        %s286 = smul.u32 16, %s18
        %p287 = scmp.lt.s32.totalorder %s286, 31
        %s288 = scalar_select %p287, %s286, 31
        %s289 = smul.addr %s288, 8
        %s290 = scalar_lea.vmem %s6, %s289
        %s291 = smul.u32 16, %s18
        %v292 = vld [vmem:[%s276] sm:$0xff]
        %v293 = vld [vmem:[%s276 + $0x8] sm:$0xff]
        %v294 = vld [vmem:[%s276 + $0x10] sm:$0xff]
        %v295 = vld [vmem:[%s276 + $0x18] sm:$0xff]
        %v296 = vld [vmem:[%s276 + $0x20] sm:$0xff]
        %v297 = vld [vmem:[%s276 + $0x28] sm:$0xff]
        %v298 = vld [vmem:[%s276 + $0x30] sm:$0xff]
        %v299 = vld [vmem:[%s276 + $0x38] sm:$0xff]
        %v300 = vld [vmem:[%s276 + $0x40] sm:$0xff]
        %v301 = vld [vmem:[%s276 + $0x48] sm:$0xff]
        %v302 = vld [vmem:[%s276 + $0x50] sm:$0xff]
        %v303 = vld [vmem:[%s276 + $0x58] sm:$0xff]
        %v304 = vld [vmem:[%s276 + $0x60] sm:$0xff]
        %v305 = vld [vmem:[%s276 + $0x68] sm:$0xff]
        %v306 = vld [vmem:[%s276 + $0x70] sm:$0xff]
        %v307 = vld [vmem:[%s276 + $0x78] sm:$0xff]
        %v308 = vld [vmem:[%s282] sm:$0xff]
        %v309 = vld [vmem:[%s282 + $0x8] sm:$0xff]
        %v310 = vld [vmem:[%s282 + $0x10] sm:$0xff]
        %v311 = vld [vmem:[%s282 + $0x18] sm:$0xff]
        %v312 = vld [vmem:[%s282 + $0x20] sm:$0xff]
        %v313 = vld [vmem:[%s282 + $0x28] sm:$0xff]
        %v314 = vld [vmem:[%s282 + $0x30] sm:$0xff]
        %v315 = vld [vmem:[%s282 + $0x38] sm:$0xff]
        %v316 = vld [vmem:[%s282 + $0x40] sm:$0xff]
        %v317 = vld [vmem:[%s282 + $0x48] sm:$0xff]
        %v318 = vld [vmem:[%s282 + $0x50] sm:$0xff]
        %v319 = vld [vmem:[%s282 + $0x58] sm:$0xff]
        %v320 = vld [vmem:[%s282 + $0x60] sm:$0xff]
        %v321 = vld [vmem:[%s282 + $0x68] sm:$0xff]
        %v322 = vld [vmem:[%s282 + $0x70] sm:$0xff]
        %v323 = vld [vmem:[%s282 + $0x78] sm:$0xff]
        %v324 = vld [vmem:[%s3] sm:$0x1]
        %v325 = vld [vmem:[%s3 + $0x1] sm:$0x1]
        %v326 = vld [vmem:[%s3 + $0x2] sm:$0x1]
        %vm327 = vcmask 64512
        %328 = vst.msk [vmem:[%s258] sm:$0xff] %vm327, %v292
        %329 = vst.msk [vmem:[%s258 + $0x8] sm:$0xff] %vm327, %v293
        %330 = vst.msk [vmem:[%s258 + $0x10] sm:$0xff] %vm327, %v294
        %331 = vst.msk [vmem:[%s258 + $0x18] sm:$0xff] %vm327, %v295
        %332 = vst.msk [vmem:[%s258 + $0x20] sm:$0xff] %vm327, %v296
        %333 = vst.msk [vmem:[%s258 + $0x28] sm:$0xff] %vm327, %v297
        %334 = vst.msk [vmem:[%s258 + $0x30] sm:$0xff] %vm327, %v298
        %335 = vst.msk [vmem:[%s258 + $0x38] sm:$0xff] %vm327, %v299
        %336 = vst.msk [vmem:[%s258 + $0x40] sm:$0xff] %vm327, %v300
        %337 = vst.msk [vmem:[%s258 + $0x48] sm:$0xff] %vm327, %v301
        %338 = vst.msk [vmem:[%s258 + $0x50] sm:$0xff] %vm327, %v302
        %339 = vst.msk [vmem:[%s258 + $0x58] sm:$0xff] %vm327, %v303
        %340 = vst.msk [vmem:[%s258 + $0x60] sm:$0xff] %vm327, %v304
        %341 = vst.msk [vmem:[%s258 + $0x68] sm:$0xff] %vm327, %v305
        %342 = vst.msk [vmem:[%s258 + $0x70] sm:$0xff] %vm327, %v306
        %343 = vst.msk [vmem:[%s258 + $0x78] sm:$0xff] %vm327, %v307
        %v344 = vsel %vm327, %v292, 0.0
        %v345 = vsel %vm327, %v293, 0.0
        %v346 = vsel %vm327, %v294, 0.0
        %v347 = vsel %vm327, %v295, 0.0
        %v348 = vsel %vm327, %v296, 0.0
        %v349 = vsel %vm327, %v297, 0.0
        %v350 = vsel %vm327, %v298, 0.0
        %v351 = vsel %vm327, %v299, 0.0
        %v352 = vsel %vm327, %v300, 0.0
        %v353 = vsel %vm327, %v301, 0.0
        %v354 = vsel %vm327, %v302, 0.0
        %v355 = vsel %vm327, %v303, 0.0
        %v356 = vsel %vm327, %v304, 0.0
        %v357 = vsel %vm327, %v305, 0.0
        %v358 = vsel %vm327, %v306, 0.0
        %v359 = vsel %vm327, %v307, 0.0
        %v360 = vld [vmem:[%s2] sm:$0xff]
        %v361 = vld [vmem:[%s2 + $0x8] sm:$0xff]
        %v362 = vld [vmem:[%s2 + $0x10] sm:$0xff]
        %v363 = vld [vmem:[%s2 + $0x18] sm:$0xff]
        %v364 = vld [vmem:[%s2 + $0x20] sm:$0xff]
        %v365 = vlaneseq
        %v366 = vshrl.u32 %v365, 7
        %v367 = vsub.s32 0, %v366
        %v368 = vrot.slane %v324, %v367
        %vm369 = vcmask 326656
        %v371 = vsel %vm369, %v344, 0
        %v374 = vsel %vm369, %v345, 0
        %v377 = vsel %vm369, %v346, 0
        %v380 = vsel %vm369, %v347, 0
        %v383 = vsel %vm369, %v348, 0
        %v386 = vsel %vm369, %v349, 0
        %v389 = vsel %vm369, %v350, 0
        %v392 = vsel %vm369, %v351, 0
        %v395 = vsel %vm369, %v352, 0
        %v398 = vsel %vm369, %v353, 0
        %v401 = vsel %vm369, %v354, 0
        %v404 = vsel %vm369, %v355, 0
        %v407 = vsel %vm369, %v356, 0
        %v410 = vsel %vm369, %v357, 0
        %v413 = vsel %vm369, %v358, 0
        %v416 = vsel %vm369, %v359, 0
        %418 = vmatprep.subr.mxu0 0.0
        %419 = vmatpush1.msra.mxu0 %v360
        %420 = vmatprep.subr.mxu0 0.0
        %421 = vmatpush1.msra.mxu0 %v361
        %422 = vmatprep.subr.mxu0 0.0
        %423 = vmatpush1.msra.mxu0 %v362
        %424 = vmatprep.subr.mxu0 0.0
        %425 = vmatpush1.msra.mxu0 %v363
        %426 = vmatprep.subr.mxu0 0.0
        %427 = vmatpush1.msra.mxu0 %v364
        %428 = vmatprep.subr.mxu0 0.0
        %429 = vmatpush1.msra.mxu0 0.0
        %430 = vmatprep.subr.mxu0 0.0
        %431 = vmatpush1.msra.mxu0 0.0
        %432 = vmatprep.subr.mxu0 0.0
        %433 = vmatpush1.msra.mxu0 0.0
        %434 = vmatprep.subr.mxu0 0.0
        %435 = vmatpush1.msra.mxu0 0.0
        %436 = vmatprep.subr.mxu0 0.0
        %437 = vmatpush1.msra.mxu0 0.0
        %438 = vmatprep.subr.mxu0 0.0
        %439 = vmatpush1.msra.mxu0 0.0
        %440 = vmatprep.subr.mxu0 0.0
        %441 = vmatpush1.msra.mxu0 0.0
        %442 = vmatprep.subr.mxu0 0.0
        %443 = vmatpush1.msra.mxu0 0.0
        %444 = vmatprep.subr.mxu0 0.0
        %445 = vmatpush1.msra.mxu0 0.0
        %446 = vmatprep.subr.mxu0 0.0
        %447 = vmatpush1.msra.mxu0 0.0
        %448 = vmatprep.subr.mxu0 0.0
        %449 = vmatpush1.msra.mxu0 0.0
        %450 = vmatprep.subr.mxu0 0.0
        %451 = vmatpush1.msra.mxu0 0.0
        %452 = vmatprep.subr.mxu0 0.0
        %453 = vmatpush1.msra.mxu0 0.0
        %454 = vmatprep.subr.mxu0 0.0
        %455 = vmatpush1.msra.mxu0 0.0
        %456 = vmatprep.subr.mxu0 0.0
        %457 = vmatpush1.msra.mxu0 0.0
        %458 = vmatprep.subr.mxu0 0.0
        %459 = vmatpush1.msra.mxu0 0.0
        %460 = vmatprep.subr.mxu0 0.0
        %461 = vmatpush1.msra.mxu0 0.0
        %462 = vmatprep.subr.mxu0 0.0
        %463 = vmatpush1.msra.mxu0 0.0
        %464 = vmatprep.subr.mxu0 0.0
        %465 = vmatpush1.msra.mxu0 0.0
        %466 = vmatprep.subr.mxu0 0.0
        %467 = vmatpush1.msra.mxu0 0.0
        %468 = vmatprep.subr.mxu0 0.0
        %469 = vmatpush1.msra.mxu0 0.0
        %470 = vmatprep.subr.mxu0 0.0
        %471 = vmatpush1.msra.mxu0 0.0
        %472 = vmatprep.subr.mxu0 0.0
        %473 = vmatpush1.msra.mxu0 0.0
        %474 = vmatprep.subr.mxu0 0.0
        %475 = vmatpush1.msra.mxu0 0.0
        %476 = vmatprep.subr.mxu0 0.0
        %477 = vmatpush1.msra.mxu0 0.0
        %478 = vmatprep.subr.mxu0 0.0
        %479 = vmatpush1.msra.mxu0 0.0
        %480 = vmatprep.subr.mxu0 0.0
        %481 = vmatpush1.msra.mxu0 0.0
        %482 = vmatprep.mubr.f32.mxu0 0.0
        %483 = vmatmul.mubr.f32.gmra.mrb[0].mxu0 %v371
        %v484 = vpop.f32.mrb[0].mxu0
        %v485 = vadd.f32 %v368, %v484
        %v486 = vpop.f32.mrb[0].mxu0
        %487 = vmatprep.mubr.f32.mxu0 0.0
        %488 = vmatmul.mubr.f32.gmra.mrb[0].mxu0 %v374
        %v489 = vpop.f32.mrb[0].mxu0
        %v490 = vadd.f32 %v368, %v489
        %v491 = vpop.f32.mrb[0].mxu0
        %492 = vmatprep.mubr.f32.mxu0 0.0
        %493 = vmatmul.mubr.f32.gmra.mrb[0].mxu0 %v377
        %v494 = vpop.f32.mrb[0].mxu0
        %v495 = vadd.f32 %v368, %v494
        %v496 = vpop.f32.mrb[0].mxu0
        %497 = vmatprep.mubr.f32.mxu0 0.0
        %498 = vmatmul.mubr.f32.gmra.mrb[0].mxu0 %v380
        %v499 = vpop.f32.mrb[0].mxu0
        %v500 = vadd.f32 %v368, %v499
        %v501 = vpop.f32.mrb[0].mxu0
        %502 = vmatprep.mubr.f32.mxu0 0.0
        %503 = vmatmul.mubr.f32.gmra.mrb[0].mxu0 %v383
        %v504 = vpop.f32.mrb[0].mxu0
        %v505 = vadd.f32 %v368, %v504
        %v506 = vpop.f32.mrb[0].mxu0
        %507 = vmatprep.mubr.f32.mxu0 0.0
        %508 = vmatmul.mubr.f32.gmra.mrb[0].mxu0 %v386
        %v509 = vpop.f32.mrb[0].mxu0
        %v510 = vadd.f32 %v368, %v509
        %v511 = vpop.f32.mrb[0].mxu0
        %512 = vmatprep.mubr.f32.mxu0 0.0
        %513 = vmatmul.mubr.f32.gmra.mrb[0].mxu0 %v389
        %v514 = vpop.f32.mrb[0].mxu0
        %v515 = vadd.f32 %v368, %v514
        %v516 = vpop.f32.mrb[0].mxu0
        %517 = vmatprep.mubr.f32.mxu0 0.0
        %518 = vmatmul.mubr.f32.gmra.mrb[0].mxu0 %v392
        %v519 = vpop.f32.mrb[0].mxu0
        %v520 = vadd.f32 %v368, %v519
        %v521 = vpop.f32.mrb[0].mxu0
        %522 = vmatprep.mubr.f32.mxu0 0.0
        %523 = vmatmul.mubr.f32.gmra.mrb[0].mxu0 %v395
        %v524 = vpop.f32.mrb[0].mxu0
        %v525 = vadd.f32 %v368, %v524
        %v526 = vpop.f32.mrb[0].mxu0
        %527 = vmatprep.mubr.f32.mxu0 0.0
        %528 = vmatmul.mubr.f32.gmra.mrb[0].mxu0 %v398
        %v529 = vpop.f32.mrb[0].mxu0
        %v530 = vadd.f32 %v368, %v529
        %v531 = vpop.f32.mrb[0].mxu0
        %532 = vmatprep.mubr.f32.mxu0 0.0
        %533 = vmatmul.mubr.f32.gmra.mrb[0].mxu0 %v401
        %v534 = vpop.f32.mrb[0].mxu0
        %v535 = vadd.f32 %v368, %v534
        %v536 = vpop.f32.mrb[0].mxu0
        %537 = vmatprep.mubr.f32.mxu0 0.0
        %538 = vmatmul.mubr.f32.gmra.mrb[0].mxu0 %v404
        %v539 = vpop.f32.mrb[0].mxu0
        %v540 = vadd.f32 %v368, %v539
        %v541 = vpop.f32.mrb[0].mxu0
        %542 = vmatprep.mubr.f32.mxu0 0.0
        %543 = vmatmul.mubr.f32.gmra.mrb[0].mxu0 %v407
        %v544 = vpop.f32.mrb[0].mxu0
        %v545 = vadd.f32 %v368, %v544
        %v546 = vpop.f32.mrb[0].mxu0
        %547 = vmatprep.mubr.f32.mxu0 0.0
        %548 = vmatmul.mubr.f32.gmra.mrb[0].mxu0 %v410
        %v549 = vpop.f32.mrb[0].mxu0
        %v550 = vadd.f32 %v368, %v549
        %v551 = vpop.f32.mrb[0].mxu0
        %552 = vmatprep.mubr.f32.mxu0 0.0
        %553 = vmatmul.mubr.f32.gmra.mrb[0].mxu0 %v413
        %v554 = vpop.f32.mrb[0].mxu0
        %v555 = vadd.f32 %v368, %v554
        %v556 = vpop.f32.mrb[0].mxu0
        %557 = vmatprep.mubr.f32.mxu0 0.0
        %558 = vmatmul.mubr.f32.gmra.mrb[0].mxu0 %v416
        %v559 = vpop.f32.mrb[0].mxu0
        %v560 = vadd.f32 %v368, %v559
        %v561 = vpop.f32.mrb[0].mxu0
        %562 = vdwg.mxu0
        %v563 = vmax.f32 %v485, 0.0
        %v564 = vmax.f32 %v490, 0.0
        %v565 = vmax.f32 %v495, 0.0
        %v566 = vmax.f32 %v500, 0.0
        %v567 = vmax.f32 %v505, 0.0
        %v568 = vmax.f32 %v510, 0.0
        %v569 = vmax.f32 %v515, 0.0
        %v570 = vmax.f32 %v520, 0.0
        %v571 = vmax.f32 %v525, 0.0
        %v572 = vmax.f32 %v530, 0.0
        %v573 = vmax.f32 %v535, 0.0
        %v574 = vmax.f32 %v540, 0.0
        %v575 = vmax.f32 %v545, 0.0
        %v576 = vmax.f32 %v550, 0.0
        %v577 = vmax.f32 %v555, 0.0
        %v578 = vmax.f32 %v560, 0.0
        %vm579 = vcmask 261120
        %v580 = vsel %vm579, %v563, 0.0
        %v581 = vsel %vm579, %v564, 0.0
        %v582 = vsel %vm579, %v565, 0.0
        %v583 = vsel %vm579, %v566, 0.0
        %v584 = vsel %vm579, %v567, 0.0
        %v585 = vsel %vm579, %v568, 0.0
        %v586 = vsel %vm579, %v569, 0.0
        %v587 = vsel %vm579, %v570, 0.0
        %v588 = vsel %vm579, %v571, 0.0
        %v589 = vsel %vm579, %v572, 0.0
        %v590 = vsel %vm579, %v573, 0.0
        %v591 = vsel %vm579, %v574, 0.0
        %v592 = vsel %vm579, %v575, 0.0
        %v593 = vsel %vm579, %v576, 0.0
        %v594 = vsel %vm579, %v577, 0.0
        %v595 = vsel %vm579, %v578, 0.0
        %v596 = vld [vmem:[%s2 + $0x40] sm:$0xff]
        %v597 = vld [vmem:[%s2 + $0x48] sm:$0xff]
        %v598 = vld [vmem:[%s2 + $0x50] sm:$0xff]
        %v599 = vld [vmem:[%s2 + $0x58] sm:$0xff]
        %v600 = vld [vmem:[%s2 + $0x60] sm:$0xff]
        %v601 = vld [vmem:[%s2 + $0x68] sm:$0xff]
        %v602 = vld [vmem:[%s2 + $0x70] sm:$0xff]
        %v603 = vld [vmem:[%s2 + $0x78] sm:$0xff]
        %v604 = vlaneseq
        %v605 = vshrl.u32 %v604, 7
        %v606 = vsub.s32 0, %v605
        %v607 = vrot.slane %v325, %v606
        %vm608 = vcmask 523264
        %v610 = vsel %vm608, %v580, 0
        %v613 = vsel %vm608, %v581, 0
        %v616 = vsel %vm608, %v582, 0
        %v619 = vsel %vm608, %v583, 0
        %v622 = vsel %vm608, %v584, 0
        %v625 = vsel %vm608, %v585, 0
        %v628 = vsel %vm608, %v586, 0
        %v631 = vsel %vm608, %v587, 0
        %v634 = vsel %vm608, %v588, 0
        %v637 = vsel %vm608, %v589, 0
        %v640 = vsel %vm608, %v590, 0
        %v643 = vsel %vm608, %v591, 0
        %v646 = vsel %vm608, %v592, 0
        %v649 = vsel %vm608, %v593, 0
        %v652 = vsel %vm608, %v594, 0
        %v655 = vsel %vm608, %v595, 0
        %657 = vmatprep.subr.mxu0 0.0
        %658 = vmatpush1.msra.mxu0 %v596
        %659 = vmatprep.subr.mxu0 0.0
        %660 = vmatpush1.msra.mxu0 %v597
        %661 = vmatprep.subr.mxu0 0.0
        %662 = vmatpush1.msra.mxu0 %v598
        %663 = vmatprep.subr.mxu0 0.0
        %664 = vmatpush1.msra.mxu0 %v599
        %665 = vmatprep.subr.mxu0 0.0
        %666 = vmatpush1.msra.mxu0 %v600
        %667 = vmatprep.subr.mxu0 0.0
        %668 = vmatpush1.msra.mxu0 %v601
        %669 = vmatprep.subr.mxu0 0.0
        %670 = vmatpush1.msra.mxu0 %v602
        %671 = vmatprep.subr.mxu0 0.0
        %672 = vmatpush1.msra.mxu0 %v603
        %673 = vmatprep.subr.mxu0 0.0
        %674 = vmatpush1.msra.mxu0 0.0
        %675 = vmatprep.subr.mxu0 0.0
        %676 = vmatpush1.msra.mxu0 0.0
        %677 = vmatprep.subr.mxu0 0.0
        %678 = vmatpush1.msra.mxu0 0.0
        %679 = vmatprep.subr.mxu0 0.0
        %680 = vmatpush1.msra.mxu0 0.0
        %681 = vmatprep.subr.mxu0 0.0
        %682 = vmatpush1.msra.mxu0 0.0
        %683 = vmatprep.subr.mxu0 0.0
        %684 = vmatpush1.msra.mxu0 0.0
        %685 = vmatprep.subr.mxu0 0.0
        %686 = vmatpush1.msra.mxu0 0.0
        %687 = vmatprep.subr.mxu0 0.0
        %688 = vmatpush1.msra.mxu0 0.0
        %689 = vmatprep.subr.mxu0 0.0
        %690 = vmatpush1.msra.mxu0 0.0
        %691 = vmatprep.subr.mxu0 0.0
        %692 = vmatpush1.msra.mxu0 0.0
        %693 = vmatprep.subr.mxu0 0.0
        %694 = vmatpush1.msra.mxu0 0.0
        %695 = vmatprep.subr.mxu0 0.0
        %696 = vmatpush1.msra.mxu0 0.0
        %697 = vmatprep.subr.mxu0 0.0
        %698 = vmatpush1.msra.mxu0 0.0
        %699 = vmatprep.subr.mxu0 0.0
        %700 = vmatpush1.msra.mxu0 0.0
        %701 = vmatprep.subr.mxu0 0.0
        %702 = vmatpush1.msra.mxu0 0.0
        %703 = vmatprep.subr.mxu0 0.0
        %704 = vmatpush1.msra.mxu0 0.0
        %705 = vmatprep.subr.mxu0 0.0
        %706 = vmatpush1.msra.mxu0 0.0
        %707 = vmatprep.subr.mxu0 0.0
        %708 = vmatpush1.msra.mxu0 0.0
        %709 = vmatprep.subr.mxu0 0.0
        %710 = vmatpush1.msra.mxu0 0.0
        %711 = vmatprep.subr.mxu0 0.0
        %712 = vmatpush1.msra.mxu0 0.0
        %713 = vmatprep.subr.mxu0 0.0
        %714 = vmatpush1.msra.mxu0 0.0
        %715 = vmatprep.subr.mxu0 0.0
        %716 = vmatpush1.msra.mxu0 0.0
        %717 = vmatprep.subr.mxu0 0.0
        %718 = vmatpush1.msra.mxu0 0.0
        %719 = vmatprep.subr.mxu0 0.0
        %720 = vmatpush1.msra.mxu0 0.0
        %721 = vmatprep.mubr.f32.mxu0 0.0
        %722 = vmatmul.mubr.f32.gmra.mrb[0].mxu0 %v610
        %v723 = vpop.f32.mrb[0].mxu0
        %v724 = vadd.f32 %v607, %v723
        %v725 = vpop.f32.mrb[0].mxu0
        %726 = vmatprep.mubr.f32.mxu0 0.0
        %727 = vmatmul.mubr.f32.gmra.mrb[0].mxu0 %v613
        %v728 = vpop.f32.mrb[0].mxu0
        %v729 = vadd.f32 %v607, %v728
        %v730 = vpop.f32.mrb[0].mxu0
        %731 = vmatprep.mubr.f32.mxu0 0.0
        %732 = vmatmul.mubr.f32.gmra.mrb[0].mxu0 %v616
        %v733 = vpop.f32.mrb[0].mxu0
        %v734 = vadd.f32 %v607, %v733
        %v735 = vpop.f32.mrb[0].mxu0
        %736 = vmatprep.mubr.f32.mxu0 0.0
        %737 = vmatmul.mubr.f32.gmra.mrb[0].mxu0 %v619
        %v738 = vpop.f32.mrb[0].mxu0
        %v739 = vadd.f32 %v607, %v738
        %v740 = vpop.f32.mrb[0].mxu0
        %741 = vmatprep.mubr.f32.mxu0 0.0
        %742 = vmatmul.mubr.f32.gmra.mrb[0].mxu0 %v622
        %v743 = vpop.f32.mrb[0].mxu0
        %v744 = vadd.f32 %v607, %v743
        %v745 = vpop.f32.mrb[0].mxu0
        %746 = vmatprep.mubr.f32.mxu0 0.0
        %747 = vmatmul.mubr.f32.gmra.mrb[0].mxu0 %v625
        %v748 = vpop.f32.mrb[0].mxu0
        %v749 = vadd.f32 %v607, %v748
        %v750 = vpop.f32.mrb[0].mxu0
        %751 = vmatprep.mubr.f32.mxu0 0.0
        %752 = vmatmul.mubr.f32.gmra.mrb[0].mxu0 %v628
        %v753 = vpop.f32.mrb[0].mxu0
        %v754 = vadd.f32 %v607, %v753
        %v755 = vpop.f32.mrb[0].mxu0
        %756 = vmatprep.mubr.f32.mxu0 0.0
        %757 = vmatmul.mubr.f32.gmra.mrb[0].mxu0 %v631
        %v758 = vpop.f32.mrb[0].mxu0
        %v759 = vadd.f32 %v607, %v758
        %v760 = vpop.f32.mrb[0].mxu0
        %761 = vmatprep.mubr.f32.mxu0 0.0
        %762 = vmatmul.mubr.f32.gmra.mrb[0].mxu0 %v634
        %v763 = vpop.f32.mrb[0].mxu0
        %v764 = vadd.f32 %v607, %v763
        %v765 = vpop.f32.mrb[0].mxu0
        %766 = vmatprep.mubr.f32.mxu0 0.0
        %767 = vmatmul.mubr.f32.gmra.mrb[0].mxu0 %v637
        %v768 = vpop.f32.mrb[0].mxu0
        %v769 = vadd.f32 %v607, %v768
        %v770 = vpop.f32.mrb[0].mxu0
        %771 = vmatprep.mubr.f32.mxu0 0.0
        %772 = vmatmul.mubr.f32.gmra.mrb[0].mxu0 %v640
        %v773 = vpop.f32.mrb[0].mxu0
        %v774 = vadd.f32 %v607, %v773
        %v775 = vpop.f32.mrb[0].mxu0
        %776 = vmatprep.mubr.f32.mxu0 0.0
        %777 = vmatmul.mubr.f32.gmra.mrb[0].mxu0 %v643
        %v778 = vpop.f32.mrb[0].mxu0
        %v779 = vadd.f32 %v607, %v778
        %v780 = vpop.f32.mrb[0].mxu0
        %781 = vmatprep.mubr.f32.mxu0 0.0
        %782 = vmatmul.mubr.f32.gmra.mrb[0].mxu0 %v646
        %v783 = vpop.f32.mrb[0].mxu0
        %v784 = vadd.f32 %v607, %v783
        %v785 = vpop.f32.mrb[0].mxu0
        %786 = vmatprep.mubr.f32.mxu0 0.0
        %787 = vmatmul.mubr.f32.gmra.mrb[0].mxu0 %v649
        %v788 = vpop.f32.mrb[0].mxu0
        %v789 = vadd.f32 %v607, %v788
        %v790 = vpop.f32.mrb[0].mxu0
        %791 = vmatprep.mubr.f32.mxu0 0.0
        %792 = vmatmul.mubr.f32.gmra.mrb[0].mxu0 %v652
        %v793 = vpop.f32.mrb[0].mxu0
        %v794 = vadd.f32 %v607, %v793
        %v795 = vpop.f32.mrb[0].mxu0
        %796 = vmatprep.mubr.f32.mxu0 0.0
        %797 = vmatmul.mubr.f32.gmra.mrb[0].mxu0 %v655
        %v798 = vpop.f32.mrb[0].mxu0
        %v799 = vadd.f32 %v607, %v798
        %v800 = vpop.f32.mrb[0].mxu0
        %801 = vdwg.mxu0
        %v802 = vmax.f32 %v724, 0.0
        %v803 = vmax.f32 %v729, 0.0
        %v804 = vmax.f32 %v734, 0.0
        %v805 = vmax.f32 %v739, 0.0
        %v806 = vmax.f32 %v744, 0.0
        %v807 = vmax.f32 %v749, 0.0
        %v808 = vmax.f32 %v754, 0.0
        %v809 = vmax.f32 %v759, 0.0
        %v810 = vmax.f32 %v764, 0.0
        %v811 = vmax.f32 %v769, 0.0
        %v812 = vmax.f32 %v774, 0.0
        %v813 = vmax.f32 %v779, 0.0
        %v814 = vmax.f32 %v784, 0.0
        %v815 = vmax.f32 %v789, 0.0
        %v816 = vmax.f32 %v794, 0.0
        %v817 = vmax.f32 %v799, 0.0
        %v818 = vsel %vm579, %v802, 0.0
        %v819 = vsel %vm579, %v803, 0.0
        %v820 = vsel %vm579, %v804, 0.0
        %v821 = vsel %vm579, %v805, 0.0
        %v822 = vsel %vm579, %v806, 0.0
        %v823 = vsel %vm579, %v807, 0.0
        %v824 = vsel %vm579, %v808, 0.0
        %v825 = vsel %vm579, %v809, 0.0
        %v826 = vsel %vm579, %v810, 0.0
        %v827 = vsel %vm579, %v811, 0.0
        %v828 = vsel %vm579, %v812, 0.0
        %v829 = vsel %vm579, %v813, 0.0
        %v830 = vsel %vm579, %v814, 0.0
        %v831 = vsel %vm579, %v815, 0.0
        %v832 = vsel %vm579, %v816, 0.0
        %v833 = vsel %vm579, %v817, 0.0
        %v834 = vld [vmem:[%s2 + $0x80] sm:$0xff]
        %v835 = vld [vmem:[%s2 + $0x88] sm:$0xff]
        %v836 = vld [vmem:[%s2 + $0x90] sm:$0xff]
        %v837 = vld [vmem:[%s2 + $0x98] sm:$0xff]
        %v838 = vld [vmem:[%s2 + $0xa0] sm:$0xff]
        %v839 = vld [vmem:[%s2 + $0xa8] sm:$0xff]
        %v840 = vld [vmem:[%s2 + $0xb0] sm:$0xff]
        %v841 = vld [vmem:[%s2 + $0xb8] sm:$0xff]
        %v842 = vlaneseq
        %v843 = vshrl.u32 %v842, 7
        %v844 = vsub.s32 0, %v843
        %v845 = vrot.slane %v326, %v844
        %v847 = vsel %vm608, %v818, 0
        %v850 = vsel %vm608, %v819, 0
        %v853 = vsel %vm608, %v820, 0
        %v856 = vsel %vm608, %v821, 0
        %v859 = vsel %vm608, %v822, 0
        %v862 = vsel %vm608, %v823, 0
        %v865 = vsel %vm608, %v824, 0
        %v868 = vsel %vm608, %v825, 0
        %v871 = vsel %vm608, %v826, 0
        %v874 = vsel %vm608, %v827, 0
        %v877 = vsel %vm608, %v828, 0
        %v880 = vsel %vm608, %v829, 0
        %v883 = vsel %vm608, %v830, 0
        %v886 = vsel %vm608, %v831, 0
        %v889 = vsel %vm608, %v832, 0
        %v892 = vsel %vm608, %v833, 0
        %894 = vmatprep.subr.mxu0 0.0
        %895 = vmatpush1.msra.mxu0 %v834
        %896 = vmatprep.subr.mxu0 0.0
        %897 = vmatpush1.msra.mxu0 %v835
        %898 = vmatprep.subr.mxu0 0.0
        %899 = vmatpush1.msra.mxu0 %v836
        %900 = vmatprep.subr.mxu0 0.0
        %901 = vmatpush1.msra.mxu0 %v837
        %902 = vmatprep.subr.mxu0 0.0
        %903 = vmatpush1.msra.mxu0 %v838
        %904 = vmatprep.subr.mxu0 0.0
        %905 = vmatpush1.msra.mxu0 %v839
        %906 = vmatprep.subr.mxu0 0.0
        %907 = vmatpush1.msra.mxu0 %v840
        %908 = vmatprep.subr.mxu0 0.0
        %909 = vmatpush1.msra.mxu0 %v841
        %910 = vmatprep.subr.mxu0 0.0
        %911 = vmatpush1.msra.mxu0 0.0
        %912 = vmatprep.subr.mxu0 0.0
        %913 = vmatpush1.msra.mxu0 0.0
        %914 = vmatprep.subr.mxu0 0.0
        %915 = vmatpush1.msra.mxu0 0.0
        %916 = vmatprep.subr.mxu0 0.0
        %917 = vmatpush1.msra.mxu0 0.0
        %918 = vmatprep.subr.mxu0 0.0
        %919 = vmatpush1.msra.mxu0 0.0
        %920 = vmatprep.subr.mxu0 0.0
        %921 = vmatpush1.msra.mxu0 0.0
        %922 = vmatprep.subr.mxu0 0.0
        %923 = vmatpush1.msra.mxu0 0.0
        %924 = vmatprep.subr.mxu0 0.0
        %925 = vmatpush1.msra.mxu0 0.0
        %926 = vmatprep.subr.mxu0 0.0
        %927 = vmatpush1.msra.mxu0 0.0
        %928 = vmatprep.subr.mxu0 0.0
        %929 = vmatpush1.msra.mxu0 0.0
        %930 = vmatprep.subr.mxu0 0.0
        %931 = vmatpush1.msra.mxu0 0.0
        %932 = vmatprep.subr.mxu0 0.0
        %933 = vmatpush1.msra.mxu0 0.0
        %934 = vmatprep.subr.mxu0 0.0
        %935 = vmatpush1.msra.mxu0 0.0
        %936 = vmatprep.subr.mxu0 0.0
        %937 = vmatpush1.msra.mxu0 0.0
        %938 = vmatprep.subr.mxu0 0.0
        %939 = vmatpush1.msra.mxu0 0.0
        %940 = vmatprep.subr.mxu0 0.0
        %941 = vmatpush1.msra.mxu0 0.0
        %942 = vmatprep.subr.mxu0 0.0
        %943 = vmatpush1.msra.mxu0 0.0
        %944 = vmatprep.subr.mxu0 0.0
        %945 = vmatpush1.msra.mxu0 0.0
        %946 = vmatprep.subr.mxu0 0.0
        %947 = vmatpush1.msra.mxu0 0.0
        %948 = vmatprep.subr.mxu0 0.0
        %949 = vmatpush1.msra.mxu0 0.0
        %950 = vmatprep.subr.mxu0 0.0
        %951 = vmatpush1.msra.mxu0 0.0
        %952 = vmatprep.subr.mxu0 0.0
        %953 = vmatpush1.msra.mxu0 0.0
        %954 = vmatprep.subr.mxu0 0.0
        %955 = vmatpush1.msra.mxu0 0.0
        %956 = vmatprep.subr.mxu0 0.0
        %957 = vmatpush1.msra.mxu0 0.0
        %958 = vmatprep.mubr.f32.mxu0 0.0
        %959 = vmatmul.mubr.f32.gmra.mrb[0].mxu0 %v847
        %v960 = vpop.f32.mrb[0].mxu0
        %v961 = vadd.f32 %v845, %v960
        %v962 = vpop.f32.mrb[0].mxu0
        %963 = vmatprep.mubr.f32.mxu0 0.0
        %964 = vmatmul.mubr.f32.gmra.mrb[0].mxu0 %v850
        %v965 = vpop.f32.mrb[0].mxu0
        %v966 = vadd.f32 %v845, %v965
        %v967 = vpop.f32.mrb[0].mxu0
        %968 = vmatprep.mubr.f32.mxu0 0.0
        %969 = vmatmul.mubr.f32.gmra.mrb[0].mxu0 %v853
        %v970 = vpop.f32.mrb[0].mxu0
        %v971 = vadd.f32 %v845, %v970
        %v972 = vpop.f32.mrb[0].mxu0
        %973 = vmatprep.mubr.f32.mxu0 0.0
        %974 = vmatmul.mubr.f32.gmra.mrb[0].mxu0 %v856
        %v975 = vpop.f32.mrb[0].mxu0
        %v976 = vadd.f32 %v845, %v975
        %v977 = vpop.f32.mrb[0].mxu0
        %978 = vmatprep.mubr.f32.mxu0 0.0
        %979 = vmatmul.mubr.f32.gmra.mrb[0].mxu0 %v859
        %v980 = vpop.f32.mrb[0].mxu0
        %v981 = vadd.f32 %v845, %v980
        %v982 = vpop.f32.mrb[0].mxu0
        %983 = vmatprep.mubr.f32.mxu0 0.0
        %984 = vmatmul.mubr.f32.gmra.mrb[0].mxu0 %v862
        %v985 = vpop.f32.mrb[0].mxu0
        %v986 = vadd.f32 %v845, %v985
        %v987 = vpop.f32.mrb[0].mxu0
        %988 = vmatprep.mubr.f32.mxu0 0.0
        %989 = vmatmul.mubr.f32.gmra.mrb[0].mxu0 %v865
        %v990 = vpop.f32.mrb[0].mxu0
        %v991 = vadd.f32 %v845, %v990
        %v992 = vpop.f32.mrb[0].mxu0
        %993 = vmatprep.mubr.f32.mxu0 0.0
        %994 = vmatmul.mubr.f32.gmra.mrb[0].mxu0 %v868
        %v995 = vpop.f32.mrb[0].mxu0
        %v996 = vadd.f32 %v845, %v995
        %v997 = vpop.f32.mrb[0].mxu0
        %998 = vmatprep.mubr.f32.mxu0 0.0
        %999 = vmatmul.mubr.f32.gmra.mrb[0].mxu0 %v871
        %v1000 = vpop.f32.mrb[0].mxu0
        %v1001 = vadd.f32 %v845, %v1000
        %v1002 = vpop.f32.mrb[0].mxu0
        %1003 = vmatprep.mubr.f32.mxu0 0.0
        %1004 = vmatmul.mubr.f32.gmra.mrb[0].mxu0 %v874
        %v1005 = vpop.f32.mrb[0].mxu0
        %v1006 = vadd.f32 %v845, %v1005
        %v1007 = vpop.f32.mrb[0].mxu0
        %1008 = vmatprep.mubr.f32.mxu0 0.0
        %1009 = vmatmul.mubr.f32.gmra.mrb[0].mxu0 %v877
        %v1010 = vpop.f32.mrb[0].mxu0
        %v1011 = vadd.f32 %v845, %v1010
        %v1012 = vpop.f32.mrb[0].mxu0
        %1013 = vmatprep.mubr.f32.mxu0 0.0
        %1014 = vmatmul.mubr.f32.gmra.mrb[0].mxu0 %v880
        %v1015 = vpop.f32.mrb[0].mxu0
        %v1016 = vadd.f32 %v845, %v1015
        %v1017 = vpop.f32.mrb[0].mxu0
        %1018 = vmatprep.mubr.f32.mxu0 0.0
        %1019 = vmatmul.mubr.f32.gmra.mrb[0].mxu0 %v883
        %v1020 = vpop.f32.mrb[0].mxu0
        %v1021 = vadd.f32 %v845, %v1020
        %v1022 = vpop.f32.mrb[0].mxu0
        %1023 = vmatprep.mubr.f32.mxu0 0.0
        %1024 = vmatmul.mubr.f32.gmra.mrb[0].mxu0 %v886
        %v1025 = vpop.f32.mrb[0].mxu0
        %v1026 = vadd.f32 %v845, %v1025
        %v1027 = vpop.f32.mrb[0].mxu0
        %1028 = vmatprep.mubr.f32.mxu0 0.0
        %1029 = vmatmul.mubr.f32.gmra.mrb[0].mxu0 %v889
        %v1030 = vpop.f32.mrb[0].mxu0
        %v1031 = vadd.f32 %v845, %v1030
        %v1032 = vpop.f32.mrb[0].mxu0
        %1033 = vmatprep.mubr.f32.mxu0 0.0
        %1034 = vmatmul.mubr.f32.gmra.mrb[0].mxu0 %v892
        %v1035 = vpop.f32.mrb[0].mxu0
        %v1036 = vadd.f32 %v845, %v1035
        %v1037 = vpop.f32.mrb[0].mxu0
        %1038 = vdwg.mxu0
        %v1039 = vmax.f32 %v961, 0.0
        %v1040 = vmax.f32 %v966, 0.0
        %v1041 = vmax.f32 %v971, 0.0
        %v1042 = vmax.f32 %v976, 0.0
        %v1043 = vmax.f32 %v981, 0.0
        %v1044 = vmax.f32 %v986, 0.0
        %v1045 = vmax.f32 %v991, 0.0
        %v1046 = vmax.f32 %v996, 0.0
        %v1047 = vmax.f32 %v1001, 0.0
        %v1048 = vmax.f32 %v1006, 0.0
        %v1049 = vmax.f32 %v1011, 0.0
        %v1050 = vmax.f32 %v1016, 0.0
        %v1051 = vmax.f32 %v1021, 0.0
        %v1052 = vmax.f32 %v1026, 0.0
        %v1053 = vmax.f32 %v1031, 0.0
        %v1054 = vmax.f32 %v1036, 0.0
        %1071 = vrot.lane.b32.xlu0 %v961, 96
        %v1072 = vpop.permute.xlu0 %1071
        %1073 = vrot.lane.b32.xlu0 %v966, 96
        %v1074 = vpop.permute.xlu0 %1073
        %1075 = vrot.lane.b32.xlu0 %v971, 96
        %v1076 = vpop.permute.xlu0 %1075
        %1077 = vrot.lane.b32.xlu0 %v976, 96
        %v1078 = vpop.permute.xlu0 %1077
        %1079 = vrot.lane.b32.xlu0 %v981, 96
        %v1080 = vpop.permute.xlu0 %1079
        %1081 = vrot.lane.b32.xlu0 %v986, 96
        %v1082 = vpop.permute.xlu0 %1081
        %1083 = vrot.lane.b32.xlu0 %v991, 96
        %v1084 = vpop.permute.xlu0 %1083
        %1085 = vrot.lane.b32.xlu0 %v996, 96
        %v1086 = vpop.permute.xlu0 %1085
        %1087 = vrot.lane.b32.xlu0 %v1001, 96
        %v1088 = vpop.permute.xlu0 %1087
        %1089 = vrot.lane.b32.xlu0 %v1006, 96
        %v1090 = vpop.permute.xlu0 %1089
        %1091 = vrot.lane.b32.xlu0 %v1011, 96
        %v1092 = vpop.permute.xlu0 %1091
        %1093 = vrot.lane.b32.xlu0 %v1016, 96
        %v1094 = vpop.permute.xlu0 %1093
        %1095 = vrot.lane.b32.xlu0 %v1021, 96
        %v1096 = vpop.permute.xlu0 %1095
        %1097 = vrot.lane.b32.xlu0 %v1026, 96
        %v1098 = vpop.permute.xlu0 %1097
        %1099 = vrot.lane.b32.xlu0 %v1031, 96
        %v1100 = vpop.permute.xlu0 %1099
        %1101 = vrot.lane.b32.xlu0 %v1036, 96
        %v1102 = vpop.permute.xlu0 %1101
        %v1119 = vadd.f32 %v292, %v1072
        %v1120 = vadd.f32 %v293, %v1074
        %v1121 = vadd.f32 %v294, %v1076
        %v1122 = vadd.f32 %v295, %v1078
        %v1123 = vadd.f32 %v296, %v1080
        %v1124 = vadd.f32 %v297, %v1082
        %v1125 = vadd.f32 %v298, %v1084
        %v1126 = vadd.f32 %v299, %v1086
        %v1127 = vadd.f32 %v300, %v1088
        %v1128 = vadd.f32 %v301, %v1090
        %v1129 = vadd.f32 %v302, %v1092
        %v1130 = vadd.f32 %v303, %v1094
        %v1131 = vadd.f32 %v304, %v1096
        %v1132 = vadd.f32 %v305, %v1098
        %v1133 = vadd.f32 %v306, %v1100
        %v1134 = vadd.f32 %v307, %v1102
        %v1135 = vmax.f32 %v1119, 0.0
        %v1136 = vmax.f32 %v1120, 0.0
        %v1137 = vmax.f32 %v1121, 0.0
        %v1138 = vmax.f32 %v1122, 0.0
        %v1139 = vmax.f32 %v1123, 0.0
        %v1140 = vmax.f32 %v1124, 0.0
        %v1141 = vmax.f32 %v1125, 0.0
        %v1142 = vmax.f32 %v1126, 0.0
        %v1143 = vmax.f32 %v1127, 0.0
        %v1144 = vmax.f32 %v1128, 0.0
        %v1145 = vmax.f32 %v1129, 0.0
        %v1146 = vmax.f32 %v1130, 0.0
        %v1147 = vmax.f32 %v1131, 0.0
        %v1148 = vmax.f32 %v1132, 0.0
        %v1149 = vmax.f32 %v1133, 0.0
        %v1150 = vmax.f32 %v1134, 0.0
        %v1151 = vmin.f32 %v1135, 1.0
        %v1152 = vmin.f32 %v1136, 1.0
        %v1153 = vmin.f32 %v1137, 1.0
        %v1154 = vmin.f32 %v1138, 1.0
        %v1155 = vmin.f32 %v1139, 1.0
        %v1156 = vmin.f32 %v1140, 1.0
        %v1157 = vmin.f32 %v1141, 1.0
        %v1158 = vmin.f32 %v1142, 1.0
        %v1159 = vmin.f32 %v1143, 1.0
        %v1160 = vmin.f32 %v1144, 1.0
        %v1161 = vmin.f32 %v1145, 1.0
        %v1162 = vmin.f32 %v1146, 1.0
        %v1163 = vmin.f32 %v1147, 1.0
        %v1164 = vmin.f32 %v1148, 1.0
        %v1165 = vmin.f32 %v1149, 1.0
        %v1166 = vmin.f32 %v1150, 1.0
        %s1167 = scalar_lea.vmem %s258, 128 [#allocation2]
        %1168 = vst.msk [vmem:[%s1167] sm:$0xff] %vm327, %v1151
        %1169 = vst.msk [vmem:[%s1167 + $0x8] sm:$0xff] %vm327, %v1152
        %1170 = vst.msk [vmem:[%s1167 + $0x10] sm:$0xff] %vm327, %v1153
        %1171 = vst.msk [vmem:[%s1167 + $0x18] sm:$0xff] %vm327, %v1154
        %1172 = vst.msk [vmem:[%s1167 + $0x20] sm:$0xff] %vm327, %v1155
        %1173 = vst.msk [vmem:[%s1167 + $0x28] sm:$0xff] %vm327, %v1156
        %1174 = vst.msk [vmem:[%s1167 + $0x30] sm:$0xff] %vm327, %v1157
        %1175 = vst.msk [vmem:[%s1167 + $0x38] sm:$0xff] %vm327, %v1158
        %1176 = vst.msk [vmem:[%s1167 + $0x40] sm:$0xff] %vm327, %v1159
        %1177 = vst.msk [vmem:[%s1167 + $0x48] sm:$0xff] %vm327, %v1160
        %1178 = vst.msk [vmem:[%s1167 + $0x50] sm:$0xff] %vm327, %v1161
        %1179 = vst.msk [vmem:[%s1167 + $0x58] sm:$0xff] %vm327, %v1162
        %1180 = vst.msk [vmem:[%s1167 + $0x60] sm:$0xff] %vm327, %v1163
        %1181 = vst.msk [vmem:[%s1167 + $0x68] sm:$0xff] %vm327, %v1164
        %1182 = vst.msk [vmem:[%s1167 + $0x70] sm:$0xff] %vm327, %v1165
        %1183 = vst.msk [vmem:[%s1167 + $0x78] sm:$0xff] %vm327, %v1166
        %v1184 = vsub.f32 %v1151, %v308
        %v1185 = vsub.f32 %v1152, %v309
        %v1186 = vsub.f32 %v1153, %v310
        %v1187 = vsub.f32 %v1154, %v311
        %v1188 = vsub.f32 %v1155, %v312
        %v1189 = vsub.f32 %v1156, %v313
        %v1190 = vsub.f32 %v1157, %v314
        %v1191 = vsub.f32 %v1158, %v315
        %v1192 = vsub.f32 %v1159, %v316
        %v1193 = vsub.f32 %v1160, %v317
        %v1194 = vsub.f32 %v1161, %v318
        %v1195 = vsub.f32 %v1162, %v319
        %v1196 = vsub.f32 %v1163, %v320
        %v1197 = vsub.f32 %v1164, %v321
        %v1198 = vsub.f32 %v1165, %v322
        %v1199 = vsub.f32 %v1166, %v323
        %v1200 = vmul.f32 %v1184, %v1184
        %v1201 = vmul.f32 %v1185, %v1185
        %v1202 = vmul.f32 %v1186, %v1186
        %v1203 = vmul.f32 %v1187, %v1187
        %v1204 = vmul.f32 %v1188, %v1188
        %v1205 = vmul.f32 %v1189, %v1189
        %v1206 = vmul.f32 %v1190, %v1190
        %v1207 = vmul.f32 %v1191, %v1191
        %v1208 = vmul.f32 %v1192, %v1192
        %v1209 = vmul.f32 %v1193, %v1193
        %v1210 = vmul.f32 %v1194, %v1194
        %v1211 = vmul.f32 %v1195, %v1195
        %v1212 = vmul.f32 %v1196, %v1196
        %v1213 = vmul.f32 %v1197, %v1197
        %v1214 = vmul.f32 %v1198, %v1198
        %v1215 = vmul.f32 %v1199, %v1199
        %v1216 = vadd.f32 %v1200, 0.0
        %v1217 = vadd.f32 %v1201, 0.0
        %v1218 = vadd.f32 %v1202, 0.0
        %v1219 = vadd.f32 %v1203, 0.0
        %v1220 = vadd.f32 %v1204, 0.0
        %v1221 = vadd.f32 %v1205, 0.0
        %v1222 = vadd.f32 %v1206, 0.0
        %v1223 = vadd.f32 %v1207, 0.0
        %v1224 = vadd.f32 %v1208, 0.0
        %v1225 = vadd.f32 %v1209, 0.0
        %v1226 = vadd.f32 %v1210, 0.0
        %v1227 = vadd.f32 %v1211, 0.0
        %v1228 = vadd.f32 %v1212, 0.0
        %v1229 = vadd.f32 %v1213, 0.0
        %v1230 = vadd.f32 %v1214, 0.0
        %v1231 = vadd.f32 %v1215, 0.0
        %1248 = vrot.lane.b32.xlu0 %v563, 8
        %v1249 = vpop.permute.xlu0 %1248
        %1250 = vrot.lane.b32.xlu0 %v564, 8
        %v1251 = vpop.permute.xlu0 %1250
        %1252 = vrot.lane.b32.xlu0 %v565, 8
        %v1253 = vpop.permute.xlu0 %1252
        %1254 = vrot.lane.b32.xlu0 %v566, 8
        %v1255 = vpop.permute.xlu0 %1254
        %1256 = vrot.lane.b32.xlu0 %v567, 8
        %v1257 = vpop.permute.xlu0 %1256
        %1258 = vrot.lane.b32.xlu0 %v568, 8
        %v1259 = vpop.permute.xlu0 %1258
        %1260 = vrot.lane.b32.xlu0 %v569, 8
        %v1261 = vpop.permute.xlu0 %1260
        %1262 = vrot.lane.b32.xlu0 %v570, 8
        %v1263 = vpop.permute.xlu0 %1262
        %1264 = vrot.lane.b32.xlu0 %v571, 8
        %v1265 = vpop.permute.xlu0 %1264
        %1266 = vrot.lane.b32.xlu0 %v572, 8
        %v1267 = vpop.permute.xlu0 %1266
        %1268 = vrot.lane.b32.xlu0 %v573, 8
        %v1269 = vpop.permute.xlu0 %1268
        %1270 = vrot.lane.b32.xlu0 %v574, 8
        %v1271 = vpop.permute.xlu0 %1270
        %1272 = vrot.lane.b32.xlu0 %v575, 8
        %v1273 = vpop.permute.xlu0 %1272
        %1274 = vrot.lane.b32.xlu0 %v576, 8
        %v1275 = vpop.permute.xlu0 %1274
        %1276 = vrot.lane.b32.xlu0 %v577, 8
        %v1277 = vpop.permute.xlu0 %1276
        %1278 = vrot.lane.b32.xlu0 %v578, 8
        %v1279 = vpop.permute.xlu0 %1278
        %v1296 = vsel %vm327, %v1119, %v1249
        %v1297 = vsel %vm327, %v1120, %v1251
        %v1298 = vsel %vm327, %v1121, %v1253
        %v1299 = vsel %vm327, %v1122, %v1255
        %v1300 = vsel %vm327, %v1123, %v1257
        %v1301 = vsel %vm327, %v1124, %v1259
        %v1302 = vsel %vm327, %v1125, %v1261
        %v1303 = vsel %vm327, %v1126, %v1263
        %v1304 = vsel %vm327, %v1127, %v1265
        %v1305 = vsel %vm327, %v1128, %v1267
        %v1306 = vsel %vm327, %v1129, %v1269
        %v1307 = vsel %vm327, %v1130, %v1271
        %v1308 = vsel %vm327, %v1131, %v1273
        %v1309 = vsel %vm327, %v1132, %v1275
        %v1310 = vsel %vm327, %v1133, %v1277
        %v1311 = vsel %vm327, %v1134, %v1279
        %v1312 = vld [vmem:[%s2] sm:$0xff]
        %v1313 = vld [vmem:[%s2 + $0x8] sm:$0xff]
        %v1314 = vld [vmem:[%s2 + $0x10] sm:$0xff]
        %v1315 = vld [vmem:[%s2 + $0x18] sm:$0xff]
        %v1316 = vld [vmem:[%s2 + $0x20] sm:$0xff]
        %v1318 = vsel %vm369, %v1296, 0
        %v1321 = vsel %vm369, %v1297, 0
        %v1324 = vsel %vm369, %v1298, 0
        %v1327 = vsel %vm369, %v1299, 0
        %v1330 = vsel %vm369, %v1300, 0
        %v1333 = vsel %vm369, %v1301, 0
        %v1336 = vsel %vm369, %v1302, 0
        %v1339 = vsel %vm369, %v1303, 0
        %v1342 = vsel %vm369, %v1304, 0
        %v1345 = vsel %vm369, %v1305, 0
        %v1348 = vsel %vm369, %v1306, 0
        %v1351 = vsel %vm369, %v1307, 0
        %v1354 = vsel %vm369, %v1308, 0
        %v1357 = vsel %vm369, %v1309, 0
        %v1360 = vsel %vm369, %v1310, 0
        %v1363 = vsel %vm369, %v1311, 0
        %1365 = vmatprep.subr.mxu0 0.0
        %1366 = vmatpush1.msra.mxu0 %v1312
        %1367 = vmatprep.subr.mxu0 0.0
        %1368 = vmatpush1.msra.mxu0 %v1313
        %1369 = vmatprep.subr.mxu0 0.0
        %1370 = vmatpush1.msra.mxu0 %v1314
        %1371 = vmatprep.subr.mxu0 0.0
        %1372 = vmatpush1.msra.mxu0 %v1315
        %1373 = vmatprep.subr.mxu0 0.0
        %1374 = vmatpush1.msra.mxu0 %v1316
        %1375 = vmatprep.subr.mxu0 0.0
        %1376 = vmatpush1.msra.mxu0 0.0
        %1377 = vmatprep.subr.mxu0 0.0
        %1378 = vmatpush1.msra.mxu0 0.0
        %1379 = vmatprep.subr.mxu0 0.0
        %1380 = vmatpush1.msra.mxu0 0.0
        %1381 = vmatprep.subr.mxu0 0.0
        %1382 = vmatpush1.msra.mxu0 0.0
        %1383 = vmatprep.subr.mxu0 0.0
        %1384 = vmatpush1.msra.mxu0 0.0
        %1385 = vmatprep.subr.mxu0 0.0
        %1386 = vmatpush1.msra.mxu0 0.0
        %1387 = vmatprep.subr.mxu0 0.0
        %1388 = vmatpush1.msra.mxu0 0.0
        %1389 = vmatprep.subr.mxu0 0.0
        %1390 = vmatpush1.msra.mxu0 0.0
        %1391 = vmatprep.subr.mxu0 0.0
        %1392 = vmatpush1.msra.mxu0 0.0
        %1393 = vmatprep.subr.mxu0 0.0
        %1394 = vmatpush1.msra.mxu0 0.0
        %1395 = vmatprep.subr.mxu0 0.0
        %1396 = vmatpush1.msra.mxu0 0.0
        %1397 = vmatprep.subr.mxu0 0.0
        %1398 = vmatpush1.msra.mxu0 0.0
        %1399 = vmatprep.subr.mxu0 0.0
        %1400 = vmatpush1.msra.mxu0 0.0
        %1401 = vmatprep.subr.mxu0 0.0
        %1402 = vmatpush1.msra.mxu0 0.0
        %1403 = vmatprep.subr.mxu0 0.0
        %1404 = vmatpush1.msra.mxu0 0.0
        %1405 = vmatprep.subr.mxu0 0.0
        %1406 = vmatpush1.msra.mxu0 0.0
        %1407 = vmatprep.subr.mxu0 0.0
        %1408 = vmatpush1.msra.mxu0 0.0
        %1409 = vmatprep.subr.mxu0 0.0
        %1410 = vmatpush1.msra.mxu0 0.0
        %1411 = vmatprep.subr.mxu0 0.0
        %1412 = vmatpush1.msra.mxu0 0.0
        %1413 = vmatprep.subr.mxu0 0.0
        %1414 = vmatpush1.msra.mxu0 0.0
        %1415 = vmatprep.subr.mxu0 0.0
        %1416 = vmatpush1.msra.mxu0 0.0
        %1417 = vmatprep.subr.mxu0 0.0
        %1418 = vmatpush1.msra.mxu0 0.0
        %1419 = vmatprep.subr.mxu0 0.0
        %1420 = vmatpush1.msra.mxu0 0.0
        %1421 = vmatprep.subr.mxu0 0.0
        %1422 = vmatpush1.msra.mxu0 0.0
        %1423 = vmatprep.subr.mxu0 0.0
        %1424 = vmatpush1.msra.mxu0 0.0
        %1425 = vmatprep.subr.mxu0 0.0
        %1426 = vmatpush1.msra.mxu0 0.0
        %1427 = vmatprep.subr.mxu0 0.0
        %1428 = vmatpush1.msra.mxu0 0.0
        %1429 = vmatprep.mubr.f32.mxu0 0.0
        %1430 = vmatmul.mubr.f32.gmra.mrb[0].mxu0 %v1318
        %v1431 = vpop.f32.mrb[0].mxu0
        %v1432 = vadd.f32 %v368, %v1431
        %v1433 = vpop.f32.mrb[0].mxu0
        %1434 = vmatprep.mubr.f32.mxu0 0.0
        %1435 = vmatmul.mubr.f32.gmra.mrb[0].mxu0 %v1321
        %v1436 = vpop.f32.mrb[0].mxu0
        %v1437 = vadd.f32 %v368, %v1436
        %v1438 = vpop.f32.mrb[0].mxu0
        %1439 = vmatprep.mubr.f32.mxu0 0.0
        %1440 = vmatmul.mubr.f32.gmra.mrb[0].mxu0 %v1324
        %v1441 = vpop.f32.mrb[0].mxu0
        %v1442 = vadd.f32 %v368, %v1441
        %v1443 = vpop.f32.mrb[0].mxu0
        %1444 = vmatprep.mubr.f32.mxu0 0.0
        %1445 = vmatmul.mubr.f32.gmra.mrb[0].mxu0 %v1327
        %v1446 = vpop.f32.mrb[0].mxu0
        %v1447 = vadd.f32 %v368, %v1446
        %v1448 = vpop.f32.mrb[0].mxu0
        %1449 = vmatprep.mubr.f32.mxu0 0.0
        %1450 = vmatmul.mubr.f32.gmra.mrb[0].mxu0 %v1330
        %v1451 = vpop.f32.mrb[0].mxu0
        %v1452 = vadd.f32 %v368, %v1451
        %v1453 = vpop.f32.mrb[0].mxu0
        %1454 = vmatprep.mubr.f32.mxu0 0.0
        %1455 = vmatmul.mubr.f32.gmra.mrb[0].mxu0 %v1333
        %v1456 = vpop.f32.mrb[0].mxu0
        %v1457 = vadd.f32 %v368, %v1456
        %v1458 = vpop.f32.mrb[0].mxu0
        %1459 = vmatprep.mubr.f32.mxu0 0.0
        %1460 = vmatmul.mubr.f32.gmra.mrb[0].mxu0 %v1336
        %v1461 = vpop.f32.mrb[0].mxu0
        %v1462 = vadd.f32 %v368, %v1461
        %v1463 = vpop.f32.mrb[0].mxu0
        %1464 = vmatprep.mubr.f32.mxu0 0.0
        %1465 = vmatmul.mubr.f32.gmra.mrb[0].mxu0 %v1339
        %v1466 = vpop.f32.mrb[0].mxu0
        %v1467 = vadd.f32 %v368, %v1466
        %v1468 = vpop.f32.mrb[0].mxu0
        %1469 = vmatprep.mubr.f32.mxu0 0.0
        %1470 = vmatmul.mubr.f32.gmra.mrb[0].mxu0 %v1342
        %v1471 = vpop.f32.mrb[0].mxu0
        %v1472 = vadd.f32 %v368, %v1471
        %v1473 = vpop.f32.mrb[0].mxu0
        %1474 = vmatprep.mubr.f32.mxu0 0.0
        %1475 = vmatmul.mubr.f32.gmra.mrb[0].mxu0 %v1345
        %v1476 = vpop.f32.mrb[0].mxu0
        %v1477 = vadd.f32 %v368, %v1476
        %v1478 = vpop.f32.mrb[0].mxu0
        %1479 = vmatprep.mubr.f32.mxu0 0.0
        %1480 = vmatmul.mubr.f32.gmra.mrb[0].mxu0 %v1348
        %v1481 = vpop.f32.mrb[0].mxu0
        %v1482 = vadd.f32 %v368, %v1481
        %v1483 = vpop.f32.mrb[0].mxu0
        %1484 = vmatprep.mubr.f32.mxu0 0.0
        %1485 = vmatmul.mubr.f32.gmra.mrb[0].mxu0 %v1351
        %v1486 = vpop.f32.mrb[0].mxu0
        %v1487 = vadd.f32 %v368, %v1486
        %v1488 = vpop.f32.mrb[0].mxu0
        %1489 = vmatprep.mubr.f32.mxu0 0.0
        %1490 = vmatmul.mubr.f32.gmra.mrb[0].mxu0 %v1354
        %v1491 = vpop.f32.mrb[0].mxu0
        %v1492 = vadd.f32 %v368, %v1491
        %v1493 = vpop.f32.mrb[0].mxu0
        %1494 = vmatprep.mubr.f32.mxu0 0.0
        %1495 = vmatmul.mubr.f32.gmra.mrb[0].mxu0 %v1357
        %v1496 = vpop.f32.mrb[0].mxu0
        %v1497 = vadd.f32 %v368, %v1496
        %v1498 = vpop.f32.mrb[0].mxu0
        %1499 = vmatprep.mubr.f32.mxu0 0.0
        %1500 = vmatmul.mubr.f32.gmra.mrb[0].mxu0 %v1360
        %v1501 = vpop.f32.mrb[0].mxu0
        %v1502 = vadd.f32 %v368, %v1501
        %v1503 = vpop.f32.mrb[0].mxu0
        %1504 = vmatprep.mubr.f32.mxu0 0.0
        %1505 = vmatmul.mubr.f32.gmra.mrb[0].mxu0 %v1363
        %v1506 = vpop.f32.mrb[0].mxu0
        %v1507 = vadd.f32 %v368, %v1506
        %v1508 = vpop.f32.mrb[0].mxu0
        %1509 = vdwg.mxu0
        %v1510 = vmax.f32 %v1432, 0.0
        %v1511 = vmax.f32 %v1437, 0.0
        %v1512 = vmax.f32 %v1442, 0.0
        %v1513 = vmax.f32 %v1447, 0.0
        %v1514 = vmax.f32 %v1452, 0.0
        %v1515 = vmax.f32 %v1457, 0.0
        %v1516 = vmax.f32 %v1462, 0.0
        %v1517 = vmax.f32 %v1467, 0.0
        %v1518 = vmax.f32 %v1472, 0.0
        %v1519 = vmax.f32 %v1477, 0.0
        %v1520 = vmax.f32 %v1482, 0.0
        %v1521 = vmax.f32 %v1487, 0.0
        %v1522 = vmax.f32 %v1492, 0.0
        %v1523 = vmax.f32 %v1497, 0.0
        %v1524 = vmax.f32 %v1502, 0.0
        %v1525 = vmax.f32 %v1507, 0.0
        %1542 = vrot.lane.b32.xlu0 %v802, 32
        %v1543 = vpop.permute.xlu0 %1542
        %1544 = vrot.lane.b32.xlu0 %v803, 32
        %v1545 = vpop.permute.xlu0 %1544
        %1546 = vrot.lane.b32.xlu0 %v804, 32
        %v1547 = vpop.permute.xlu0 %1546
        %1548 = vrot.lane.b32.xlu0 %v805, 32
        %v1549 = vpop.permute.xlu0 %1548
        %1550 = vrot.lane.b32.xlu0 %v806, 32
        %v1551 = vpop.permute.xlu0 %1550
        %1552 = vrot.lane.b32.xlu0 %v807, 32
        %v1553 = vpop.permute.xlu0 %1552
        %1554 = vrot.lane.b32.xlu0 %v808, 32
        %v1555 = vpop.permute.xlu0 %1554
        %1556 = vrot.lane.b32.xlu0 %v809, 32
        %v1557 = vpop.permute.xlu0 %1556
        %1558 = vrot.lane.b32.xlu0 %v810, 32
        %v1559 = vpop.permute.xlu0 %1558
        %1560 = vrot.lane.b32.xlu0 %v811, 32
        %v1561 = vpop.permute.xlu0 %1560
        %1562 = vrot.lane.b32.xlu0 %v812, 32
        %v1563 = vpop.permute.xlu0 %1562
        %1564 = vrot.lane.b32.xlu0 %v813, 32
        %v1565 = vpop.permute.xlu0 %1564
        %1566 = vrot.lane.b32.xlu0 %v814, 32
        %v1567 = vpop.permute.xlu0 %1566
        %1568 = vrot.lane.b32.xlu0 %v815, 32
        %v1569 = vpop.permute.xlu0 %1568
        %1570 = vrot.lane.b32.xlu0 %v816, 32
        %v1571 = vpop.permute.xlu0 %1570
        %1572 = vrot.lane.b32.xlu0 %v817, 32
        %v1573 = vpop.permute.xlu0 %1572
        %v1590 = vsel %vm579, %v1510, %v1543
        %v1591 = vsel %vm579, %v1511, %v1545
        %v1592 = vsel %vm579, %v1512, %v1547
        %v1593 = vsel %vm579, %v1513, %v1549
        %v1594 = vsel %vm579, %v1514, %v1551
        %v1595 = vsel %vm579, %v1515, %v1553
        %v1596 = vsel %vm579, %v1516, %v1555
        %v1597 = vsel %vm579, %v1517, %v1557
        %v1598 = vsel %vm579, %v1518, %v1559
        %v1599 = vsel %vm579, %v1519, %v1561
        %v1600 = vsel %vm579, %v1520, %v1563
        %v1601 = vsel %vm579, %v1521, %v1565
        %v1602 = vsel %vm579, %v1522, %v1567
        %v1603 = vsel %vm579, %v1523, %v1569
        %v1604 = vsel %vm579, %v1524, %v1571
        %v1605 = vsel %vm579, %v1525, %v1573
        %v1606 = vld [vmem:[%s2 + $0x40] sm:$0xff]
        %v1607 = vld [vmem:[%s2 + $0x48] sm:$0xff]
        %v1608 = vld [vmem:[%s2 + $0x50] sm:$0xff]
        %v1609 = vld [vmem:[%s2 + $0x58] sm:$0xff]
        %v1610 = vld [vmem:[%s2 + $0x60] sm:$0xff]
        %v1611 = vld [vmem:[%s2 + $0x68] sm:$0xff]
        %v1612 = vld [vmem:[%s2 + $0x70] sm:$0xff]
        %v1613 = vld [vmem:[%s2 + $0x78] sm:$0xff]
        %v1615 = vsel %vm608, %v1590, 0
        %v1618 = vsel %vm608, %v1591, 0
        %v1621 = vsel %vm608, %v1592, 0
        %v1624 = vsel %vm608, %v1593, 0
        %v1627 = vsel %vm608, %v1594, 0
        %v1630 = vsel %vm608, %v1595, 0
        %v1633 = vsel %vm608, %v1596, 0
        %v1636 = vsel %vm608, %v1597, 0
        %v1639 = vsel %vm608, %v1598, 0
        %v1642 = vsel %vm608, %v1599, 0
        %v1645 = vsel %vm608, %v1600, 0
        %v1648 = vsel %vm608, %v1601, 0
        %v1651 = vsel %vm608, %v1602, 0
        %v1654 = vsel %vm608, %v1603, 0
        %v1657 = vsel %vm608, %v1604, 0
        %v1660 = vsel %vm608, %v1605, 0
        %1662 = vmatprep.subr.mxu0 0.0
        %1663 = vmatpush1.msra.mxu0 %v1606
        %1664 = vmatprep.subr.mxu0 0.0
        %1665 = vmatpush1.msra.mxu0 %v1607
        %1666 = vmatprep.subr.mxu0 0.0
        %1667 = vmatpush1.msra.mxu0 %v1608
        %1668 = vmatprep.subr.mxu0 0.0
        %1669 = vmatpush1.msra.mxu0 %v1609
        %1670 = vmatprep.subr.mxu0 0.0
        %1671 = vmatpush1.msra.mxu0 %v1610
        %1672 = vmatprep.subr.mxu0 0.0
        %1673 = vmatpush1.msra.mxu0 %v1611
        %1674 = vmatprep.subr.mxu0 0.0
        %1675 = vmatpush1.msra.mxu0 %v1612
        %1676 = vmatprep.subr.mxu0 0.0
        %1677 = vmatpush1.msra.mxu0 %v1613
        %1678 = vmatprep.subr.mxu0 0.0
        %1679 = vmatpush1.msra.mxu0 0.0
        %1680 = vmatprep.subr.mxu0 0.0
        %1681 = vmatpush1.msra.mxu0 0.0
        %1682 = vmatprep.subr.mxu0 0.0
        %1683 = vmatpush1.msra.mxu0 0.0
        %1684 = vmatprep.subr.mxu0 0.0
        %1685 = vmatpush1.msra.mxu0 0.0
        %1686 = vmatprep.subr.mxu0 0.0
        %1687 = vmatpush1.msra.mxu0 0.0
        %1688 = vmatprep.subr.mxu0 0.0
        %1689 = vmatpush1.msra.mxu0 0.0
        %1690 = vmatprep.subr.mxu0 0.0
        %1691 = vmatpush1.msra.mxu0 0.0
        %1692 = vmatprep.subr.mxu0 0.0
        %1693 = vmatpush1.msra.mxu0 0.0
        %1694 = vmatprep.subr.mxu0 0.0
        %1695 = vmatpush1.msra.mxu0 0.0
        %1696 = vmatprep.subr.mxu0 0.0
        %1697 = vmatpush1.msra.mxu0 0.0
        %1698 = vmatprep.subr.mxu0 0.0
        %1699 = vmatpush1.msra.mxu0 0.0
        %1700 = vmatprep.subr.mxu0 0.0
        %1701 = vmatpush1.msra.mxu0 0.0
        %1702 = vmatprep.subr.mxu0 0.0
        %1703 = vmatpush1.msra.mxu0 0.0
        %1704 = vmatprep.subr.mxu0 0.0
        %1705 = vmatpush1.msra.mxu0 0.0
        %1706 = vmatprep.subr.mxu0 0.0
        %1707 = vmatpush1.msra.mxu0 0.0
        %1708 = vmatprep.subr.mxu0 0.0
        %1709 = vmatpush1.msra.mxu0 0.0
        %1710 = vmatprep.subr.mxu0 0.0
        %1711 = vmatpush1.msra.mxu0 0.0
        %1712 = vmatprep.subr.mxu0 0.0
        %1713 = vmatpush1.msra.mxu0 0.0
        %1714 = vmatprep.subr.mxu0 0.0
        %1715 = vmatpush1.msra.mxu0 0.0
        %1716 = vmatprep.subr.mxu0 0.0
        %1717 = vmatpush1.msra.mxu0 0.0
        %1718 = vmatprep.subr.mxu0 0.0
        %1719 = vmatpush1.msra.mxu0 0.0
        %1720 = vmatprep.subr.mxu0 0.0
        %1721 = vmatpush1.msra.mxu0 0.0
        %1722 = vmatprep.subr.mxu0 0.0
        %1723 = vmatpush1.msra.mxu0 0.0
        %1724 = vmatprep.subr.mxu0 0.0
        %1725 = vmatpush1.msra.mxu0 0.0
        %1726 = vmatprep.mubr.f32.mxu0 0.0
        %1727 = vmatmul.mubr.f32.gmra.mrb[0].mxu0 %v1615
        %v1728 = vpop.f32.mrb[0].mxu0
        %v1729 = vadd.f32 %v607, %v1728
        %v1730 = vpop.f32.mrb[0].mxu0
        %1731 = vmatprep.mubr.f32.mxu0 0.0
        %1732 = vmatmul.mubr.f32.gmra.mrb[0].mxu0 %v1618
        %v1733 = vpop.f32.mrb[0].mxu0
        %v1734 = vadd.f32 %v607, %v1733
        %v1735 = vpop.f32.mrb[0].mxu0
        %1736 = vmatprep.mubr.f32.mxu0 0.0
        %1737 = vmatmul.mubr.f32.gmra.mrb[0].mxu0 %v1621
        %v1738 = vpop.f32.mrb[0].mxu0
        %v1739 = vadd.f32 %v607, %v1738
        %v1740 = vpop.f32.mrb[0].mxu0
        %1741 = vmatprep.mubr.f32.mxu0 0.0
        %1742 = vmatmul.mubr.f32.gmra.mrb[0].mxu0 %v1624
        %v1743 = vpop.f32.mrb[0].mxu0
        %v1744 = vadd.f32 %v607, %v1743
        %v1745 = vpop.f32.mrb[0].mxu0
        %1746 = vmatprep.mubr.f32.mxu0 0.0
        %1747 = vmatmul.mubr.f32.gmra.mrb[0].mxu0 %v1627
        %v1748 = vpop.f32.mrb[0].mxu0
        %v1749 = vadd.f32 %v607, %v1748
        %v1750 = vpop.f32.mrb[0].mxu0
        %1751 = vmatprep.mubr.f32.mxu0 0.0
        %1752 = vmatmul.mubr.f32.gmra.mrb[0].mxu0 %v1630
        %v1753 = vpop.f32.mrb[0].mxu0
        %v1754 = vadd.f32 %v607, %v1753
        %v1755 = vpop.f32.mrb[0].mxu0
        %1756 = vmatprep.mubr.f32.mxu0 0.0
        %1757 = vmatmul.mubr.f32.gmra.mrb[0].mxu0 %v1633
        %v1758 = vpop.f32.mrb[0].mxu0
        %v1759 = vadd.f32 %v607, %v1758
        %v1760 = vpop.f32.mrb[0].mxu0
        %1761 = vmatprep.mubr.f32.mxu0 0.0
        %1762 = vmatmul.mubr.f32.gmra.mrb[0].mxu0 %v1636
        %v1763 = vpop.f32.mrb[0].mxu0
        %v1764 = vadd.f32 %v607, %v1763
        %v1765 = vpop.f32.mrb[0].mxu0
        %1766 = vmatprep.mubr.f32.mxu0 0.0
        %1767 = vmatmul.mubr.f32.gmra.mrb[0].mxu0 %v1639
        %v1768 = vpop.f32.mrb[0].mxu0
        %v1769 = vadd.f32 %v607, %v1768
        %v1770 = vpop.f32.mrb[0].mxu0
        %1771 = vmatprep.mubr.f32.mxu0 0.0
        %1772 = vmatmul.mubr.f32.gmra.mrb[0].mxu0 %v1642
        %v1773 = vpop.f32.mrb[0].mxu0
        %v1774 = vadd.f32 %v607, %v1773
        %v1775 = vpop.f32.mrb[0].mxu0
        %1776 = vmatprep.mubr.f32.mxu0 0.0
        %1777 = vmatmul.mubr.f32.gmra.mrb[0].mxu0 %v1645
        %v1778 = vpop.f32.mrb[0].mxu0
        %v1779 = vadd.f32 %v607, %v1778
        %v1780 = vpop.f32.mrb[0].mxu0
        %1781 = vmatprep.mubr.f32.mxu0 0.0
        %1782 = vmatmul.mubr.f32.gmra.mrb[0].mxu0 %v1648
        %v1783 = vpop.f32.mrb[0].mxu0
        %v1784 = vadd.f32 %v607, %v1783
        %v1785 = vpop.f32.mrb[0].mxu0
        %1786 = vmatprep.mubr.f32.mxu0 0.0
        %1787 = vmatmul.mubr.f32.gmra.mrb[0].mxu0 %v1651
        %v1788 = vpop.f32.mrb[0].mxu0
        %v1789 = vadd.f32 %v607, %v1788
        %v1790 = vpop.f32.mrb[0].mxu0
        %1791 = vmatprep.mubr.f32.mxu0 0.0
        %1792 = vmatmul.mubr.f32.gmra.mrb[0].mxu0 %v1654
        %v1793 = vpop.f32.mrb[0].mxu0
        %v1794 = vadd.f32 %v607, %v1793
        %v1795 = vpop.f32.mrb[0].mxu0
        %1796 = vmatprep.mubr.f32.mxu0 0.0
        %1797 = vmatmul.mubr.f32.gmra.mrb[0].mxu0 %v1657
        %v1798 = vpop.f32.mrb[0].mxu0
        %v1799 = vadd.f32 %v607, %v1798
        %v1800 = vpop.f32.mrb[0].mxu0
        %1801 = vmatprep.mubr.f32.mxu0 0.0
        %1802 = vmatmul.mubr.f32.gmra.mrb[0].mxu0 %v1660
        %v1803 = vpop.f32.mrb[0].mxu0
        %v1804 = vadd.f32 %v607, %v1803
        %v1805 = vpop.f32.mrb[0].mxu0
        %1806 = vdwg.mxu0
        %v1807 = vmax.f32 %v1729, 0.0
        %v1808 = vmax.f32 %v1734, 0.0
        %v1809 = vmax.f32 %v1739, 0.0
        %v1810 = vmax.f32 %v1744, 0.0
        %v1811 = vmax.f32 %v1749, 0.0
        %v1812 = vmax.f32 %v1754, 0.0
        %v1813 = vmax.f32 %v1759, 0.0
        %v1814 = vmax.f32 %v1764, 0.0
        %v1815 = vmax.f32 %v1769, 0.0
        %v1816 = vmax.f32 %v1774, 0.0
        %v1817 = vmax.f32 %v1779, 0.0
        %v1818 = vmax.f32 %v1784, 0.0
        %v1819 = vmax.f32 %v1789, 0.0
        %v1820 = vmax.f32 %v1794, 0.0
        %v1821 = vmax.f32 %v1799, 0.0
        %v1822 = vmax.f32 %v1804, 0.0
        %1839 = vrot.lane.b32.xlu0 %v1039, 32
        %v1840 = vpop.permute.xlu0 %1839
        %1841 = vrot.lane.b32.xlu0 %v1040, 32
        %v1842 = vpop.permute.xlu0 %1841
        %1843 = vrot.lane.b32.xlu0 %v1041, 32
        %v1844 = vpop.permute.xlu0 %1843
        %1845 = vrot.lane.b32.xlu0 %v1042, 32
        %v1846 = vpop.permute.xlu0 %1845
        %1847 = vrot.lane.b32.xlu0 %v1043, 32
        %v1848 = vpop.permute.xlu0 %1847
        %1849 = vrot.lane.b32.xlu0 %v1044, 32
        %v1850 = vpop.permute.xlu0 %1849
        %1851 = vrot.lane.b32.xlu0 %v1045, 32
        %v1852 = vpop.permute.xlu0 %1851
        %1853 = vrot.lane.b32.xlu0 %v1046, 32
        %v1854 = vpop.permute.xlu0 %1853
        %1855 = vrot.lane.b32.xlu0 %v1047, 32
        %v1856 = vpop.permute.xlu0 %1855
        %1857 = vrot.lane.b32.xlu0 %v1048, 32
        %v1858 = vpop.permute.xlu0 %1857
        %1859 = vrot.lane.b32.xlu0 %v1049, 32
        %v1860 = vpop.permute.xlu0 %1859
        %1861 = vrot.lane.b32.xlu0 %v1050, 32
        %v1862 = vpop.permute.xlu0 %1861
        %1863 = vrot.lane.b32.xlu0 %v1051, 32
        %v1864 = vpop.permute.xlu0 %1863
        %1865 = vrot.lane.b32.xlu0 %v1052, 32
        %v1866 = vpop.permute.xlu0 %1865
        %1867 = vrot.lane.b32.xlu0 %v1053, 32
        %v1868 = vpop.permute.xlu0 %1867
        %1869 = vrot.lane.b32.xlu0 %v1054, 32
        %v1870 = vpop.permute.xlu0 %1869
        %v1887 = vsel %vm579, %v1807, %v1840
        %v1888 = vsel %vm579, %v1808, %v1842
        %v1889 = vsel %vm579, %v1809, %v1844
        %v1890 = vsel %vm579, %v1810, %v1846
        %v1891 = vsel %vm579, %v1811, %v1848
        %v1892 = vsel %vm579, %v1812, %v1850
        %v1893 = vsel %vm579, %v1813, %v1852
        %v1894 = vsel %vm579, %v1814, %v1854
        %v1895 = vsel %vm579, %v1815, %v1856
        %v1896 = vsel %vm579, %v1816, %v1858
        %v1897 = vsel %vm579, %v1817, %v1860
        %v1898 = vsel %vm579, %v1818, %v1862
        %v1899 = vsel %vm579, %v1819, %v1864
        %v1900 = vsel %vm579, %v1820, %v1866
        %v1901 = vsel %vm579, %v1821, %v1868
        %v1902 = vsel %vm579, %v1822, %v1870
        %v1903 = vld [vmem:[%s2 + $0x80] sm:$0xff]
        %v1904 = vld [vmem:[%s2 + $0x88] sm:$0xff]
        %v1905 = vld [vmem:[%s2 + $0x90] sm:$0xff]
        %v1906 = vld [vmem:[%s2 + $0x98] sm:$0xff]
        %v1907 = vld [vmem:[%s2 + $0xa0] sm:$0xff]
        %v1908 = vld [vmem:[%s2 + $0xa8] sm:$0xff]
        %v1909 = vld [vmem:[%s2 + $0xb0] sm:$0xff]
        %v1910 = vld [vmem:[%s2 + $0xb8] sm:$0xff]
        %v1912 = vsel %vm608, %v1887, 0
        %v1915 = vsel %vm608, %v1888, 0
        %v1918 = vsel %vm608, %v1889, 0
        %v1921 = vsel %vm608, %v1890, 0
        %v1924 = vsel %vm608, %v1891, 0
        %v1927 = vsel %vm608, %v1892, 0
        %v1930 = vsel %vm608, %v1893, 0
        %v1933 = vsel %vm608, %v1894, 0
        %v1936 = vsel %vm608, %v1895, 0
        %v1939 = vsel %vm608, %v1896, 0
        %v1942 = vsel %vm608, %v1897, 0
        %v1945 = vsel %vm608, %v1898, 0
        %v1948 = vsel %vm608, %v1899, 0
        %v1951 = vsel %vm608, %v1900, 0
        %v1954 = vsel %vm608, %v1901, 0
        %v1957 = vsel %vm608, %v1902, 0
        %1959 = vmatprep.subr.mxu0 0.0
        %1960 = vmatpush1.msra.mxu0 %v1903
        %1961 = vmatprep.subr.mxu0 0.0
        %1962 = vmatpush1.msra.mxu0 %v1904
        %1963 = vmatprep.subr.mxu0 0.0
        %1964 = vmatpush1.msra.mxu0 %v1905
        %1965 = vmatprep.subr.mxu0 0.0
        %1966 = vmatpush1.msra.mxu0 %v1906
        %1967 = vmatprep.subr.mxu0 0.0
        %1968 = vmatpush1.msra.mxu0 %v1907
        %1969 = vmatprep.subr.mxu0 0.0
        %1970 = vmatpush1.msra.mxu0 %v1908
        %1971 = vmatprep.subr.mxu0 0.0
        %1972 = vmatpush1.msra.mxu0 %v1909
        %1973 = vmatprep.subr.mxu0 0.0
        %1974 = vmatpush1.msra.mxu0 %v1910
        %1975 = vmatprep.subr.mxu0 0.0
        %1976 = vmatpush1.msra.mxu0 0.0
        %1977 = vmatprep.subr.mxu0 0.0
        %1978 = vmatpush1.msra.mxu0 0.0
        %1979 = vmatprep.subr.mxu0 0.0
        %1980 = vmatpush1.msra.mxu0 0.0
        %1981 = vmatprep.subr.mxu0 0.0
        %1982 = vmatpush1.msra.mxu0 0.0
        %1983 = vmatprep.subr.mxu0 0.0
        %1984 = vmatpush1.msra.mxu0 0.0
        %1985 = vmatprep.subr.mxu0 0.0
        %1986 = vmatpush1.msra.mxu0 0.0
        %1987 = vmatprep.subr.mxu0 0.0
        %1988 = vmatpush1.msra.mxu0 0.0
        %1989 = vmatprep.subr.mxu0 0.0
        %1990 = vmatpush1.msra.mxu0 0.0
        %1991 = vmatprep.subr.mxu0 0.0
        %1992 = vmatpush1.msra.mxu0 0.0
        %1993 = vmatprep.subr.mxu0 0.0
        %1994 = vmatpush1.msra.mxu0 0.0
        %1995 = vmatprep.subr.mxu0 0.0
        %1996 = vmatpush1.msra.mxu0 0.0
        %1997 = vmatprep.subr.mxu0 0.0
        %1998 = vmatpush1.msra.mxu0 0.0
        %1999 = vmatprep.subr.mxu0 0.0
        %2000 = vmatpush1.msra.mxu0 0.0
        %2001 = vmatprep.subr.mxu0 0.0
        %2002 = vmatpush1.msra.mxu0 0.0
        %2003 = vmatprep.subr.mxu0 0.0
        %2004 = vmatpush1.msra.mxu0 0.0
        %2005 = vmatprep.subr.mxu0 0.0
        %2006 = vmatpush1.msra.mxu0 0.0
        %2007 = vmatprep.subr.mxu0 0.0
        %2008 = vmatpush1.msra.mxu0 0.0
        %2009 = vmatprep.subr.mxu0 0.0
        %2010 = vmatpush1.msra.mxu0 0.0
        %2011 = vmatprep.subr.mxu0 0.0
        %2012 = vmatpush1.msra.mxu0 0.0
        %2013 = vmatprep.subr.mxu0 0.0
        %2014 = vmatpush1.msra.mxu0 0.0
        %2015 = vmatprep.subr.mxu0 0.0
        %2016 = vmatpush1.msra.mxu0 0.0
        %2017 = vmatprep.subr.mxu0 0.0
        %2018 = vmatpush1.msra.mxu0 0.0
        %2019 = vmatprep.subr.mxu0 0.0
        %2020 = vmatpush1.msra.mxu0 0.0
        %2021 = vmatprep.subr.mxu0 0.0
        %2022 = vmatpush1.msra.mxu0 0.0
        %2023 = vmatprep.mubr.f32.mxu0 0.0
        %2024 = vmatmul.mubr.f32.gmra.mrb[0].mxu0 %v1912
        %v2025 = vpop.f32.mrb[0].mxu0
        %v2026 = vadd.f32 %v845, %v2025
        %v2027 = vpop.f32.mrb[0].mxu0
        %2028 = vmatprep.mubr.f32.mxu0 0.0
        %2029 = vmatmul.mubr.f32.gmra.mrb[0].mxu0 %v1915
        %v2030 = vpop.f32.mrb[0].mxu0
        %v2031 = vadd.f32 %v845, %v2030
        %v2032 = vpop.f32.mrb[0].mxu0
        %2033 = vmatprep.mubr.f32.mxu0 0.0
        %2034 = vmatmul.mubr.f32.gmra.mrb[0].mxu0 %v1918
        %v2035 = vpop.f32.mrb[0].mxu0
        %v2036 = vadd.f32 %v845, %v2035
        %v2037 = vpop.f32.mrb[0].mxu0
        %2038 = vmatprep.mubr.f32.mxu0 0.0
        %2039 = vmatmul.mubr.f32.gmra.mrb[0].mxu0 %v1921
        %v2040 = vpop.f32.mrb[0].mxu0
        %v2041 = vadd.f32 %v845, %v2040
        %v2042 = vpop.f32.mrb[0].mxu0
        %2043 = vmatprep.mubr.f32.mxu0 0.0
        %2044 = vmatmul.mubr.f32.gmra.mrb[0].mxu0 %v1924
        %v2045 = vpop.f32.mrb[0].mxu0
        %v2046 = vadd.f32 %v845, %v2045
        %v2047 = vpop.f32.mrb[0].mxu0
        %2048 = vmatprep.mubr.f32.mxu0 0.0
        %2049 = vmatmul.mubr.f32.gmra.mrb[0].mxu0 %v1927
        %v2050 = vpop.f32.mrb[0].mxu0
        %v2051 = vadd.f32 %v845, %v2050
        %v2052 = vpop.f32.mrb[0].mxu0
        %2053 = vmatprep.mubr.f32.mxu0 0.0
        %2054 = vmatmul.mubr.f32.gmra.mrb[0].mxu0 %v1930
        %v2055 = vpop.f32.mrb[0].mxu0
        %v2056 = vadd.f32 %v845, %v2055
        %v2057 = vpop.f32.mrb[0].mxu0
        %2058 = vmatprep.mubr.f32.mxu0 0.0
        %2059 = vmatmul.mubr.f32.gmra.mrb[0].mxu0 %v1933
        %v2060 = vpop.f32.mrb[0].mxu0
        %v2061 = vadd.f32 %v845, %v2060
        %v2062 = vpop.f32.mrb[0].mxu0
        %2063 = vmatprep.mubr.f32.mxu0 0.0
        %2064 = vmatmul.mubr.f32.gmra.mrb[0].mxu0 %v1936
        %v2065 = vpop.f32.mrb[0].mxu0
        %v2066 = vadd.f32 %v845, %v2065
        %v2067 = vpop.f32.mrb[0].mxu0
        %2068 = vmatprep.mubr.f32.mxu0 0.0
        %2069 = vmatmul.mubr.f32.gmra.mrb[0].mxu0 %v1939
        %v2070 = vpop.f32.mrb[0].mxu0
        %v2071 = vadd.f32 %v845, %v2070
        %v2072 = vpop.f32.mrb[0].mxu0
        %2073 = vmatprep.mubr.f32.mxu0 0.0
        %2074 = vmatmul.mubr.f32.gmra.mrb[0].mxu0 %v1942
        %v2075 = vpop.f32.mrb[0].mxu0
        %v2076 = vadd.f32 %v845, %v2075
        %v2077 = vpop.f32.mrb[0].mxu0
        %2078 = vmatprep.mubr.f32.mxu0 0.0
        %2079 = vmatmul.mubr.f32.gmra.mrb[0].mxu0 %v1945
        %v2080 = vpop.f32.mrb[0].mxu0
        %v2081 = vadd.f32 %v845, %v2080
        %v2082 = vpop.f32.mrb[0].mxu0
        %2083 = vmatprep.mubr.f32.mxu0 0.0
        %2084 = vmatmul.mubr.f32.gmra.mrb[0].mxu0 %v1948
        %v2085 = vpop.f32.mrb[0].mxu0
        %v2086 = vadd.f32 %v845, %v2085
        %v2087 = vpop.f32.mrb[0].mxu0
        %2088 = vmatprep.mubr.f32.mxu0 0.0
        %2089 = vmatmul.mubr.f32.gmra.mrb[0].mxu0 %v1951
        %v2090 = vpop.f32.mrb[0].mxu0
        %v2091 = vadd.f32 %v845, %v2090
        %v2092 = vpop.f32.mrb[0].mxu0
        %2093 = vmatprep.mubr.f32.mxu0 0.0
        %2094 = vmatmul.mubr.f32.gmra.mrb[0].mxu0 %v1954
        %v2095 = vpop.f32.mrb[0].mxu0
        %v2096 = vadd.f32 %v845, %v2095
        %v2097 = vpop.f32.mrb[0].mxu0
        %2098 = vmatprep.mubr.f32.mxu0 0.0
        %2099 = vmatmul.mubr.f32.gmra.mrb[0].mxu0 %v1957
        %v2100 = vpop.f32.mrb[0].mxu0
        %v2101 = vadd.f32 %v845, %v2100
        %v2102 = vpop.f32.mrb[0].mxu0
        %2103 = vdwg.mxu0
        %v2104 = vmax.f32 %v2026, 0.0
        %v2105 = vmax.f32 %v2031, 0.0
        %v2106 = vmax.f32 %v2036, 0.0
        %v2107 = vmax.f32 %v2041, 0.0
        %v2108 = vmax.f32 %v2046, 0.0
        %v2109 = vmax.f32 %v2051, 0.0
        %v2110 = vmax.f32 %v2056, 0.0
        %v2111 = vmax.f32 %v2061, 0.0
        %v2112 = vmax.f32 %v2066, 0.0
        %v2113 = vmax.f32 %v2071, 0.0
        %v2114 = vmax.f32 %v2076, 0.0
        %v2115 = vmax.f32 %v2081, 0.0
        %v2116 = vmax.f32 %v2086, 0.0
        %v2117 = vmax.f32 %v2091, 0.0
        %v2118 = vmax.f32 %v2096, 0.0
        %v2119 = vmax.f32 %v2101, 0.0
        %2136 = vrot.lane.b32.xlu0 %v2026, 96
        %v2137 = vpop.permute.xlu0 %2136
        %2138 = vrot.lane.b32.xlu0 %v2031, 96
        %v2139 = vpop.permute.xlu0 %2138
        %2140 = vrot.lane.b32.xlu0 %v2036, 96
        %v2141 = vpop.permute.xlu0 %2140
        %2142 = vrot.lane.b32.xlu0 %v2041, 96
        %v2143 = vpop.permute.xlu0 %2142
        %2144 = vrot.lane.b32.xlu0 %v2046, 96
        %v2145 = vpop.permute.xlu0 %2144
        %2146 = vrot.lane.b32.xlu0 %v2051, 96
        %v2147 = vpop.permute.xlu0 %2146
        %2148 = vrot.lane.b32.xlu0 %v2056, 96
        %v2149 = vpop.permute.xlu0 %2148
        %2150 = vrot.lane.b32.xlu0 %v2061, 96
        %v2151 = vpop.permute.xlu0 %2150
        %2152 = vrot.lane.b32.xlu0 %v2066, 96
        %v2153 = vpop.permute.xlu0 %2152
        %2154 = vrot.lane.b32.xlu0 %v2071, 96
        %v2155 = vpop.permute.xlu0 %2154
        %2156 = vrot.lane.b32.xlu0 %v2076, 96
        %v2157 = vpop.permute.xlu0 %2156
        %2158 = vrot.lane.b32.xlu0 %v2081, 96
        %v2159 = vpop.permute.xlu0 %2158
        %2160 = vrot.lane.b32.xlu0 %v2086, 96
        %v2161 = vpop.permute.xlu0 %2160
        %2162 = vrot.lane.b32.xlu0 %v2091, 96
        %v2163 = vpop.permute.xlu0 %2162
        %2164 = vrot.lane.b32.xlu0 %v2096, 96
        %v2165 = vpop.permute.xlu0 %2164
        %2166 = vrot.lane.b32.xlu0 %v2101, 96
        %v2167 = vpop.permute.xlu0 %2166
        %v2184 = vadd.f32 %v1119, %v2137
        %v2185 = vadd.f32 %v1120, %v2139
        %v2186 = vadd.f32 %v1121, %v2141
        %v2187 = vadd.f32 %v1122, %v2143
        %v2188 = vadd.f32 %v1123, %v2145
        %v2189 = vadd.f32 %v1124, %v2147
        %v2190 = vadd.f32 %v1125, %v2149
        %v2191 = vadd.f32 %v1126, %v2151
        %v2192 = vadd.f32 %v1127, %v2153
        %v2193 = vadd.f32 %v1128, %v2155
        %v2194 = vadd.f32 %v1129, %v2157
        %v2195 = vadd.f32 %v1130, %v2159
        %v2196 = vadd.f32 %v1131, %v2161
        %v2197 = vadd.f32 %v1132, %v2163
        %v2198 = vadd.f32 %v1133, %v2165
        %v2199 = vadd.f32 %v1134, %v2167
        %v2200 = vmax.f32 %v2184, 0.0
        %v2201 = vmax.f32 %v2185, 0.0
        %v2202 = vmax.f32 %v2186, 0.0
        %v2203 = vmax.f32 %v2187, 0.0
        %v2204 = vmax.f32 %v2188, 0.0
        %v2205 = vmax.f32 %v2189, 0.0
        %v2206 = vmax.f32 %v2190, 0.0
        %v2207 = vmax.f32 %v2191, 0.0
        %v2208 = vmax.f32 %v2192, 0.0
        %v2209 = vmax.f32 %v2193, 0.0
        %v2210 = vmax.f32 %v2194, 0.0
        %v2211 = vmax.f32 %v2195, 0.0
        %v2212 = vmax.f32 %v2196, 0.0
        %v2213 = vmax.f32 %v2197, 0.0
        %v2214 = vmax.f32 %v2198, 0.0
        %v2215 = vmax.f32 %v2199, 0.0
        %v2216 = vmin.f32 %v2200, 1.0
        %v2217 = vmin.f32 %v2201, 1.0
        %v2218 = vmin.f32 %v2202, 1.0
        %v2219 = vmin.f32 %v2203, 1.0
        %v2220 = vmin.f32 %v2204, 1.0
        %v2221 = vmin.f32 %v2205, 1.0
        %v2222 = vmin.f32 %v2206, 1.0
        %v2223 = vmin.f32 %v2207, 1.0
        %v2224 = vmin.f32 %v2208, 1.0
        %v2225 = vmin.f32 %v2209, 1.0
        %v2226 = vmin.f32 %v2210, 1.0
        %v2227 = vmin.f32 %v2211, 1.0
        %v2228 = vmin.f32 %v2212, 1.0
        %v2229 = vmin.f32 %v2213, 1.0
        %v2230 = vmin.f32 %v2214, 1.0
        %v2231 = vmin.f32 %v2215, 1.0
        %s2232 = scalar_lea.vmem %s258, 256 [#allocation2]
        %2233 = vst.msk [vmem:[%s2232] sm:$0xff] %vm327, %v2216
        %2234 = vst.msk [vmem:[%s2232 + $0x8] sm:$0xff] %vm327, %v2217
        %2235 = vst.msk [vmem:[%s2232 + $0x10] sm:$0xff] %vm327, %v2218
        %2236 = vst.msk [vmem:[%s2232 + $0x18] sm:$0xff] %vm327, %v2219
        %2237 = vst.msk [vmem:[%s2232 + $0x20] sm:$0xff] %vm327, %v2220
        %2238 = vst.msk [vmem:[%s2232 + $0x28] sm:$0xff] %vm327, %v2221
        %2239 = vst.msk [vmem:[%s2232 + $0x30] sm:$0xff] %vm327, %v2222
        %2240 = vst.msk [vmem:[%s2232 + $0x38] sm:$0xff] %vm327, %v2223
        %2241 = vst.msk [vmem:[%s2232 + $0x40] sm:$0xff] %vm327, %v2224
        %2242 = vst.msk [vmem:[%s2232 + $0x48] sm:$0xff] %vm327, %v2225
        %2243 = vst.msk [vmem:[%s2232 + $0x50] sm:$0xff] %vm327, %v2226
        %2244 = vst.msk [vmem:[%s2232 + $0x58] sm:$0xff] %vm327, %v2227
        %2245 = vst.msk [vmem:[%s2232 + $0x60] sm:$0xff] %vm327, %v2228
        %2246 = vst.msk [vmem:[%s2232 + $0x68] sm:$0xff] %vm327, %v2229
        %2247 = vst.msk [vmem:[%s2232 + $0x70] sm:$0xff] %vm327, %v2230
        %2248 = vst.msk [vmem:[%s2232 + $0x78] sm:$0xff] %vm327, %v2231
        %v2249 = vsub.f32 %v2216, %v308
        %v2250 = vsub.f32 %v2217, %v309
        %v2251 = vsub.f32 %v2218, %v310
        %v2252 = vsub.f32 %v2219, %v311
        %v2253 = vsub.f32 %v2220, %v312
        %v2254 = vsub.f32 %v2221, %v313
        %v2255 = vsub.f32 %v2222, %v314
        %v2256 = vsub.f32 %v2223, %v315
        %v2257 = vsub.f32 %v2224, %v316
        %v2258 = vsub.f32 %v2225, %v317
        %v2259 = vsub.f32 %v2226, %v318
        %v2260 = vsub.f32 %v2227, %v319
        %v2261 = vsub.f32 %v2228, %v320
        %v2262 = vsub.f32 %v2229, %v321
        %v2263 = vsub.f32 %v2230, %v322
        %v2264 = vsub.f32 %v2231, %v323
        %v2265 = vmul.f32 %v2249, %v2249
        %v2266 = vmul.f32 %v2250, %v2250
        %v2267 = vmul.f32 %v2251, %v2251
        %v2268 = vmul.f32 %v2252, %v2252
        %v2269 = vmul.f32 %v2253, %v2253
        %v2270 = vmul.f32 %v2254, %v2254
        %v2271 = vmul.f32 %v2255, %v2255
        %v2272 = vmul.f32 %v2256, %v2256
        %v2273 = vmul.f32 %v2257, %v2257
        %v2274 = vmul.f32 %v2258, %v2258
        %v2275 = vmul.f32 %v2259, %v2259
        %v2276 = vmul.f32 %v2260, %v2260
        %v2277 = vmul.f32 %v2261, %v2261
        %v2278 = vmul.f32 %v2262, %v2262
        %v2279 = vmul.f32 %v2263, %v2263
        %v2280 = vmul.f32 %v2264, %v2264
        %v2281 = vadd.f32 %v1216, %v2265
        %v2282 = vadd.f32 %v1217, %v2266
        %v2283 = vadd.f32 %v1218, %v2267
        %v2284 = vadd.f32 %v1219, %v2268
        %v2285 = vadd.f32 %v1220, %v2269
        %v2286 = vadd.f32 %v1221, %v2270
        %v2287 = vadd.f32 %v1222, %v2271
        %v2288 = vadd.f32 %v1223, %v2272
        %v2289 = vadd.f32 %v1224, %v2273
        %v2290 = vadd.f32 %v1225, %v2274
        %v2291 = vadd.f32 %v1226, %v2275
        %v2292 = vadd.f32 %v1227, %v2276
        %v2293 = vadd.f32 %v1228, %v2277
        %v2294 = vadd.f32 %v1229, %v2278
        %v2295 = vadd.f32 %v1230, %v2279
        %v2296 = vadd.f32 %v1231, %v2280
        %2313 = vrot.lane.b32.xlu0 %v1510, 8
        %v2314 = vpop.permute.xlu0 %2313
        %2315 = vrot.lane.b32.xlu0 %v1511, 8
        %v2316 = vpop.permute.xlu0 %2315
        %2317 = vrot.lane.b32.xlu0 %v1512, 8
        %v2318 = vpop.permute.xlu0 %2317
        %2319 = vrot.lane.b32.xlu0 %v1513, 8
        %v2320 = vpop.permute.xlu0 %2319
        %2321 = vrot.lane.b32.xlu0 %v1514, 8
        %v2322 = vpop.permute.xlu0 %2321
        %2323 = vrot.lane.b32.xlu0 %v1515, 8
        %v2324 = vpop.permute.xlu0 %2323
        %2325 = vrot.lane.b32.xlu0 %v1516, 8
        %v2326 = vpop.permute.xlu0 %2325
        %2327 = vrot.lane.b32.xlu0 %v1517, 8
        %v2328 = vpop.permute.xlu0 %2327
        %2329 = vrot.lane.b32.xlu0 %v1518, 8
        %v2330 = vpop.permute.xlu0 %2329
        %2331 = vrot.lane.b32.xlu0 %v1519, 8
        %v2332 = vpop.permute.xlu0 %2331
        %2333 = vrot.lane.b32.xlu0 %v1520, 8
        %v2334 = vpop.permute.xlu0 %2333
        %2335 = vrot.lane.b32.xlu0 %v1521, 8
        %v2336 = vpop.permute.xlu0 %2335
        %2337 = vrot.lane.b32.xlu0 %v1522, 8
        %v2338 = vpop.permute.xlu0 %2337
        %2339 = vrot.lane.b32.xlu0 %v1523, 8
        %v2340 = vpop.permute.xlu0 %2339
        %2341 = vrot.lane.b32.xlu0 %v1524, 8
        %v2342 = vpop.permute.xlu0 %2341
        %2343 = vrot.lane.b32.xlu0 %v1525, 8
        %v2344 = vpop.permute.xlu0 %2343
        %v2361 = vsel %vm327, %v2184, %v2314
        %v2362 = vsel %vm327, %v2185, %v2316
        %v2363 = vsel %vm327, %v2186, %v2318
        %v2364 = vsel %vm327, %v2187, %v2320
        %v2365 = vsel %vm327, %v2188, %v2322
        %v2366 = vsel %vm327, %v2189, %v2324
        %v2367 = vsel %vm327, %v2190, %v2326
        %v2368 = vsel %vm327, %v2191, %v2328
        %v2369 = vsel %vm327, %v2192, %v2330
        %v2370 = vsel %vm327, %v2193, %v2332
        %v2371 = vsel %vm327, %v2194, %v2334
        %v2372 = vsel %vm327, %v2195, %v2336
        %v2373 = vsel %vm327, %v2196, %v2338
        %v2374 = vsel %vm327, %v2197, %v2340
        %v2375 = vsel %vm327, %v2198, %v2342
        %v2376 = vsel %vm327, %v2199, %v2344
        %v2377 = vld [vmem:[%s2] sm:$0xff]
        %v2378 = vld [vmem:[%s2 + $0x8] sm:$0xff]
        %v2379 = vld [vmem:[%s2 + $0x10] sm:$0xff]
        %v2380 = vld [vmem:[%s2 + $0x18] sm:$0xff]
        %v2381 = vld [vmem:[%s2 + $0x20] sm:$0xff]
        %v2383 = vsel %vm369, %v2361, 0
        %v2386 = vsel %vm369, %v2362, 0
        %v2389 = vsel %vm369, %v2363, 0
        %v2392 = vsel %vm369, %v2364, 0
        %v2395 = vsel %vm369, %v2365, 0
        %v2398 = vsel %vm369, %v2366, 0
        %v2401 = vsel %vm369, %v2367, 0
        %v2404 = vsel %vm369, %v2368, 0
        %v2407 = vsel %vm369, %v2369, 0
        %v2410 = vsel %vm369, %v2370, 0
        %v2413 = vsel %vm369, %v2371, 0
        %v2416 = vsel %vm369, %v2372, 0
        %v2419 = vsel %vm369, %v2373, 0
        %v2422 = vsel %vm369, %v2374, 0
        %v2425 = vsel %vm369, %v2375, 0
        %v2428 = vsel %vm369, %v2376, 0
        %2430 = vmatprep.subr.mxu0 0.0
        %2431 = vmatpush1.msra.mxu0 %v2377
        %2432 = vmatprep.subr.mxu0 0.0
        %2433 = vmatpush1.msra.mxu0 %v2378
        %2434 = vmatprep.subr.mxu0 0.0
        %2435 = vmatpush1.msra.mxu0 %v2379
        %2436 = vmatprep.subr.mxu0 0.0
        %2437 = vmatpush1.msra.mxu0 %v2380
        %2438 = vmatprep.subr.mxu0 0.0
        %2439 = vmatpush1.msra.mxu0 %v2381
        %2440 = vmatprep.subr.mxu0 0.0
        %2441 = vmatpush1.msra.mxu0 0.0
        %2442 = vmatprep.subr.mxu0 0.0
        %2443 = vmatpush1.msra.mxu0 0.0
        %2444 = vmatprep.subr.mxu0 0.0
        %2445 = vmatpush1.msra.mxu0 0.0
        %2446 = vmatprep.subr.mxu0 0.0
        %2447 = vmatpush1.msra.mxu0 0.0
        %2448 = vmatprep.subr.mxu0 0.0
        %2449 = vmatpush1.msra.mxu0 0.0
        %2450 = vmatprep.subr.mxu0 0.0
        %2451 = vmatpush1.msra.mxu0 0.0
        %2452 = vmatprep.subr.mxu0 0.0
        %2453 = vmatpush1.msra.mxu0 0.0
        %2454 = vmatprep.subr.mxu0 0.0
        %2455 = vmatpush1.msra.mxu0 0.0
        %2456 = vmatprep.subr.mxu0 0.0
        %2457 = vmatpush1.msra.mxu0 0.0
        %2458 = vmatprep.subr.mxu0 0.0
        %2459 = vmatpush1.msra.mxu0 0.0
        %2460 = vmatprep.subr.mxu0 0.0
        %2461 = vmatpush1.msra.mxu0 0.0
        %2462 = vmatprep.subr.mxu0 0.0
        %2463 = vmatpush1.msra.mxu0 0.0
        %2464 = vmatprep.subr.mxu0 0.0
        %2465 = vmatpush1.msra.mxu0 0.0
        %2466 = vmatprep.subr.mxu0 0.0
        %2467 = vmatpush1.msra.mxu0 0.0
        %2468 = vmatprep.subr.mxu0 0.0
        %2469 = vmatpush1.msra.mxu0 0.0
        %2470 = vmatprep.subr.mxu0 0.0
        %2471 = vmatpush1.msra.mxu0 0.0
        %2472 = vmatprep.subr.mxu0 0.0
        %2473 = vmatpush1.msra.mxu0 0.0
        %2474 = vmatprep.subr.mxu0 0.0
        %2475 = vmatpush1.msra.mxu0 0.0
        %2476 = vmatprep.subr.mxu0 0.0
        %2477 = vmatpush1.msra.mxu0 0.0
        %2478 = vmatprep.subr.mxu0 0.0
        %2479 = vmatpush1.msra.mxu0 0.0
        %2480 = vmatprep.subr.mxu0 0.0
        %2481 = vmatpush1.msra.mxu0 0.0
        %2482 = vmatprep.subr.mxu0 0.0
        %2483 = vmatpush1.msra.mxu0 0.0
        %2484 = vmatprep.subr.mxu0 0.0
        %2485 = vmatpush1.msra.mxu0 0.0
        %2486 = vmatprep.subr.mxu0 0.0
        %2487 = vmatpush1.msra.mxu0 0.0
        %2488 = vmatprep.subr.mxu0 0.0
        %2489 = vmatpush1.msra.mxu0 0.0
        %2490 = vmatprep.subr.mxu0 0.0
        %2491 = vmatpush1.msra.mxu0 0.0
        %2492 = vmatprep.subr.mxu0 0.0
        %2493 = vmatpush1.msra.mxu0 0.0
        %2494 = vmatprep.mubr.f32.mxu0 0.0
        %2495 = vmatmul.mubr.f32.gmra.mrb[0].mxu0 %v2383
        %v2496 = vpop.f32.mrb[0].mxu0
        %v2497 = vadd.f32 %v368, %v2496
        %v2498 = vpop.f32.mrb[0].mxu0
        %2499 = vmatprep.mubr.f32.mxu0 0.0
        %2500 = vmatmul.mubr.f32.gmra.mrb[0].mxu0 %v2386
        %v2501 = vpop.f32.mrb[0].mxu0
        %v2502 = vadd.f32 %v368, %v2501
        %v2503 = vpop.f32.mrb[0].mxu0
        %2504 = vmatprep.mubr.f32.mxu0 0.0
        %2505 = vmatmul.mubr.f32.gmra.mrb[0].mxu0 %v2389
        %v2506 = vpop.f32.mrb[0].mxu0
        %v2507 = vadd.f32 %v368, %v2506
        %v2508 = vpop.f32.mrb[0].mxu0
        %2509 = vmatprep.mubr.f32.mxu0 0.0
        %2510 = vmatmul.mubr.f32.gmra.mrb[0].mxu0 %v2392
        %v2511 = vpop.f32.mrb[0].mxu0
        %v2512 = vadd.f32 %v368, %v2511
        %v2513 = vpop.f32.mrb[0].mxu0
        %2514 = vmatprep.mubr.f32.mxu0 0.0
        %2515 = vmatmul.mubr.f32.gmra.mrb[0].mxu0 %v2395
        %v2516 = vpop.f32.mrb[0].mxu0
        %v2517 = vadd.f32 %v368, %v2516
        %v2518 = vpop.f32.mrb[0].mxu0
        %2519 = vmatprep.mubr.f32.mxu0 0.0
        %2520 = vmatmul.mubr.f32.gmra.mrb[0].mxu0 %v2398
        %v2521 = vpop.f32.mrb[0].mxu0
        %v2522 = vadd.f32 %v368, %v2521
        %v2523 = vpop.f32.mrb[0].mxu0
        %2524 = vmatprep.mubr.f32.mxu0 0.0
        %2525 = vmatmul.mubr.f32.gmra.mrb[0].mxu0 %v2401
        %v2526 = vpop.f32.mrb[0].mxu0
        %v2527 = vadd.f32 %v368, %v2526
        %v2528 = vpop.f32.mrb[0].mxu0
        %2529 = vmatprep.mubr.f32.mxu0 0.0
        %2530 = vmatmul.mubr.f32.gmra.mrb[0].mxu0 %v2404
        %v2531 = vpop.f32.mrb[0].mxu0
        %v2532 = vadd.f32 %v368, %v2531
        %v2533 = vpop.f32.mrb[0].mxu0
        %2534 = vmatprep.mubr.f32.mxu0 0.0
        %2535 = vmatmul.mubr.f32.gmra.mrb[0].mxu0 %v2407
        %v2536 = vpop.f32.mrb[0].mxu0
        %v2537 = vadd.f32 %v368, %v2536
        %v2538 = vpop.f32.mrb[0].mxu0
        %2539 = vmatprep.mubr.f32.mxu0 0.0
        %2540 = vmatmul.mubr.f32.gmra.mrb[0].mxu0 %v2410
        %v2541 = vpop.f32.mrb[0].mxu0
        %v2542 = vadd.f32 %v368, %v2541
        %v2543 = vpop.f32.mrb[0].mxu0
        %2544 = vmatprep.mubr.f32.mxu0 0.0
        %2545 = vmatmul.mubr.f32.gmra.mrb[0].mxu0 %v2413
        %v2546 = vpop.f32.mrb[0].mxu0
        %v2547 = vadd.f32 %v368, %v2546
        %v2548 = vpop.f32.mrb[0].mxu0
        %2549 = vmatprep.mubr.f32.mxu0 0.0
        %2550 = vmatmul.mubr.f32.gmra.mrb[0].mxu0 %v2416
        %v2551 = vpop.f32.mrb[0].mxu0
        %v2552 = vadd.f32 %v368, %v2551
        %v2553 = vpop.f32.mrb[0].mxu0
        %2554 = vmatprep.mubr.f32.mxu0 0.0
        %2555 = vmatmul.mubr.f32.gmra.mrb[0].mxu0 %v2419
        %v2556 = vpop.f32.mrb[0].mxu0
        %v2557 = vadd.f32 %v368, %v2556
        %v2558 = vpop.f32.mrb[0].mxu0
        %2559 = vmatprep.mubr.f32.mxu0 0.0
        %2560 = vmatmul.mubr.f32.gmra.mrb[0].mxu0 %v2422
        %v2561 = vpop.f32.mrb[0].mxu0
        %v2562 = vadd.f32 %v368, %v2561
        %v2563 = vpop.f32.mrb[0].mxu0
        %2564 = vmatprep.mubr.f32.mxu0 0.0
        %2565 = vmatmul.mubr.f32.gmra.mrb[0].mxu0 %v2425
        %v2566 = vpop.f32.mrb[0].mxu0
        %v2567 = vadd.f32 %v368, %v2566
        %v2568 = vpop.f32.mrb[0].mxu0
        %2569 = vmatprep.mubr.f32.mxu0 0.0
        %2570 = vmatmul.mubr.f32.gmra.mrb[0].mxu0 %v2428
        %v2571 = vpop.f32.mrb[0].mxu0
        %v2572 = vadd.f32 %v368, %v2571
        %v2573 = vpop.f32.mrb[0].mxu0
        %2574 = vdwg.mxu0
        %v2575 = vmax.f32 %v2497, 0.0
        %v2576 = vmax.f32 %v2502, 0.0
        %v2577 = vmax.f32 %v2507, 0.0
        %v2578 = vmax.f32 %v2512, 0.0
        %v2579 = vmax.f32 %v2517, 0.0
        %v2580 = vmax.f32 %v2522, 0.0
        %v2581 = vmax.f32 %v2527, 0.0
        %v2582 = vmax.f32 %v2532, 0.0
        %v2583 = vmax.f32 %v2537, 0.0
        %v2584 = vmax.f32 %v2542, 0.0
        %v2585 = vmax.f32 %v2547, 0.0
        %v2586 = vmax.f32 %v2552, 0.0
        %v2587 = vmax.f32 %v2557, 0.0
        %v2588 = vmax.f32 %v2562, 0.0
        %v2589 = vmax.f32 %v2567, 0.0
        %v2590 = vmax.f32 %v2572, 0.0
        %2607 = vrot.lane.b32.xlu0 %v1807, 32
        %v2608 = vpop.permute.xlu0 %2607
        %2609 = vrot.lane.b32.xlu0 %v1808, 32
        %v2610 = vpop.permute.xlu0 %2609
        %2611 = vrot.lane.b32.xlu0 %v1809, 32
        %v2612 = vpop.permute.xlu0 %2611
        %2613 = vrot.lane.b32.xlu0 %v1810, 32
        %v2614 = vpop.permute.xlu0 %2613
        %2615 = vrot.lane.b32.xlu0 %v1811, 32
        %v2616 = vpop.permute.xlu0 %2615
        %2617 = vrot.lane.b32.xlu0 %v1812, 32
        %v2618 = vpop.permute.xlu0 %2617
        %2619 = vrot.lane.b32.xlu0 %v1813, 32
        %v2620 = vpop.permute.xlu0 %2619
        %2621 = vrot.lane.b32.xlu0 %v1814, 32
        %v2622 = vpop.permute.xlu0 %2621
        %2623 = vrot.lane.b32.xlu0 %v1815, 32
        %v2624 = vpop.permute.xlu0 %2623
        %2625 = vrot.lane.b32.xlu0 %v1816, 32
        %v2626 = vpop.permute.xlu0 %2625
        %2627 = vrot.lane.b32.xlu0 %v1817, 32
        %v2628 = vpop.permute.xlu0 %2627
        %2629 = vrot.lane.b32.xlu0 %v1818, 32
        %v2630 = vpop.permute.xlu0 %2629
        %2631 = vrot.lane.b32.xlu0 %v1819, 32
        %v2632 = vpop.permute.xlu0 %2631
        %2633 = vrot.lane.b32.xlu0 %v1820, 32
        %v2634 = vpop.permute.xlu0 %2633
        %2635 = vrot.lane.b32.xlu0 %v1821, 32
        %v2636 = vpop.permute.xlu0 %2635
        %2637 = vrot.lane.b32.xlu0 %v1822, 32
        %v2638 = vpop.permute.xlu0 %2637
        %v2655 = vsel %vm579, %v2575, %v2608
        %v2656 = vsel %vm579, %v2576, %v2610
        %v2657 = vsel %vm579, %v2577, %v2612
        %v2658 = vsel %vm579, %v2578, %v2614
        %v2659 = vsel %vm579, %v2579, %v2616
        %v2660 = vsel %vm579, %v2580, %v2618
        %v2661 = vsel %vm579, %v2581, %v2620
        %v2662 = vsel %vm579, %v2582, %v2622
        %v2663 = vsel %vm579, %v2583, %v2624
        %v2664 = vsel %vm579, %v2584, %v2626
        %v2665 = vsel %vm579, %v2585, %v2628
        %v2666 = vsel %vm579, %v2586, %v2630
        %v2667 = vsel %vm579, %v2587, %v2632
        %v2668 = vsel %vm579, %v2588, %v2634
        %v2669 = vsel %vm579, %v2589, %v2636
        %v2670 = vsel %vm579, %v2590, %v2638
        %v2671 = vld [vmem:[%s2 + $0x40] sm:$0xff]
        %v2672 = vld [vmem:[%s2 + $0x48] sm:$0xff]
        %v2673 = vld [vmem:[%s2 + $0x50] sm:$0xff]
        %v2674 = vld [vmem:[%s2 + $0x58] sm:$0xff]
        %v2675 = vld [vmem:[%s2 + $0x60] sm:$0xff]
        %v2676 = vld [vmem:[%s2 + $0x68] sm:$0xff]
        %v2677 = vld [vmem:[%s2 + $0x70] sm:$0xff]
        %v2678 = vld [vmem:[%s2 + $0x78] sm:$0xff]
        %v2680 = vsel %vm608, %v2655, 0
        %v2683 = vsel %vm608, %v2656, 0
        %v2686 = vsel %vm608, %v2657, 0
        %v2689 = vsel %vm608, %v2658, 0
        %v2692 = vsel %vm608, %v2659, 0
        %v2695 = vsel %vm608, %v2660, 0
        %v2698 = vsel %vm608, %v2661, 0
        %v2701 = vsel %vm608, %v2662, 0
        %v2704 = vsel %vm608, %v2663, 0
        %v2707 = vsel %vm608, %v2664, 0
        %v2710 = vsel %vm608, %v2665, 0
        %v2713 = vsel %vm608, %v2666, 0
        %v2716 = vsel %vm608, %v2667, 0
        %v2719 = vsel %vm608, %v2668, 0
        %v2722 = vsel %vm608, %v2669, 0
        %v2725 = vsel %vm608, %v2670, 0
        %2727 = vmatprep.subr.mxu0 0.0
        %2728 = vmatpush1.msra.mxu0 %v2671
        %2729 = vmatprep.subr.mxu0 0.0
        %2730 = vmatpush1.msra.mxu0 %v2672
        %2731 = vmatprep.subr.mxu0 0.0
        %2732 = vmatpush1.msra.mxu0 %v2673
        %2733 = vmatprep.subr.mxu0 0.0
        %2734 = vmatpush1.msra.mxu0 %v2674
        %2735 = vmatprep.subr.mxu0 0.0
        %2736 = vmatpush1.msra.mxu0 %v2675
        %2737 = vmatprep.subr.mxu0 0.0
        %2738 = vmatpush1.msra.mxu0 %v2676
        %2739 = vmatprep.subr.mxu0 0.0
        %2740 = vmatpush1.msra.mxu0 %v2677
        %2741 = vmatprep.subr.mxu0 0.0
        %2742 = vmatpush1.msra.mxu0 %v2678
        %2743 = vmatprep.subr.mxu0 0.0
        %2744 = vmatpush1.msra.mxu0 0.0
        %2745 = vmatprep.subr.mxu0 0.0
        %2746 = vmatpush1.msra.mxu0 0.0
        %2747 = vmatprep.subr.mxu0 0.0
        %2748 = vmatpush1.msra.mxu0 0.0
        %2749 = vmatprep.subr.mxu0 0.0
        %2750 = vmatpush1.msra.mxu0 0.0
        %2751 = vmatprep.subr.mxu0 0.0
        %2752 = vmatpush1.msra.mxu0 0.0
        %2753 = vmatprep.subr.mxu0 0.0
        %2754 = vmatpush1.msra.mxu0 0.0
        %2755 = vmatprep.subr.mxu0 0.0
        %2756 = vmatpush1.msra.mxu0 0.0
        %2757 = vmatprep.subr.mxu0 0.0
        %2758 = vmatpush1.msra.mxu0 0.0
        %2759 = vmatprep.subr.mxu0 0.0
        %2760 = vmatpush1.msra.mxu0 0.0
        %2761 = vmatprep.subr.mxu0 0.0
        %2762 = vmatpush1.msra.mxu0 0.0
        %2763 = vmatprep.subr.mxu0 0.0
        %2764 = vmatpush1.msra.mxu0 0.0
        %2765 = vmatprep.subr.mxu0 0.0
        %2766 = vmatpush1.msra.mxu0 0.0
        %2767 = vmatprep.subr.mxu0 0.0
        %2768 = vmatpush1.msra.mxu0 0.0
        %2769 = vmatprep.subr.mxu0 0.0
        %2770 = vmatpush1.msra.mxu0 0.0
        %2771 = vmatprep.subr.mxu0 0.0
        %2772 = vmatpush1.msra.mxu0 0.0
        %2773 = vmatprep.subr.mxu0 0.0
        %2774 = vmatpush1.msra.mxu0 0.0
        %2775 = vmatprep.subr.mxu0 0.0
        %2776 = vmatpush1.msra.mxu0 0.0
        %2777 = vmatprep.subr.mxu0 0.0
        %2778 = vmatpush1.msra.mxu0 0.0
        %2779 = vmatprep.subr.mxu0 0.0
        %2780 = vmatpush1.msra.mxu0 0.0
        %2781 = vmatprep.subr.mxu0 0.0
        %2782 = vmatpush1.msra.mxu0 0.0
        %2783 = vmatprep.subr.mxu0 0.0
        %2784 = vmatpush1.msra.mxu0 0.0
        %2785 = vmatprep.subr.mxu0 0.0
        %2786 = vmatpush1.msra.mxu0 0.0
        %2787 = vmatprep.subr.mxu0 0.0
        %2788 = vmatpush1.msra.mxu0 0.0
        %2789 = vmatprep.subr.mxu0 0.0
        %2790 = vmatpush1.msra.mxu0 0.0
        %2791 = vmatprep.mubr.f32.mxu0 0.0
        %2792 = vmatmul.mubr.f32.gmra.mrb[0].mxu0 %v2680
        %v2793 = vpop.f32.mrb[0].mxu0
        %v2794 = vadd.f32 %v607, %v2793
        %v2795 = vpop.f32.mrb[0].mxu0
        %2796 = vmatprep.mubr.f32.mxu0 0.0
        %2797 = vmatmul.mubr.f32.gmra.mrb[0].mxu0 %v2683
        %v2798 = vpop.f32.mrb[0].mxu0
        %v2799 = vadd.f32 %v607, %v2798
        %v2800 = vpop.f32.mrb[0].mxu0
        %2801 = vmatprep.mubr.f32.mxu0 0.0
        %2802 = vmatmul.mubr.f32.gmra.mrb[0].mxu0 %v2686
        %v2803 = vpop.f32.mrb[0].mxu0
        %v2804 = vadd.f32 %v607, %v2803
        %v2805 = vpop.f32.mrb[0].mxu0
        %2806 = vmatprep.mubr.f32.mxu0 0.0
        %2807 = vmatmul.mubr.f32.gmra.mrb[0].mxu0 %v2689
        %v2808 = vpop.f32.mrb[0].mxu0
        %v2809 = vadd.f32 %v607, %v2808
        %v2810 = vpop.f32.mrb[0].mxu0
        %2811 = vmatprep.mubr.f32.mxu0 0.0
        %2812 = vmatmul.mubr.f32.gmra.mrb[0].mxu0 %v2692
        %v2813 = vpop.f32.mrb[0].mxu0
        %v2814 = vadd.f32 %v607, %v2813
        %v2815 = vpop.f32.mrb[0].mxu0
        %2816 = vmatprep.mubr.f32.mxu0 0.0
        %2817 = vmatmul.mubr.f32.gmra.mrb[0].mxu0 %v2695
        %v2818 = vpop.f32.mrb[0].mxu0
        %v2819 = vadd.f32 %v607, %v2818
        %v2820 = vpop.f32.mrb[0].mxu0
        %2821 = vmatprep.mubr.f32.mxu0 0.0
        %2822 = vmatmul.mubr.f32.gmra.mrb[0].mxu0 %v2698
        %v2823 = vpop.f32.mrb[0].mxu0
        %v2824 = vadd.f32 %v607, %v2823
        %v2825 = vpop.f32.mrb[0].mxu0
        %2826 = vmatprep.mubr.f32.mxu0 0.0
        %2827 = vmatmul.mubr.f32.gmra.mrb[0].mxu0 %v2701
        %v2828 = vpop.f32.mrb[0].mxu0
        %v2829 = vadd.f32 %v607, %v2828
        %v2830 = vpop.f32.mrb[0].mxu0
        %2831 = vmatprep.mubr.f32.mxu0 0.0
        %2832 = vmatmul.mubr.f32.gmra.mrb[0].mxu0 %v2704
        %v2833 = vpop.f32.mrb[0].mxu0
        %v2834 = vadd.f32 %v607, %v2833
        %v2835 = vpop.f32.mrb[0].mxu0
        %2836 = vmatprep.mubr.f32.mxu0 0.0
        %2837 = vmatmul.mubr.f32.gmra.mrb[0].mxu0 %v2707
        %v2838 = vpop.f32.mrb[0].mxu0
        %v2839 = vadd.f32 %v607, %v2838
        %v2840 = vpop.f32.mrb[0].mxu0
        %2841 = vmatprep.mubr.f32.mxu0 0.0
        %2842 = vmatmul.mubr.f32.gmra.mrb[0].mxu0 %v2710
        %v2843 = vpop.f32.mrb[0].mxu0
        %v2844 = vadd.f32 %v607, %v2843
        %v2845 = vpop.f32.mrb[0].mxu0
        %2846 = vmatprep.mubr.f32.mxu0 0.0
        %2847 = vmatmul.mubr.f32.gmra.mrb[0].mxu0 %v2713
        %v2848 = vpop.f32.mrb[0].mxu0
        %v2849 = vadd.f32 %v607, %v2848
        %v2850 = vpop.f32.mrb[0].mxu0
        %2851 = vmatprep.mubr.f32.mxu0 0.0
        %2852 = vmatmul.mubr.f32.gmra.mrb[0].mxu0 %v2716
        %v2853 = vpop.f32.mrb[0].mxu0
        %v2854 = vadd.f32 %v607, %v2853
        %v2855 = vpop.f32.mrb[0].mxu0
        %2856 = vmatprep.mubr.f32.mxu0 0.0
        %2857 = vmatmul.mubr.f32.gmra.mrb[0].mxu0 %v2719
        %v2858 = vpop.f32.mrb[0].mxu0
        %v2859 = vadd.f32 %v607, %v2858
        %v2860 = vpop.f32.mrb[0].mxu0
        %2861 = vmatprep.mubr.f32.mxu0 0.0
        %2862 = vmatmul.mubr.f32.gmra.mrb[0].mxu0 %v2722
        %v2863 = vpop.f32.mrb[0].mxu0
        %v2864 = vadd.f32 %v607, %v2863
        %v2865 = vpop.f32.mrb[0].mxu0
        %2866 = vmatprep.mubr.f32.mxu0 0.0
        %2867 = vmatmul.mubr.f32.gmra.mrb[0].mxu0 %v2725
        %v2868 = vpop.f32.mrb[0].mxu0
        %v2869 = vadd.f32 %v607, %v2868
        %v2870 = vpop.f32.mrb[0].mxu0
        %2871 = vdwg.mxu0
        %v2872 = vmax.f32 %v2794, 0.0
        %v2873 = vmax.f32 %v2799, 0.0
        %v2874 = vmax.f32 %v2804, 0.0
        %v2875 = vmax.f32 %v2809, 0.0
        %v2876 = vmax.f32 %v2814, 0.0
        %v2877 = vmax.f32 %v2819, 0.0
        %v2878 = vmax.f32 %v2824, 0.0
        %v2879 = vmax.f32 %v2829, 0.0
        %v2880 = vmax.f32 %v2834, 0.0
        %v2881 = vmax.f32 %v2839, 0.0
        %v2882 = vmax.f32 %v2844, 0.0
        %v2883 = vmax.f32 %v2849, 0.0
        %v2884 = vmax.f32 %v2854, 0.0
        %v2885 = vmax.f32 %v2859, 0.0
        %v2886 = vmax.f32 %v2864, 0.0
        %v2887 = vmax.f32 %v2869, 0.0
        %2904 = vrot.lane.b32.xlu0 %v2104, 32
        %v2905 = vpop.permute.xlu0 %2904
        %2906 = vrot.lane.b32.xlu0 %v2105, 32
        %v2907 = vpop.permute.xlu0 %2906
        %2908 = vrot.lane.b32.xlu0 %v2106, 32
        %v2909 = vpop.permute.xlu0 %2908
        %2910 = vrot.lane.b32.xlu0 %v2107, 32
        %v2911 = vpop.permute.xlu0 %2910
        %2912 = vrot.lane.b32.xlu0 %v2108, 32
        %v2913 = vpop.permute.xlu0 %2912
        %2914 = vrot.lane.b32.xlu0 %v2109, 32
        %v2915 = vpop.permute.xlu0 %2914
        %2916 = vrot.lane.b32.xlu0 %v2110, 32
        %v2917 = vpop.permute.xlu0 %2916
        %2918 = vrot.lane.b32.xlu0 %v2111, 32
        %v2919 = vpop.permute.xlu0 %2918
        %2920 = vrot.lane.b32.xlu0 %v2112, 32
        %v2921 = vpop.permute.xlu0 %2920
        %2922 = vrot.lane.b32.xlu0 %v2113, 32
        %v2923 = vpop.permute.xlu0 %2922
        %2924 = vrot.lane.b32.xlu0 %v2114, 32
        %v2925 = vpop.permute.xlu0 %2924
        %2926 = vrot.lane.b32.xlu0 %v2115, 32
        %v2927 = vpop.permute.xlu0 %2926
        %2928 = vrot.lane.b32.xlu0 %v2116, 32
        %v2929 = vpop.permute.xlu0 %2928
        %2930 = vrot.lane.b32.xlu0 %v2117, 32
        %v2931 = vpop.permute.xlu0 %2930
        %2932 = vrot.lane.b32.xlu0 %v2118, 32
        %v2933 = vpop.permute.xlu0 %2932
        %2934 = vrot.lane.b32.xlu0 %v2119, 32
        %v2935 = vpop.permute.xlu0 %2934
        %v2952 = vsel %vm579, %v2872, %v2905
        %v2953 = vsel %vm579, %v2873, %v2907
        %v2954 = vsel %vm579, %v2874, %v2909
        %v2955 = vsel %vm579, %v2875, %v2911
        %v2956 = vsel %vm579, %v2876, %v2913
        %v2957 = vsel %vm579, %v2877, %v2915
        %v2958 = vsel %vm579, %v2878, %v2917
        %v2959 = vsel %vm579, %v2879, %v2919
        %v2960 = vsel %vm579, %v2880, %v2921
        %v2961 = vsel %vm579, %v2881, %v2923
        %v2962 = vsel %vm579, %v2882, %v2925
        %v2963 = vsel %vm579, %v2883, %v2927
        %v2964 = vsel %vm579, %v2884, %v2929
        %v2965 = vsel %vm579, %v2885, %v2931
        %v2966 = vsel %vm579, %v2886, %v2933
        %v2967 = vsel %vm579, %v2887, %v2935
        %v2968 = vld [vmem:[%s2 + $0x80] sm:$0xff]
        %v2969 = vld [vmem:[%s2 + $0x88] sm:$0xff]
        %v2970 = vld [vmem:[%s2 + $0x90] sm:$0xff]
        %v2971 = vld [vmem:[%s2 + $0x98] sm:$0xff]
        %v2972 = vld [vmem:[%s2 + $0xa0] sm:$0xff]
        %v2973 = vld [vmem:[%s2 + $0xa8] sm:$0xff]
        %v2974 = vld [vmem:[%s2 + $0xb0] sm:$0xff]
        %v2975 = vld [vmem:[%s2 + $0xb8] sm:$0xff]
        %v2977 = vsel %vm608, %v2952, 0
        %v2980 = vsel %vm608, %v2953, 0
        %v2983 = vsel %vm608, %v2954, 0
        %v2986 = vsel %vm608, %v2955, 0
        %v2989 = vsel %vm608, %v2956, 0
        %v2992 = vsel %vm608, %v2957, 0
        %v2995 = vsel %vm608, %v2958, 0
        %v2998 = vsel %vm608, %v2959, 0
        %v3001 = vsel %vm608, %v2960, 0
        %v3004 = vsel %vm608, %v2961, 0
        %v3007 = vsel %vm608, %v2962, 0
        %v3010 = vsel %vm608, %v2963, 0
        %v3013 = vsel %vm608, %v2964, 0
        %v3016 = vsel %vm608, %v2965, 0
        %v3019 = vsel %vm608, %v2966, 0
        %v3022 = vsel %vm608, %v2967, 0
        %3024 = vmatprep.subr.mxu0 0.0
        %3025 = vmatpush1.msra.mxu0 %v2968
        %3026 = vmatprep.subr.mxu0 0.0
        %3027 = vmatpush1.msra.mxu0 %v2969
        %3028 = vmatprep.subr.mxu0 0.0
        %3029 = vmatpush1.msra.mxu0 %v2970
        %3030 = vmatprep.subr.mxu0 0.0
        %3031 = vmatpush1.msra.mxu0 %v2971
        %3032 = vmatprep.subr.mxu0 0.0
        %3033 = vmatpush1.msra.mxu0 %v2972
        %3034 = vmatprep.subr.mxu0 0.0
        %3035 = vmatpush1.msra.mxu0 %v2973
        %3036 = vmatprep.subr.mxu0 0.0
        %3037 = vmatpush1.msra.mxu0 %v2974
        %3038 = vmatprep.subr.mxu0 0.0
        %3039 = vmatpush1.msra.mxu0 %v2975
        %3040 = vmatprep.subr.mxu0 0.0
        %3041 = vmatpush1.msra.mxu0 0.0
        %3042 = vmatprep.subr.mxu0 0.0
        %3043 = vmatpush1.msra.mxu0 0.0
        %3044 = vmatprep.subr.mxu0 0.0
        %3045 = vmatpush1.msra.mxu0 0.0
        %3046 = vmatprep.subr.mxu0 0.0
        %3047 = vmatpush1.msra.mxu0 0.0
        %3048 = vmatprep.subr.mxu0 0.0
        %3049 = vmatpush1.msra.mxu0 0.0
        %3050 = vmatprep.subr.mxu0 0.0
        %3051 = vmatpush1.msra.mxu0 0.0
        %3052 = vmatprep.subr.mxu0 0.0
        %3053 = vmatpush1.msra.mxu0 0.0
        %3054 = vmatprep.subr.mxu0 0.0
        %3055 = vmatpush1.msra.mxu0 0.0
        %3056 = vmatprep.subr.mxu0 0.0
        %3057 = vmatpush1.msra.mxu0 0.0
        %3058 = vmatprep.subr.mxu0 0.0
        %3059 = vmatpush1.msra.mxu0 0.0
        %3060 = vmatprep.subr.mxu0 0.0
        %3061 = vmatpush1.msra.mxu0 0.0
        %3062 = vmatprep.subr.mxu0 0.0
        %3063 = vmatpush1.msra.mxu0 0.0
        %3064 = vmatprep.subr.mxu0 0.0
        %3065 = vmatpush1.msra.mxu0 0.0
        %3066 = vmatprep.subr.mxu0 0.0
        %3067 = vmatpush1.msra.mxu0 0.0
        %3068 = vmatprep.subr.mxu0 0.0
        %3069 = vmatpush1.msra.mxu0 0.0
        %3070 = vmatprep.subr.mxu0 0.0
        %3071 = vmatpush1.msra.mxu0 0.0
        %3072 = vmatprep.subr.mxu0 0.0
        %3073 = vmatpush1.msra.mxu0 0.0
        %3074 = vmatprep.subr.mxu0 0.0
        %3075 = vmatpush1.msra.mxu0 0.0
        %3076 = vmatprep.subr.mxu0 0.0
        %3077 = vmatpush1.msra.mxu0 0.0
        %3078 = vmatprep.subr.mxu0 0.0
        %3079 = vmatpush1.msra.mxu0 0.0
        %3080 = vmatprep.subr.mxu0 0.0
        %3081 = vmatpush1.msra.mxu0 0.0
        %3082 = vmatprep.subr.mxu0 0.0
        %3083 = vmatpush1.msra.mxu0 0.0
        %3084 = vmatprep.subr.mxu0 0.0
        %3085 = vmatpush1.msra.mxu0 0.0
        %3086 = vmatprep.subr.mxu0 0.0
        %3087 = vmatpush1.msra.mxu0 0.0
        %3088 = vmatprep.mubr.f32.mxu0 0.0
        %3089 = vmatmul.mubr.f32.gmra.mrb[0].mxu0 %v2977
        %v3090 = vpop.f32.mrb[0].mxu0
        %v3091 = vadd.f32 %v845, %v3090
        %v3092 = vpop.f32.mrb[0].mxu0
        %3093 = vmatprep.mubr.f32.mxu0 0.0
        %3094 = vmatmul.mubr.f32.gmra.mrb[0].mxu0 %v2980
        %v3095 = vpop.f32.mrb[0].mxu0
        %v3096 = vadd.f32 %v845, %v3095
        %v3097 = vpop.f32.mrb[0].mxu0
        %3098 = vmatprep.mubr.f32.mxu0 0.0
        %3099 = vmatmul.mubr.f32.gmra.mrb[0].mxu0 %v2983
        %v3100 = vpop.f32.mrb[0].mxu0
        %v3101 = vadd.f32 %v845, %v3100
        %v3102 = vpop.f32.mrb[0].mxu0
        %3103 = vmatprep.mubr.f32.mxu0 0.0
        %3104 = vmatmul.mubr.f32.gmra.mrb[0].mxu0 %v2986
        %v3105 = vpop.f32.mrb[0].mxu0
        %v3106 = vadd.f32 %v845, %v3105
        %v3107 = vpop.f32.mrb[0].mxu0
        %3108 = vmatprep.mubr.f32.mxu0 0.0
        %3109 = vmatmul.mubr.f32.gmra.mrb[0].mxu0 %v2989
        %v3110 = vpop.f32.mrb[0].mxu0
        %v3111 = vadd.f32 %v845, %v3110
        %v3112 = vpop.f32.mrb[0].mxu0
        %3113 = vmatprep.mubr.f32.mxu0 0.0
        %3114 = vmatmul.mubr.f32.gmra.mrb[0].mxu0 %v2992
        %v3115 = vpop.f32.mrb[0].mxu0
        %v3116 = vadd.f32 %v845, %v3115
        %v3117 = vpop.f32.mrb[0].mxu0
        %3118 = vmatprep.mubr.f32.mxu0 0.0
        %3119 = vmatmul.mubr.f32.gmra.mrb[0].mxu0 %v2995
        %v3120 = vpop.f32.mrb[0].mxu0
        %v3121 = vadd.f32 %v845, %v3120
        %v3122 = vpop.f32.mrb[0].mxu0
        %3123 = vmatprep.mubr.f32.mxu0 0.0
        %3124 = vmatmul.mubr.f32.gmra.mrb[0].mxu0 %v2998
        %v3125 = vpop.f32.mrb[0].mxu0
        %v3126 = vadd.f32 %v845, %v3125
        %v3127 = vpop.f32.mrb[0].mxu0
        %3128 = vmatprep.mubr.f32.mxu0 0.0
        %3129 = vmatmul.mubr.f32.gmra.mrb[0].mxu0 %v3001
        %v3130 = vpop.f32.mrb[0].mxu0
        %v3131 = vadd.f32 %v845, %v3130
        %v3132 = vpop.f32.mrb[0].mxu0
        %3133 = vmatprep.mubr.f32.mxu0 0.0
        %3134 = vmatmul.mubr.f32.gmra.mrb[0].mxu0 %v3004
        %v3135 = vpop.f32.mrb[0].mxu0
        %v3136 = vadd.f32 %v845, %v3135
        %v3137 = vpop.f32.mrb[0].mxu0
        %3138 = vmatprep.mubr.f32.mxu0 0.0
        %3139 = vmatmul.mubr.f32.gmra.mrb[0].mxu0 %v3007
        %v3140 = vpop.f32.mrb[0].mxu0
        %v3141 = vadd.f32 %v845, %v3140
        %v3142 = vpop.f32.mrb[0].mxu0
        %3143 = vmatprep.mubr.f32.mxu0 0.0
        %3144 = vmatmul.mubr.f32.gmra.mrb[0].mxu0 %v3010
        %v3145 = vpop.f32.mrb[0].mxu0
        %v3146 = vadd.f32 %v845, %v3145
        %v3147 = vpop.f32.mrb[0].mxu0
        %3148 = vmatprep.mubr.f32.mxu0 0.0
        %3149 = vmatmul.mubr.f32.gmra.mrb[0].mxu0 %v3013
        %v3150 = vpop.f32.mrb[0].mxu0
        %v3151 = vadd.f32 %v845, %v3150
        %v3152 = vpop.f32.mrb[0].mxu0
        %3153 = vmatprep.mubr.f32.mxu0 0.0
        %3154 = vmatmul.mubr.f32.gmra.mrb[0].mxu0 %v3016
        %v3155 = vpop.f32.mrb[0].mxu0
        %v3156 = vadd.f32 %v845, %v3155
        %v3157 = vpop.f32.mrb[0].mxu0
        %3158 = vmatprep.mubr.f32.mxu0 0.0
        %3159 = vmatmul.mubr.f32.gmra.mrb[0].mxu0 %v3019
        %v3160 = vpop.f32.mrb[0].mxu0
        %v3161 = vadd.f32 %v845, %v3160
        %v3162 = vpop.f32.mrb[0].mxu0
        %3163 = vmatprep.mubr.f32.mxu0 0.0
        %3164 = vmatmul.mubr.f32.gmra.mrb[0].mxu0 %v3022
        %v3165 = vpop.f32.mrb[0].mxu0
        %v3166 = vadd.f32 %v845, %v3165
        %v3167 = vpop.f32.mrb[0].mxu0
        %3168 = vdwg.mxu0
        %v3169 = vmax.f32 %v3091, 0.0
        %v3170 = vmax.f32 %v3096, 0.0
        %v3171 = vmax.f32 %v3101, 0.0
        %v3172 = vmax.f32 %v3106, 0.0
        %v3173 = vmax.f32 %v3111, 0.0
        %v3174 = vmax.f32 %v3116, 0.0
        %v3175 = vmax.f32 %v3121, 0.0
        %v3176 = vmax.f32 %v3126, 0.0
        %v3177 = vmax.f32 %v3131, 0.0
        %v3178 = vmax.f32 %v3136, 0.0
        %v3179 = vmax.f32 %v3141, 0.0
        %v3180 = vmax.f32 %v3146, 0.0
        %v3181 = vmax.f32 %v3151, 0.0
        %v3182 = vmax.f32 %v3156, 0.0
        %v3183 = vmax.f32 %v3161, 0.0
        %v3184 = vmax.f32 %v3166, 0.0
        %3201 = vrot.lane.b32.xlu0 %v3091, 96
        %v3202 = vpop.permute.xlu0 %3201
        %3203 = vrot.lane.b32.xlu0 %v3096, 96
        %v3204 = vpop.permute.xlu0 %3203
        %3205 = vrot.lane.b32.xlu0 %v3101, 96
        %v3206 = vpop.permute.xlu0 %3205
        %3207 = vrot.lane.b32.xlu0 %v3106, 96
        %v3208 = vpop.permute.xlu0 %3207
        %3209 = vrot.lane.b32.xlu0 %v3111, 96
        %v3210 = vpop.permute.xlu0 %3209
        %3211 = vrot.lane.b32.xlu0 %v3116, 96
        %v3212 = vpop.permute.xlu0 %3211
        %3213 = vrot.lane.b32.xlu0 %v3121, 96
        %v3214 = vpop.permute.xlu0 %3213
        %3215 = vrot.lane.b32.xlu0 %v3126, 96
        %v3216 = vpop.permute.xlu0 %3215
        %3217 = vrot.lane.b32.xlu0 %v3131, 96
        %v3218 = vpop.permute.xlu0 %3217
        %3219 = vrot.lane.b32.xlu0 %v3136, 96
        %v3220 = vpop.permute.xlu0 %3219
        %3221 = vrot.lane.b32.xlu0 %v3141, 96
        %v3222 = vpop.permute.xlu0 %3221
        %3223 = vrot.lane.b32.xlu0 %v3146, 96
        %v3224 = vpop.permute.xlu0 %3223
        %3225 = vrot.lane.b32.xlu0 %v3151, 96
        %v3226 = vpop.permute.xlu0 %3225
        %3227 = vrot.lane.b32.xlu0 %v3156, 96
        %v3228 = vpop.permute.xlu0 %3227
        %3229 = vrot.lane.b32.xlu0 %v3161, 96
        %v3230 = vpop.permute.xlu0 %3229
        %3231 = vrot.lane.b32.xlu0 %v3166, 96
        %v3232 = vpop.permute.xlu0 %3231
        %v3249 = vadd.f32 %v2184, %v3202
        %v3250 = vadd.f32 %v2185, %v3204
        %v3251 = vadd.f32 %v2186, %v3206
        %v3252 = vadd.f32 %v2187, %v3208
        %v3253 = vadd.f32 %v2188, %v3210
        %v3254 = vadd.f32 %v2189, %v3212
        %v3255 = vadd.f32 %v2190, %v3214
        %v3256 = vadd.f32 %v2191, %v3216
        %v3257 = vadd.f32 %v2192, %v3218
        %v3258 = vadd.f32 %v2193, %v3220
        %v3259 = vadd.f32 %v2194, %v3222
        %v3260 = vadd.f32 %v2195, %v3224
        %v3261 = vadd.f32 %v2196, %v3226
        %v3262 = vadd.f32 %v2197, %v3228
        %v3263 = vadd.f32 %v2198, %v3230
        %v3264 = vadd.f32 %v2199, %v3232
        %v3265 = vmax.f32 %v3249, 0.0
        %v3266 = vmax.f32 %v3250, 0.0
        %v3267 = vmax.f32 %v3251, 0.0
        %v3268 = vmax.f32 %v3252, 0.0
        %v3269 = vmax.f32 %v3253, 0.0
        %v3270 = vmax.f32 %v3254, 0.0
        %v3271 = vmax.f32 %v3255, 0.0
        %v3272 = vmax.f32 %v3256, 0.0
        %v3273 = vmax.f32 %v3257, 0.0
        %v3274 = vmax.f32 %v3258, 0.0
        %v3275 = vmax.f32 %v3259, 0.0
        %v3276 = vmax.f32 %v3260, 0.0
        %v3277 = vmax.f32 %v3261, 0.0
        %v3278 = vmax.f32 %v3262, 0.0
        %v3279 = vmax.f32 %v3263, 0.0
        %v3280 = vmax.f32 %v3264, 0.0
        %v3281 = vmin.f32 %v3265, 1.0
        %v3282 = vmin.f32 %v3266, 1.0
        %v3283 = vmin.f32 %v3267, 1.0
        %v3284 = vmin.f32 %v3268, 1.0
        %v3285 = vmin.f32 %v3269, 1.0
        %v3286 = vmin.f32 %v3270, 1.0
        %v3287 = vmin.f32 %v3271, 1.0
        %v3288 = vmin.f32 %v3272, 1.0
        %v3289 = vmin.f32 %v3273, 1.0
        %v3290 = vmin.f32 %v3274, 1.0
        %v3291 = vmin.f32 %v3275, 1.0
        %v3292 = vmin.f32 %v3276, 1.0
        %v3293 = vmin.f32 %v3277, 1.0
        %v3294 = vmin.f32 %v3278, 1.0
        %v3295 = vmin.f32 %v3279, 1.0
        %v3296 = vmin.f32 %v3280, 1.0
        %s3297 = scalar_lea.vmem %s258, 384 [#allocation2]
        %3298 = vst.msk [vmem:[%s3297] sm:$0xff] %vm327, %v3281
        %3299 = vst.msk [vmem:[%s3297 + $0x8] sm:$0xff] %vm327, %v3282
        %3300 = vst.msk [vmem:[%s3297 + $0x10] sm:$0xff] %vm327, %v3283
        %3301 = vst.msk [vmem:[%s3297 + $0x18] sm:$0xff] %vm327, %v3284
        %3302 = vst.msk [vmem:[%s3297 + $0x20] sm:$0xff] %vm327, %v3285
        %3303 = vst.msk [vmem:[%s3297 + $0x28] sm:$0xff] %vm327, %v3286
        %3304 = vst.msk [vmem:[%s3297 + $0x30] sm:$0xff] %vm327, %v3287
        %3305 = vst.msk [vmem:[%s3297 + $0x38] sm:$0xff] %vm327, %v3288
        %3306 = vst.msk [vmem:[%s3297 + $0x40] sm:$0xff] %vm327, %v3289
        %3307 = vst.msk [vmem:[%s3297 + $0x48] sm:$0xff] %vm327, %v3290
        %3308 = vst.msk [vmem:[%s3297 + $0x50] sm:$0xff] %vm327, %v3291
        %3309 = vst.msk [vmem:[%s3297 + $0x58] sm:$0xff] %vm327, %v3292
        %3310 = vst.msk [vmem:[%s3297 + $0x60] sm:$0xff] %vm327, %v3293
        %3311 = vst.msk [vmem:[%s3297 + $0x68] sm:$0xff] %vm327, %v3294
        %3312 = vst.msk [vmem:[%s3297 + $0x70] sm:$0xff] %vm327, %v3295
        %3313 = vst.msk [vmem:[%s3297 + $0x78] sm:$0xff] %vm327, %v3296
        %v3314 = vsub.f32 %v3281, %v308
        %v3315 = vsub.f32 %v3282, %v309
        %v3316 = vsub.f32 %v3283, %v310
        %v3317 = vsub.f32 %v3284, %v311
        %v3318 = vsub.f32 %v3285, %v312
        %v3319 = vsub.f32 %v3286, %v313
        %v3320 = vsub.f32 %v3287, %v314
        %v3321 = vsub.f32 %v3288, %v315
        %v3322 = vsub.f32 %v3289, %v316
        %v3323 = vsub.f32 %v3290, %v317
        %v3324 = vsub.f32 %v3291, %v318
        %v3325 = vsub.f32 %v3292, %v319
        %v3326 = vsub.f32 %v3293, %v320
        %v3327 = vsub.f32 %v3294, %v321
        %v3328 = vsub.f32 %v3295, %v322
        %v3329 = vsub.f32 %v3296, %v323
        %v3330 = vmul.f32 %v3314, %v3314
        %v3331 = vmul.f32 %v3315, %v3315
        %v3332 = vmul.f32 %v3316, %v3316
        %v3333 = vmul.f32 %v3317, %v3317
        %v3334 = vmul.f32 %v3318, %v3318
        %v3335 = vmul.f32 %v3319, %v3319
        %v3336 = vmul.f32 %v3320, %v3320
        %v3337 = vmul.f32 %v3321, %v3321
        %v3338 = vmul.f32 %v3322, %v3322
        %v3339 = vmul.f32 %v3323, %v3323
        %v3340 = vmul.f32 %v3324, %v3324
        %v3341 = vmul.f32 %v3325, %v3325
        %v3342 = vmul.f32 %v3326, %v3326
        %v3343 = vmul.f32 %v3327, %v3327
        %v3344 = vmul.f32 %v3328, %v3328
        %v3345 = vmul.f32 %v3329, %v3329
        %v3346 = vadd.f32 %v2281, %v3330
        %v3347 = vadd.f32 %v2282, %v3331
        %v3348 = vadd.f32 %v2283, %v3332
        %v3349 = vadd.f32 %v2284, %v3333
        %v3350 = vadd.f32 %v2285, %v3334
        %v3351 = vadd.f32 %v2286, %v3335
        %v3352 = vadd.f32 %v2287, %v3336
        %v3353 = vadd.f32 %v2288, %v3337
        %v3354 = vadd.f32 %v2289, %v3338
        %v3355 = vadd.f32 %v2290, %v3339
        %v3356 = vadd.f32 %v2291, %v3340
        %v3357 = vadd.f32 %v2292, %v3341
        %v3358 = vadd.f32 %v2293, %v3342
        %v3359 = vadd.f32 %v2294, %v3343
        %v3360 = vadd.f32 %v2295, %v3344
        %v3361 = vadd.f32 %v2296, %v3345
        %3378 = vrot.lane.b32.xlu0 %v2575, 8
        %v3379 = vpop.permute.xlu0 %3378
        %3380 = vrot.lane.b32.xlu0 %v2576, 8
        %v3381 = vpop.permute.xlu0 %3380
        %3382 = vrot.lane.b32.xlu0 %v2577, 8
        %v3383 = vpop.permute.xlu0 %3382
        %3384 = vrot.lane.b32.xlu0 %v2578, 8
        %v3385 = vpop.permute.xlu0 %3384
        %3386 = vrot.lane.b32.xlu0 %v2579, 8
        %v3387 = vpop.permute.xlu0 %3386
        %3388 = vrot.lane.b32.xlu0 %v2580, 8
        %v3389 = vpop.permute.xlu0 %3388
        %3390 = vrot.lane.b32.xlu0 %v2581, 8
        %v3391 = vpop.permute.xlu0 %3390
        %3392 = vrot.lane.b32.xlu0 %v2582, 8
        %v3393 = vpop.permute.xlu0 %3392
        %3394 = vrot.lane.b32.xlu0 %v2583, 8
        %v3395 = vpop.permute.xlu0 %3394
        %3396 = vrot.lane.b32.xlu0 %v2584, 8
        %v3397 = vpop.permute.xlu0 %3396
        %3398 = vrot.lane.b32.xlu0 %v2585, 8
        %v3399 = vpop.permute.xlu0 %3398
        %3400 = vrot.lane.b32.xlu0 %v2586, 8
        %v3401 = vpop.permute.xlu0 %3400
        %3402 = vrot.lane.b32.xlu0 %v2587, 8
        %v3403 = vpop.permute.xlu0 %3402
        %3404 = vrot.lane.b32.xlu0 %v2588, 8
        %v3405 = vpop.permute.xlu0 %3404
        %3406 = vrot.lane.b32.xlu0 %v2589, 8
        %v3407 = vpop.permute.xlu0 %3406
        %3408 = vrot.lane.b32.xlu0 %v2590, 8
        %v3409 = vpop.permute.xlu0 %3408
        %v3426 = vsel %vm327, %v3249, %v3379
        %v3427 = vsel %vm327, %v3250, %v3381
        %v3428 = vsel %vm327, %v3251, %v3383
        %v3429 = vsel %vm327, %v3252, %v3385
        %v3430 = vsel %vm327, %v3253, %v3387
        %v3431 = vsel %vm327, %v3254, %v3389
        %v3432 = vsel %vm327, %v3255, %v3391
        %v3433 = vsel %vm327, %v3256, %v3393
        %v3434 = vsel %vm327, %v3257, %v3395
        %v3435 = vsel %vm327, %v3258, %v3397
        %v3436 = vsel %vm327, %v3259, %v3399
        %v3437 = vsel %vm327, %v3260, %v3401
        %v3438 = vsel %vm327, %v3261, %v3403
        %v3439 = vsel %vm327, %v3262, %v3405
        %v3440 = vsel %vm327, %v3263, %v3407
        %v3441 = vsel %vm327, %v3264, %v3409
        %v3442 = vld [vmem:[%s2] sm:$0xff]
        %v3443 = vld [vmem:[%s2 + $0x8] sm:$0xff]
        %v3444 = vld [vmem:[%s2 + $0x10] sm:$0xff]
        %v3445 = vld [vmem:[%s2 + $0x18] sm:$0xff]
        %v3446 = vld [vmem:[%s2 + $0x20] sm:$0xff]
        %v3448 = vsel %vm369, %v3426, 0
        %v3451 = vsel %vm369, %v3427, 0
        %v3454 = vsel %vm369, %v3428, 0
        %v3457 = vsel %vm369, %v3429, 0
        %v3460 = vsel %vm369, %v3430, 0
        %v3463 = vsel %vm369, %v3431, 0
        %v3466 = vsel %vm369, %v3432, 0
        %v3469 = vsel %vm369, %v3433, 0
        %v3472 = vsel %vm369, %v3434, 0
        %v3475 = vsel %vm369, %v3435, 0
        %v3478 = vsel %vm369, %v3436, 0
        %v3481 = vsel %vm369, %v3437, 0
        %v3484 = vsel %vm369, %v3438, 0
        %v3487 = vsel %vm369, %v3439, 0
        %v3490 = vsel %vm369, %v3440, 0
        %v3493 = vsel %vm369, %v3441, 0
        %3495 = vmatprep.subr.mxu0 0.0
        %3496 = vmatpush1.msra.mxu0 %v3442
        %3497 = vmatprep.subr.mxu0 0.0
        %3498 = vmatpush1.msra.mxu0 %v3443
        %3499 = vmatprep.subr.mxu0 0.0
        %3500 = vmatpush1.msra.mxu0 %v3444
        %3501 = vmatprep.subr.mxu0 0.0
        %3502 = vmatpush1.msra.mxu0 %v3445
        %3503 = vmatprep.subr.mxu0 0.0
        %3504 = vmatpush1.msra.mxu0 %v3446
        %3505 = vmatprep.subr.mxu0 0.0
        %3506 = vmatpush1.msra.mxu0 0.0
        %3507 = vmatprep.subr.mxu0 0.0
        %3508 = vmatpush1.msra.mxu0 0.0
        %3509 = vmatprep.subr.mxu0 0.0
        %3510 = vmatpush1.msra.mxu0 0.0
        %3511 = vmatprep.subr.mxu0 0.0
        %3512 = vmatpush1.msra.mxu0 0.0
        %3513 = vmatprep.subr.mxu0 0.0
        %3514 = vmatpush1.msra.mxu0 0.0
        %3515 = vmatprep.subr.mxu0 0.0
        %3516 = vmatpush1.msra.mxu0 0.0
        %3517 = vmatprep.subr.mxu0 0.0
        %3518 = vmatpush1.msra.mxu0 0.0
        %3519 = vmatprep.subr.mxu0 0.0
        %3520 = vmatpush1.msra.mxu0 0.0
        %3521 = vmatprep.subr.mxu0 0.0
        %3522 = vmatpush1.msra.mxu0 0.0
        %3523 = vmatprep.subr.mxu0 0.0
        %3524 = vmatpush1.msra.mxu0 0.0
        %3525 = vmatprep.subr.mxu0 0.0
        %3526 = vmatpush1.msra.mxu0 0.0
        %3527 = vmatprep.subr.mxu0 0.0
        %3528 = vmatpush1.msra.mxu0 0.0
        %3529 = vmatprep.subr.mxu0 0.0
        %3530 = vmatpush1.msra.mxu0 0.0
        %3531 = vmatprep.subr.mxu0 0.0
        %3532 = vmatpush1.msra.mxu0 0.0
        %3533 = vmatprep.subr.mxu0 0.0
        %3534 = vmatpush1.msra.mxu0 0.0
        %3535 = vmatprep.subr.mxu0 0.0
        %3536 = vmatpush1.msra.mxu0 0.0
        %3537 = vmatprep.subr.mxu0 0.0
        %3538 = vmatpush1.msra.mxu0 0.0
        %3539 = vmatprep.subr.mxu0 0.0
        %3540 = vmatpush1.msra.mxu0 0.0
        %3541 = vmatprep.subr.mxu0 0.0
        %3542 = vmatpush1.msra.mxu0 0.0
        %3543 = vmatprep.subr.mxu0 0.0
        %3544 = vmatpush1.msra.mxu0 0.0
        %3545 = vmatprep.subr.mxu0 0.0
        %3546 = vmatpush1.msra.mxu0 0.0
        %3547 = vmatprep.subr.mxu0 0.0
        %3548 = vmatpush1.msra.mxu0 0.0
        %3549 = vmatprep.subr.mxu0 0.0
        %3550 = vmatpush1.msra.mxu0 0.0
        %3551 = vmatprep.subr.mxu0 0.0
        %3552 = vmatpush1.msra.mxu0 0.0
        %3553 = vmatprep.subr.mxu0 0.0
        %3554 = vmatpush1.msra.mxu0 0.0
        %3555 = vmatprep.subr.mxu0 0.0
        %3556 = vmatpush1.msra.mxu0 0.0
        %3557 = vmatprep.subr.mxu0 0.0
        %3558 = vmatpush1.msra.mxu0 0.0
        %3559 = vmatprep.mubr.f32.mxu0 0.0
        %3560 = vmatmul.mubr.f32.gmra.mrb[0].mxu0 %v3448
        %v3561 = vpop.f32.mrb[0].mxu0
        %v3562 = vadd.f32 %v368, %v3561
        %v3563 = vpop.f32.mrb[0].mxu0
        %3564 = vmatprep.mubr.f32.mxu0 0.0
        %3565 = vmatmul.mubr.f32.gmra.mrb[0].mxu0 %v3451
        %v3566 = vpop.f32.mrb[0].mxu0
        %v3567 = vadd.f32 %v368, %v3566
        %v3568 = vpop.f32.mrb[0].mxu0
        %3569 = vmatprep.mubr.f32.mxu0 0.0
        %3570 = vmatmul.mubr.f32.gmra.mrb[0].mxu0 %v3454
        %v3571 = vpop.f32.mrb[0].mxu0
        %v3572 = vadd.f32 %v368, %v3571
        %v3573 = vpop.f32.mrb[0].mxu0
        %3574 = vmatprep.mubr.f32.mxu0 0.0
        %3575 = vmatmul.mubr.f32.gmra.mrb[0].mxu0 %v3457
        %v3576 = vpop.f32.mrb[0].mxu0
        %v3577 = vadd.f32 %v368, %v3576
        %v3578 = vpop.f32.mrb[0].mxu0
        %3579 = vmatprep.mubr.f32.mxu0 0.0
        %3580 = vmatmul.mubr.f32.gmra.mrb[0].mxu0 %v3460
        %v3581 = vpop.f32.mrb[0].mxu0
        %v3582 = vadd.f32 %v368, %v3581
        %v3583 = vpop.f32.mrb[0].mxu0
        %3584 = vmatprep.mubr.f32.mxu0 0.0
        %3585 = vmatmul.mubr.f32.gmra.mrb[0].mxu0 %v3463
        %v3586 = vpop.f32.mrb[0].mxu0
        %v3587 = vadd.f32 %v368, %v3586
        %v3588 = vpop.f32.mrb[0].mxu0
        %3589 = vmatprep.mubr.f32.mxu0 0.0
        %3590 = vmatmul.mubr.f32.gmra.mrb[0].mxu0 %v3466
        %v3591 = vpop.f32.mrb[0].mxu0
        %v3592 = vadd.f32 %v368, %v3591
        %v3593 = vpop.f32.mrb[0].mxu0
        %3594 = vmatprep.mubr.f32.mxu0 0.0
        %3595 = vmatmul.mubr.f32.gmra.mrb[0].mxu0 %v3469
        %v3596 = vpop.f32.mrb[0].mxu0
        %v3597 = vadd.f32 %v368, %v3596
        %v3598 = vpop.f32.mrb[0].mxu0
        %3599 = vmatprep.mubr.f32.mxu0 0.0
        %3600 = vmatmul.mubr.f32.gmra.mrb[0].mxu0 %v3472
        %v3601 = vpop.f32.mrb[0].mxu0
        %v3602 = vadd.f32 %v368, %v3601
        %v3603 = vpop.f32.mrb[0].mxu0
        %3604 = vmatprep.mubr.f32.mxu0 0.0
        %3605 = vmatmul.mubr.f32.gmra.mrb[0].mxu0 %v3475
        %v3606 = vpop.f32.mrb[0].mxu0
        %v3607 = vadd.f32 %v368, %v3606
        %v3608 = vpop.f32.mrb[0].mxu0
        %3609 = vmatprep.mubr.f32.mxu0 0.0
        %3610 = vmatmul.mubr.f32.gmra.mrb[0].mxu0 %v3478
        %v3611 = vpop.f32.mrb[0].mxu0
        %v3612 = vadd.f32 %v368, %v3611
        %v3613 = vpop.f32.mrb[0].mxu0
        %3614 = vmatprep.mubr.f32.mxu0 0.0
        %3615 = vmatmul.mubr.f32.gmra.mrb[0].mxu0 %v3481
        %v3616 = vpop.f32.mrb[0].mxu0
        %v3617 = vadd.f32 %v368, %v3616
        %v3618 = vpop.f32.mrb[0].mxu0
        %3619 = vmatprep.mubr.f32.mxu0 0.0
        %3620 = vmatmul.mubr.f32.gmra.mrb[0].mxu0 %v3484
        %v3621 = vpop.f32.mrb[0].mxu0
        %v3622 = vadd.f32 %v368, %v3621
        %v3623 = vpop.f32.mrb[0].mxu0
        %3624 = vmatprep.mubr.f32.mxu0 0.0
        %3625 = vmatmul.mubr.f32.gmra.mrb[0].mxu0 %v3487
        %v3626 = vpop.f32.mrb[0].mxu0
        %v3627 = vadd.f32 %v368, %v3626
        %v3628 = vpop.f32.mrb[0].mxu0
        %3629 = vmatprep.mubr.f32.mxu0 0.0
        %3630 = vmatmul.mubr.f32.gmra.mrb[0].mxu0 %v3490
        %v3631 = vpop.f32.mrb[0].mxu0
        %v3632 = vadd.f32 %v368, %v3631
        %v3633 = vpop.f32.mrb[0].mxu0
        %3634 = vmatprep.mubr.f32.mxu0 0.0
        %3635 = vmatmul.mubr.f32.gmra.mrb[0].mxu0 %v3493
        %v3636 = vpop.f32.mrb[0].mxu0
        %v3637 = vadd.f32 %v368, %v3636
        %v3638 = vpop.f32.mrb[0].mxu0
        %3639 = vdwg.mxu0
        %v3640 = vmax.f32 %v3562, 0.0
        %v3641 = vmax.f32 %v3567, 0.0
        %v3642 = vmax.f32 %v3572, 0.0
        %v3643 = vmax.f32 %v3577, 0.0
        %v3644 = vmax.f32 %v3582, 0.0
        %v3645 = vmax.f32 %v3587, 0.0
        %v3646 = vmax.f32 %v3592, 0.0
        %v3647 = vmax.f32 %v3597, 0.0
        %v3648 = vmax.f32 %v3602, 0.0
        %v3649 = vmax.f32 %v3607, 0.0
        %v3650 = vmax.f32 %v3612, 0.0
        %v3651 = vmax.f32 %v3617, 0.0
        %v3652 = vmax.f32 %v3622, 0.0
        %v3653 = vmax.f32 %v3627, 0.0
        %v3654 = vmax.f32 %v3632, 0.0
        %v3655 = vmax.f32 %v3637, 0.0
        %3672 = vrot.lane.b32.xlu0 %v2872, 32
        %v3673 = vpop.permute.xlu0 %3672
        %3674 = vrot.lane.b32.xlu0 %v2873, 32
        %v3675 = vpop.permute.xlu0 %3674
        %3676 = vrot.lane.b32.xlu0 %v2874, 32
        %v3677 = vpop.permute.xlu0 %3676
        %3678 = vrot.lane.b32.xlu0 %v2875, 32
        %v3679 = vpop.permute.xlu0 %3678
        %3680 = vrot.lane.b32.xlu0 %v2876, 32
        %v3681 = vpop.permute.xlu0 %3680
        %3682 = vrot.lane.b32.xlu0 %v2877, 32
        %v3683 = vpop.permute.xlu0 %3682
        %3684 = vrot.lane.b32.xlu0 %v2878, 32
        %v3685 = vpop.permute.xlu0 %3684
        %3686 = vrot.lane.b32.xlu0 %v2879, 32
        %v3687 = vpop.permute.xlu0 %3686
        %3688 = vrot.lane.b32.xlu0 %v2880, 32
        %v3689 = vpop.permute.xlu0 %3688
        %3690 = vrot.lane.b32.xlu0 %v2881, 32
        %v3691 = vpop.permute.xlu0 %3690
        %3692 = vrot.lane.b32.xlu0 %v2882, 32
        %v3693 = vpop.permute.xlu0 %3692
        %3694 = vrot.lane.b32.xlu0 %v2883, 32
        %v3695 = vpop.permute.xlu0 %3694
        %3696 = vrot.lane.b32.xlu0 %v2884, 32
        %v3697 = vpop.permute.xlu0 %3696
        %3698 = vrot.lane.b32.xlu0 %v2885, 32
        %v3699 = vpop.permute.xlu0 %3698
        %3700 = vrot.lane.b32.xlu0 %v2886, 32
        %v3701 = vpop.permute.xlu0 %3700
        %3702 = vrot.lane.b32.xlu0 %v2887, 32
        %v3703 = vpop.permute.xlu0 %3702
        %v3720 = vsel %vm579, %v3640, %v3673
        %v3721 = vsel %vm579, %v3641, %v3675
        %v3722 = vsel %vm579, %v3642, %v3677
        %v3723 = vsel %vm579, %v3643, %v3679
        %v3724 = vsel %vm579, %v3644, %v3681
        %v3725 = vsel %vm579, %v3645, %v3683
        %v3726 = vsel %vm579, %v3646, %v3685
        %v3727 = vsel %vm579, %v3647, %v3687
        %v3728 = vsel %vm579, %v3648, %v3689
        %v3729 = vsel %vm579, %v3649, %v3691
        %v3730 = vsel %vm579, %v3650, %v3693
        %v3731 = vsel %vm579, %v3651, %v3695
        %v3732 = vsel %vm579, %v3652, %v3697
        %v3733 = vsel %vm579, %v3653, %v3699
        %v3734 = vsel %vm579, %v3654, %v3701
        %v3735 = vsel %vm579, %v3655, %v3703
        %v3736 = vld [vmem:[%s2 + $0x40] sm:$0xff]
        %v3737 = vld [vmem:[%s2 + $0x48] sm:$0xff]
        %v3738 = vld [vmem:[%s2 + $0x50] sm:$0xff]
        %v3739 = vld [vmem:[%s2 + $0x58] sm:$0xff]
        %v3740 = vld [vmem:[%s2 + $0x60] sm:$0xff]
        %v3741 = vld [vmem:[%s2 + $0x68] sm:$0xff]
        %v3742 = vld [vmem:[%s2 + $0x70] sm:$0xff]
        %v3743 = vld [vmem:[%s2 + $0x78] sm:$0xff]
        %v3745 = vsel %vm608, %v3720, 0
        %v3748 = vsel %vm608, %v3721, 0
        %v3751 = vsel %vm608, %v3722, 0
        %v3754 = vsel %vm608, %v3723, 0
        %v3757 = vsel %vm608, %v3724, 0
        %v3760 = vsel %vm608, %v3725, 0
        %v3763 = vsel %vm608, %v3726, 0
        %v3766 = vsel %vm608, %v3727, 0
        %v3769 = vsel %vm608, %v3728, 0
        %v3772 = vsel %vm608, %v3729, 0
        %v3775 = vsel %vm608, %v3730, 0
        %v3778 = vsel %vm608, %v3731, 0
        %v3781 = vsel %vm608, %v3732, 0
        %v3784 = vsel %vm608, %v3733, 0
        %v3787 = vsel %vm608, %v3734, 0
        %v3790 = vsel %vm608, %v3735, 0
        %3792 = vmatprep.subr.mxu0 0.0
        %3793 = vmatpush1.msra.mxu0 %v3736
        %3794 = vmatprep.subr.mxu0 0.0
        %3795 = vmatpush1.msra.mxu0 %v3737
        %3796 = vmatprep.subr.mxu0 0.0
        %3797 = vmatpush1.msra.mxu0 %v3738
        %3798 = vmatprep.subr.mxu0 0.0
        %3799 = vmatpush1.msra.mxu0 %v3739
        %3800 = vmatprep.subr.mxu0 0.0
        %3801 = vmatpush1.msra.mxu0 %v3740
        %3802 = vmatprep.subr.mxu0 0.0
        %3803 = vmatpush1.msra.mxu0 %v3741
        %3804 = vmatprep.subr.mxu0 0.0
        %3805 = vmatpush1.msra.mxu0 %v3742
        %3806 = vmatprep.subr.mxu0 0.0
        %3807 = vmatpush1.msra.mxu0 %v3743
        %3808 = vmatprep.subr.mxu0 0.0
        %3809 = vmatpush1.msra.mxu0 0.0
        %3810 = vmatprep.subr.mxu0 0.0
        %3811 = vmatpush1.msra.mxu0 0.0
        %3812 = vmatprep.subr.mxu0 0.0
        %3813 = vmatpush1.msra.mxu0 0.0
        %3814 = vmatprep.subr.mxu0 0.0
        %3815 = vmatpush1.msra.mxu0 0.0
        %3816 = vmatprep.subr.mxu0 0.0
        %3817 = vmatpush1.msra.mxu0 0.0
        %3818 = vmatprep.subr.mxu0 0.0
        %3819 = vmatpush1.msra.mxu0 0.0
        %3820 = vmatprep.subr.mxu0 0.0
        %3821 = vmatpush1.msra.mxu0 0.0
        %3822 = vmatprep.subr.mxu0 0.0
        %3823 = vmatpush1.msra.mxu0 0.0
        %3824 = vmatprep.subr.mxu0 0.0
        %3825 = vmatpush1.msra.mxu0 0.0
        %3826 = vmatprep.subr.mxu0 0.0
        %3827 = vmatpush1.msra.mxu0 0.0
        %3828 = vmatprep.subr.mxu0 0.0
        %3829 = vmatpush1.msra.mxu0 0.0
        %3830 = vmatprep.subr.mxu0 0.0
        %3831 = vmatpush1.msra.mxu0 0.0
        %3832 = vmatprep.subr.mxu0 0.0
        %3833 = vmatpush1.msra.mxu0 0.0
        %3834 = vmatprep.subr.mxu0 0.0
        %3835 = vmatpush1.msra.mxu0 0.0
        %3836 = vmatprep.subr.mxu0 0.0
        %3837 = vmatpush1.msra.mxu0 0.0
        %3838 = vmatprep.subr.mxu0 0.0
        %3839 = vmatpush1.msra.mxu0 0.0
        %3840 = vmatprep.subr.mxu0 0.0
        %3841 = vmatpush1.msra.mxu0 0.0
        %3842 = vmatprep.subr.mxu0 0.0
        %3843 = vmatpush1.msra.mxu0 0.0
        %3844 = vmatprep.subr.mxu0 0.0
        %3845 = vmatpush1.msra.mxu0 0.0
        %3846 = vmatprep.subr.mxu0 0.0
        %3847 = vmatpush1.msra.mxu0 0.0
        %3848 = vmatprep.subr.mxu0 0.0
        %3849 = vmatpush1.msra.mxu0 0.0
        %3850 = vmatprep.subr.mxu0 0.0
        %3851 = vmatpush1.msra.mxu0 0.0
        %3852 = vmatprep.subr.mxu0 0.0
        %3853 = vmatpush1.msra.mxu0 0.0
        %3854 = vmatprep.subr.mxu0 0.0
        %3855 = vmatpush1.msra.mxu0 0.0
        %3856 = vmatprep.mubr.f32.mxu0 0.0
        %3857 = vmatmul.mubr.f32.gmra.mrb[0].mxu0 %v3745
        %v3858 = vpop.f32.mrb[0].mxu0
        %v3859 = vadd.f32 %v607, %v3858
        %v3860 = vpop.f32.mrb[0].mxu0
        %3861 = vmatprep.mubr.f32.mxu0 0.0
        %3862 = vmatmul.mubr.f32.gmra.mrb[0].mxu0 %v3748
        %v3863 = vpop.f32.mrb[0].mxu0
        %v3864 = vadd.f32 %v607, %v3863
        %v3865 = vpop.f32.mrb[0].mxu0
        %3866 = vmatprep.mubr.f32.mxu0 0.0
        %3867 = vmatmul.mubr.f32.gmra.mrb[0].mxu0 %v3751
        %v3868 = vpop.f32.mrb[0].mxu0
        %v3869 = vadd.f32 %v607, %v3868
        %v3870 = vpop.f32.mrb[0].mxu0
        %3871 = vmatprep.mubr.f32.mxu0 0.0
        %3872 = vmatmul.mubr.f32.gmra.mrb[0].mxu0 %v3754
        %v3873 = vpop.f32.mrb[0].mxu0
        %v3874 = vadd.f32 %v607, %v3873
        %v3875 = vpop.f32.mrb[0].mxu0
        %3876 = vmatprep.mubr.f32.mxu0 0.0
        %3877 = vmatmul.mubr.f32.gmra.mrb[0].mxu0 %v3757
        %v3878 = vpop.f32.mrb[0].mxu0
        %v3879 = vadd.f32 %v607, %v3878
        %v3880 = vpop.f32.mrb[0].mxu0
        %3881 = vmatprep.mubr.f32.mxu0 0.0
        %3882 = vmatmul.mubr.f32.gmra.mrb[0].mxu0 %v3760
        %v3883 = vpop.f32.mrb[0].mxu0
        %v3884 = vadd.f32 %v607, %v3883
        %v3885 = vpop.f32.mrb[0].mxu0
        %3886 = vmatprep.mubr.f32.mxu0 0.0
        %3887 = vmatmul.mubr.f32.gmra.mrb[0].mxu0 %v3763
        %v3888 = vpop.f32.mrb[0].mxu0
        %v3889 = vadd.f32 %v607, %v3888
        %v3890 = vpop.f32.mrb[0].mxu0
        %3891 = vmatprep.mubr.f32.mxu0 0.0
        %3892 = vmatmul.mubr.f32.gmra.mrb[0].mxu0 %v3766
        %v3893 = vpop.f32.mrb[0].mxu0
        %v3894 = vadd.f32 %v607, %v3893
        %v3895 = vpop.f32.mrb[0].mxu0
        %3896 = vmatprep.mubr.f32.mxu0 0.0
        %3897 = vmatmul.mubr.f32.gmra.mrb[0].mxu0 %v3769
        %v3898 = vpop.f32.mrb[0].mxu0
        %v3899 = vadd.f32 %v607, %v3898
        %v3900 = vpop.f32.mrb[0].mxu0
        %3901 = vmatprep.mubr.f32.mxu0 0.0
        %3902 = vmatmul.mubr.f32.gmra.mrb[0].mxu0 %v3772
        %v3903 = vpop.f32.mrb[0].mxu0
        %v3904 = vadd.f32 %v607, %v3903
        %v3905 = vpop.f32.mrb[0].mxu0
        %3906 = vmatprep.mubr.f32.mxu0 0.0
        %3907 = vmatmul.mubr.f32.gmra.mrb[0].mxu0 %v3775
        %v3908 = vpop.f32.mrb[0].mxu0
        %v3909 = vadd.f32 %v607, %v3908
        %v3910 = vpop.f32.mrb[0].mxu0
        %3911 = vmatprep.mubr.f32.mxu0 0.0
        %3912 = vmatmul.mubr.f32.gmra.mrb[0].mxu0 %v3778
        %v3913 = vpop.f32.mrb[0].mxu0
        %v3914 = vadd.f32 %v607, %v3913
        %v3915 = vpop.f32.mrb[0].mxu0
        %3916 = vmatprep.mubr.f32.mxu0 0.0
        %3917 = vmatmul.mubr.f32.gmra.mrb[0].mxu0 %v3781
        %v3918 = vpop.f32.mrb[0].mxu0
        %v3919 = vadd.f32 %v607, %v3918
        %v3920 = vpop.f32.mrb[0].mxu0
        %3921 = vmatprep.mubr.f32.mxu0 0.0
        %3922 = vmatmul.mubr.f32.gmra.mrb[0].mxu0 %v3784
        %v3923 = vpop.f32.mrb[0].mxu0
        %v3924 = vadd.f32 %v607, %v3923
        %v3925 = vpop.f32.mrb[0].mxu0
        %3926 = vmatprep.mubr.f32.mxu0 0.0
        %3927 = vmatmul.mubr.f32.gmra.mrb[0].mxu0 %v3787
        %v3928 = vpop.f32.mrb[0].mxu0
        %v3929 = vadd.f32 %v607, %v3928
        %v3930 = vpop.f32.mrb[0].mxu0
        %3931 = vmatprep.mubr.f32.mxu0 0.0
        %3932 = vmatmul.mubr.f32.gmra.mrb[0].mxu0 %v3790
        %v3933 = vpop.f32.mrb[0].mxu0
        %v3934 = vadd.f32 %v607, %v3933
        %v3935 = vpop.f32.mrb[0].mxu0
        %3936 = vdwg.mxu0
        %v3937 = vmax.f32 %v3859, 0.0
        %v3938 = vmax.f32 %v3864, 0.0
        %v3939 = vmax.f32 %v3869, 0.0
        %v3940 = vmax.f32 %v3874, 0.0
        %v3941 = vmax.f32 %v3879, 0.0
        %v3942 = vmax.f32 %v3884, 0.0
        %v3943 = vmax.f32 %v3889, 0.0
        %v3944 = vmax.f32 %v3894, 0.0
        %v3945 = vmax.f32 %v3899, 0.0
        %v3946 = vmax.f32 %v3904, 0.0
        %v3947 = vmax.f32 %v3909, 0.0
        %v3948 = vmax.f32 %v3914, 0.0
        %v3949 = vmax.f32 %v3919, 0.0
        %v3950 = vmax.f32 %v3924, 0.0
        %v3951 = vmax.f32 %v3929, 0.0
        %v3952 = vmax.f32 %v3934, 0.0
        %3969 = vrot.lane.b32.xlu0 %v3169, 32
        %v3970 = vpop.permute.xlu0 %3969
        %3971 = vrot.lane.b32.xlu0 %v3170, 32
        %v3972 = vpop.permute.xlu0 %3971
        %3973 = vrot.lane.b32.xlu0 %v3171, 32
        %v3974 = vpop.permute.xlu0 %3973
        %3975 = vrot.lane.b32.xlu0 %v3172, 32
        %v3976 = vpop.permute.xlu0 %3975
        %3977 = vrot.lane.b32.xlu0 %v3173, 32
        %v3978 = vpop.permute.xlu0 %3977
        %3979 = vrot.lane.b32.xlu0 %v3174, 32
        %v3980 = vpop.permute.xlu0 %3979
        %3981 = vrot.lane.b32.xlu0 %v3175, 32
        %v3982 = vpop.permute.xlu0 %3981
        %3983 = vrot.lane.b32.xlu0 %v3176, 32
        %v3984 = vpop.permute.xlu0 %3983
        %3985 = vrot.lane.b32.xlu0 %v3177, 32
        %v3986 = vpop.permute.xlu0 %3985
        %3987 = vrot.lane.b32.xlu0 %v3178, 32
        %v3988 = vpop.permute.xlu0 %3987
        %3989 = vrot.lane.b32.xlu0 %v3179, 32
        %v3990 = vpop.permute.xlu0 %3989
        %3991 = vrot.lane.b32.xlu0 %v3180, 32
        %v3992 = vpop.permute.xlu0 %3991
        %3993 = vrot.lane.b32.xlu0 %v3181, 32
        %v3994 = vpop.permute.xlu0 %3993
        %3995 = vrot.lane.b32.xlu0 %v3182, 32
        %v3996 = vpop.permute.xlu0 %3995
        %3997 = vrot.lane.b32.xlu0 %v3183, 32
        %v3998 = vpop.permute.xlu0 %3997
        %3999 = vrot.lane.b32.xlu0 %v3184, 32
        %v4000 = vpop.permute.xlu0 %3999
        %v4017 = vsel %vm579, %v3937, %v3970
        %v4018 = vsel %vm579, %v3938, %v3972
        %v4019 = vsel %vm579, %v3939, %v3974
        %v4020 = vsel %vm579, %v3940, %v3976
        %v4021 = vsel %vm579, %v3941, %v3978
        %v4022 = vsel %vm579, %v3942, %v3980
        %v4023 = vsel %vm579, %v3943, %v3982
        %v4024 = vsel %vm579, %v3944, %v3984
        %v4025 = vsel %vm579, %v3945, %v3986
        %v4026 = vsel %vm579, %v3946, %v3988
        %v4027 = vsel %vm579, %v3947, %v3990
        %v4028 = vsel %vm579, %v3948, %v3992
        %v4029 = vsel %vm579, %v3949, %v3994
        %v4030 = vsel %vm579, %v3950, %v3996
        %v4031 = vsel %vm579, %v3951, %v3998
        %v4032 = vsel %vm579, %v3952, %v4000
        %v4033 = vld [vmem:[%s2 + $0x80] sm:$0xff]
        %v4034 = vld [vmem:[%s2 + $0x88] sm:$0xff]
        %v4035 = vld [vmem:[%s2 + $0x90] sm:$0xff]
        %v4036 = vld [vmem:[%s2 + $0x98] sm:$0xff]
        %v4037 = vld [vmem:[%s2 + $0xa0] sm:$0xff]
        %v4038 = vld [vmem:[%s2 + $0xa8] sm:$0xff]
        %v4039 = vld [vmem:[%s2 + $0xb0] sm:$0xff]
        %v4040 = vld [vmem:[%s2 + $0xb8] sm:$0xff]
        %v4042 = vsel %vm608, %v4017, 0
        %v4045 = vsel %vm608, %v4018, 0
        %v4048 = vsel %vm608, %v4019, 0
        %v4051 = vsel %vm608, %v4020, 0
        %v4054 = vsel %vm608, %v4021, 0
        %v4057 = vsel %vm608, %v4022, 0
        %v4060 = vsel %vm608, %v4023, 0
        %v4063 = vsel %vm608, %v4024, 0
        %v4066 = vsel %vm608, %v4025, 0
        %v4069 = vsel %vm608, %v4026, 0
        %v4072 = vsel %vm608, %v4027, 0
        %v4075 = vsel %vm608, %v4028, 0
        %v4078 = vsel %vm608, %v4029, 0
        %v4081 = vsel %vm608, %v4030, 0
        %v4084 = vsel %vm608, %v4031, 0
        %v4087 = vsel %vm608, %v4032, 0
        %4089 = vmatprep.subr.mxu0 0.0
        %4090 = vmatpush1.msra.mxu0 %v4033
        %4091 = vmatprep.subr.mxu0 0.0
        %4092 = vmatpush1.msra.mxu0 %v4034
        %4093 = vmatprep.subr.mxu0 0.0
        %4094 = vmatpush1.msra.mxu0 %v4035
        %4095 = vmatprep.subr.mxu0 0.0
        %4096 = vmatpush1.msra.mxu0 %v4036
        %4097 = vmatprep.subr.mxu0 0.0
        %4098 = vmatpush1.msra.mxu0 %v4037
        %4099 = vmatprep.subr.mxu0 0.0
        %4100 = vmatpush1.msra.mxu0 %v4038
        %4101 = vmatprep.subr.mxu0 0.0
        %4102 = vmatpush1.msra.mxu0 %v4039
        %4103 = vmatprep.subr.mxu0 0.0
        %4104 = vmatpush1.msra.mxu0 %v4040
        %4105 = vmatprep.subr.mxu0 0.0
        %4106 = vmatpush1.msra.mxu0 0.0
        %4107 = vmatprep.subr.mxu0 0.0
        %4108 = vmatpush1.msra.mxu0 0.0
        %4109 = vmatprep.subr.mxu0 0.0
        %4110 = vmatpush1.msra.mxu0 0.0
        %4111 = vmatprep.subr.mxu0 0.0
        %4112 = vmatpush1.msra.mxu0 0.0
        %4113 = vmatprep.subr.mxu0 0.0
        %4114 = vmatpush1.msra.mxu0 0.0
        %4115 = vmatprep.subr.mxu0 0.0
        %4116 = vmatpush1.msra.mxu0 0.0
        %4117 = vmatprep.subr.mxu0 0.0
        %4118 = vmatpush1.msra.mxu0 0.0
        %4119 = vmatprep.subr.mxu0 0.0
        %4120 = vmatpush1.msra.mxu0 0.0
        %4121 = vmatprep.subr.mxu0 0.0
        %4122 = vmatpush1.msra.mxu0 0.0
        %4123 = vmatprep.subr.mxu0 0.0
        %4124 = vmatpush1.msra.mxu0 0.0
        %4125 = vmatprep.subr.mxu0 0.0
        %4126 = vmatpush1.msra.mxu0 0.0
        %4127 = vmatprep.subr.mxu0 0.0
        %4128 = vmatpush1.msra.mxu0 0.0
        %4129 = vmatprep.subr.mxu0 0.0
        %4130 = vmatpush1.msra.mxu0 0.0
        %4131 = vmatprep.subr.mxu0 0.0
        %4132 = vmatpush1.msra.mxu0 0.0
        %4133 = vmatprep.subr.mxu0 0.0
        %4134 = vmatpush1.msra.mxu0 0.0
        %4135 = vmatprep.subr.mxu0 0.0
        %4136 = vmatpush1.msra.mxu0 0.0
        %4137 = vmatprep.subr.mxu0 0.0
        %4138 = vmatpush1.msra.mxu0 0.0
        %4139 = vmatprep.subr.mxu0 0.0
        %4140 = vmatpush1.msra.mxu0 0.0
        %4141 = vmatprep.subr.mxu0 0.0
        %4142 = vmatpush1.msra.mxu0 0.0
        %4143 = vmatprep.subr.mxu0 0.0
        %4144 = vmatpush1.msra.mxu0 0.0
        %4145 = vmatprep.subr.mxu0 0.0
        %4146 = vmatpush1.msra.mxu0 0.0
        %4147 = vmatprep.subr.mxu0 0.0
        %4148 = vmatpush1.msra.mxu0 0.0
        %4149 = vmatprep.subr.mxu0 0.0
        %4150 = vmatpush1.msra.mxu0 0.0
        %4151 = vmatprep.subr.mxu0 0.0
        %4152 = vmatpush1.msra.mxu0 0.0
        %4153 = vmatprep.mubr.f32.mxu0 0.0
        %4154 = vmatmul.mubr.f32.gmra.mrb[0].mxu0 %v4042
        %v4155 = vpop.f32.mrb[0].mxu0
        %v4156 = vadd.f32 %v845, %v4155
        %v4157 = vpop.f32.mrb[0].mxu0
        %4158 = vmatprep.mubr.f32.mxu0 0.0
        %4159 = vmatmul.mubr.f32.gmra.mrb[0].mxu0 %v4045
        %v4160 = vpop.f32.mrb[0].mxu0
        %v4161 = vadd.f32 %v845, %v4160
        %v4162 = vpop.f32.mrb[0].mxu0
        %4163 = vmatprep.mubr.f32.mxu0 0.0
        %4164 = vmatmul.mubr.f32.gmra.mrb[0].mxu0 %v4048
        %v4165 = vpop.f32.mrb[0].mxu0
        %v4166 = vadd.f32 %v845, %v4165
        %v4167 = vpop.f32.mrb[0].mxu0
        %4168 = vmatprep.mubr.f32.mxu0 0.0
        %4169 = vmatmul.mubr.f32.gmra.mrb[0].mxu0 %v4051
        %v4170 = vpop.f32.mrb[0].mxu0
        %v4171 = vadd.f32 %v845, %v4170
        %v4172 = vpop.f32.mrb[0].mxu0
        %4173 = vmatprep.mubr.f32.mxu0 0.0
        %4174 = vmatmul.mubr.f32.gmra.mrb[0].mxu0 %v4054
        %v4175 = vpop.f32.mrb[0].mxu0
        %v4176 = vadd.f32 %v845, %v4175
        %v4177 = vpop.f32.mrb[0].mxu0
        %4178 = vmatprep.mubr.f32.mxu0 0.0
        %4179 = vmatmul.mubr.f32.gmra.mrb[0].mxu0 %v4057
        %v4180 = vpop.f32.mrb[0].mxu0
        %v4181 = vadd.f32 %v845, %v4180
        %v4182 = vpop.f32.mrb[0].mxu0
        %4183 = vmatprep.mubr.f32.mxu0 0.0
        %4184 = vmatmul.mubr.f32.gmra.mrb[0].mxu0 %v4060
        %v4185 = vpop.f32.mrb[0].mxu0
        %v4186 = vadd.f32 %v845, %v4185
        %v4187 = vpop.f32.mrb[0].mxu0
        %4188 = vmatprep.mubr.f32.mxu0 0.0
        %4189 = vmatmul.mubr.f32.gmra.mrb[0].mxu0 %v4063
        %v4190 = vpop.f32.mrb[0].mxu0
        %v4191 = vadd.f32 %v845, %v4190
        %v4192 = vpop.f32.mrb[0].mxu0
        %4193 = vmatprep.mubr.f32.mxu0 0.0
        %4194 = vmatmul.mubr.f32.gmra.mrb[0].mxu0 %v4066
        %v4195 = vpop.f32.mrb[0].mxu0
        %v4196 = vadd.f32 %v845, %v4195
        %v4197 = vpop.f32.mrb[0].mxu0
        %4198 = vmatprep.mubr.f32.mxu0 0.0
        %4199 = vmatmul.mubr.f32.gmra.mrb[0].mxu0 %v4069
        %v4200 = vpop.f32.mrb[0].mxu0
        %v4201 = vadd.f32 %v845, %v4200
        %v4202 = vpop.f32.mrb[0].mxu0
        %4203 = vmatprep.mubr.f32.mxu0 0.0
        %4204 = vmatmul.mubr.f32.gmra.mrb[0].mxu0 %v4072
        %v4205 = vpop.f32.mrb[0].mxu0
        %v4206 = vadd.f32 %v845, %v4205
        %v4207 = vpop.f32.mrb[0].mxu0
        %4208 = vmatprep.mubr.f32.mxu0 0.0
        %4209 = vmatmul.mubr.f32.gmra.mrb[0].mxu0 %v4075
        %v4210 = vpop.f32.mrb[0].mxu0
        %v4211 = vadd.f32 %v845, %v4210
        %v4212 = vpop.f32.mrb[0].mxu0
        %4213 = vmatprep.mubr.f32.mxu0 0.0
        %4214 = vmatmul.mubr.f32.gmra.mrb[0].mxu0 %v4078
        %v4215 = vpop.f32.mrb[0].mxu0
        %v4216 = vadd.f32 %v845, %v4215
        %v4217 = vpop.f32.mrb[0].mxu0
        %4218 = vmatprep.mubr.f32.mxu0 0.0
        %4219 = vmatmul.mubr.f32.gmra.mrb[0].mxu0 %v4081
        %v4220 = vpop.f32.mrb[0].mxu0
        %v4221 = vadd.f32 %v845, %v4220
        %v4222 = vpop.f32.mrb[0].mxu0
        %4223 = vmatprep.mubr.f32.mxu0 0.0
        %4224 = vmatmul.mubr.f32.gmra.mrb[0].mxu0 %v4084
        %v4225 = vpop.f32.mrb[0].mxu0
        %v4226 = vadd.f32 %v845, %v4225
        %v4227 = vpop.f32.mrb[0].mxu0
        %4228 = vmatprep.mubr.f32.mxu0 0.0
        %4229 = vmatmul.mubr.f32.gmra.mrb[0].mxu0 %v4087
        %v4230 = vpop.f32.mrb[0].mxu0
        %v4231 = vadd.f32 %v845, %v4230
        %v4232 = vpop.f32.mrb[0].mxu0
        %4233 = vdwg.mxu0
        %v4234 = vmax.f32 %v4156, 0.0
        %v4235 = vmax.f32 %v4161, 0.0
        %v4236 = vmax.f32 %v4166, 0.0
        %v4237 = vmax.f32 %v4171, 0.0
        %v4238 = vmax.f32 %v4176, 0.0
        %v4239 = vmax.f32 %v4181, 0.0
        %v4240 = vmax.f32 %v4186, 0.0
        %v4241 = vmax.f32 %v4191, 0.0
        %v4242 = vmax.f32 %v4196, 0.0
        %v4243 = vmax.f32 %v4201, 0.0
        %v4244 = vmax.f32 %v4206, 0.0
        %v4245 = vmax.f32 %v4211, 0.0
        %v4246 = vmax.f32 %v4216, 0.0
        %v4247 = vmax.f32 %v4221, 0.0
        %v4248 = vmax.f32 %v4226, 0.0
        %v4249 = vmax.f32 %v4231, 0.0
        %4266 = vrot.lane.b32.xlu0 %v4156, 96
        %v4267 = vpop.permute.xlu0 %4266
        %4268 = vrot.lane.b32.xlu0 %v4161, 96
        %v4269 = vpop.permute.xlu0 %4268
        %4270 = vrot.lane.b32.xlu0 %v4166, 96
        %v4271 = vpop.permute.xlu0 %4270
        %4272 = vrot.lane.b32.xlu0 %v4171, 96
        %v4273 = vpop.permute.xlu0 %4272
        %4274 = vrot.lane.b32.xlu0 %v4176, 96
        %v4275 = vpop.permute.xlu0 %4274
        %4276 = vrot.lane.b32.xlu0 %v4181, 96
        %v4277 = vpop.permute.xlu0 %4276
        %4278 = vrot.lane.b32.xlu0 %v4186, 96
        %v4279 = vpop.permute.xlu0 %4278
        %4280 = vrot.lane.b32.xlu0 %v4191, 96
        %v4281 = vpop.permute.xlu0 %4280
        %4282 = vrot.lane.b32.xlu0 %v4196, 96
        %v4283 = vpop.permute.xlu0 %4282
        %4284 = vrot.lane.b32.xlu0 %v4201, 96
        %v4285 = vpop.permute.xlu0 %4284
        %4286 = vrot.lane.b32.xlu0 %v4206, 96
        %v4287 = vpop.permute.xlu0 %4286
        %4288 = vrot.lane.b32.xlu0 %v4211, 96
        %v4289 = vpop.permute.xlu0 %4288
        %4290 = vrot.lane.b32.xlu0 %v4216, 96
        %v4291 = vpop.permute.xlu0 %4290
        %4292 = vrot.lane.b32.xlu0 %v4221, 96
        %v4293 = vpop.permute.xlu0 %4292
        %4294 = vrot.lane.b32.xlu0 %v4226, 96
        %v4295 = vpop.permute.xlu0 %4294
        %4296 = vrot.lane.b32.xlu0 %v4231, 96
        %v4297 = vpop.permute.xlu0 %4296
        %v4314 = vadd.f32 %v3249, %v4267
        %v4315 = vadd.f32 %v3250, %v4269
        %v4316 = vadd.f32 %v3251, %v4271
        %v4317 = vadd.f32 %v3252, %v4273
        %v4318 = vadd.f32 %v3253, %v4275
        %v4319 = vadd.f32 %v3254, %v4277
        %v4320 = vadd.f32 %v3255, %v4279
        %v4321 = vadd.f32 %v3256, %v4281
        %v4322 = vadd.f32 %v3257, %v4283
        %v4323 = vadd.f32 %v3258, %v4285
        %v4324 = vadd.f32 %v3259, %v4287
        %v4325 = vadd.f32 %v3260, %v4289
        %v4326 = vadd.f32 %v3261, %v4291
        %v4327 = vadd.f32 %v3262, %v4293
        %v4328 = vadd.f32 %v3263, %v4295
        %v4329 = vadd.f32 %v3264, %v4297
        %v4330 = vmax.f32 %v4314, 0.0
        %v4331 = vmax.f32 %v4315, 0.0
        %v4332 = vmax.f32 %v4316, 0.0
        %v4333 = vmax.f32 %v4317, 0.0
        %v4334 = vmax.f32 %v4318, 0.0
        %v4335 = vmax.f32 %v4319, 0.0
        %v4336 = vmax.f32 %v4320, 0.0
        %v4337 = vmax.f32 %v4321, 0.0
        %v4338 = vmax.f32 %v4322, 0.0
        %v4339 = vmax.f32 %v4323, 0.0
        %v4340 = vmax.f32 %v4324, 0.0
        %v4341 = vmax.f32 %v4325, 0.0
        %v4342 = vmax.f32 %v4326, 0.0
        %v4343 = vmax.f32 %v4327, 0.0
        %v4344 = vmax.f32 %v4328, 0.0
        %v4345 = vmax.f32 %v4329, 0.0
        %v4346 = vmin.f32 %v4330, 1.0
        %v4347 = vmin.f32 %v4331, 1.0
        %v4348 = vmin.f32 %v4332, 1.0
        %v4349 = vmin.f32 %v4333, 1.0
        %v4350 = vmin.f32 %v4334, 1.0
        %v4351 = vmin.f32 %v4335, 1.0
        %v4352 = vmin.f32 %v4336, 1.0
        %v4353 = vmin.f32 %v4337, 1.0
        %v4354 = vmin.f32 %v4338, 1.0
        %v4355 = vmin.f32 %v4339, 1.0
        %v4356 = vmin.f32 %v4340, 1.0
        %v4357 = vmin.f32 %v4341, 1.0
        %v4358 = vmin.f32 %v4342, 1.0
        %v4359 = vmin.f32 %v4343, 1.0
        %v4360 = vmin.f32 %v4344, 1.0
        %v4361 = vmin.f32 %v4345, 1.0
        %s4362 = scalar_lea.vmem %s258, 512 [#allocation2]
        %4363 = vst.msk [vmem:[%s4362] sm:$0xff] %vm327, %v4346
        %4364 = vst.msk [vmem:[%s4362 + $0x8] sm:$0xff] %vm327, %v4347
        %4365 = vst.msk [vmem:[%s4362 + $0x10] sm:$0xff] %vm327, %v4348
        %4366 = vst.msk [vmem:[%s4362 + $0x18] sm:$0xff] %vm327, %v4349
        %4367 = vst.msk [vmem:[%s4362 + $0x20] sm:$0xff] %vm327, %v4350
        %4368 = vst.msk [vmem:[%s4362 + $0x28] sm:$0xff] %vm327, %v4351
        %4369 = vst.msk [vmem:[%s4362 + $0x30] sm:$0xff] %vm327, %v4352
        %4370 = vst.msk [vmem:[%s4362 + $0x38] sm:$0xff] %vm327, %v4353
        %4371 = vst.msk [vmem:[%s4362 + $0x40] sm:$0xff] %vm327, %v4354
        %4372 = vst.msk [vmem:[%s4362 + $0x48] sm:$0xff] %vm327, %v4355
        %4373 = vst.msk [vmem:[%s4362 + $0x50] sm:$0xff] %vm327, %v4356
        %4374 = vst.msk [vmem:[%s4362 + $0x58] sm:$0xff] %vm327, %v4357
        %4375 = vst.msk [vmem:[%s4362 + $0x60] sm:$0xff] %vm327, %v4358
        %4376 = vst.msk [vmem:[%s4362 + $0x68] sm:$0xff] %vm327, %v4359
        %4377 = vst.msk [vmem:[%s4362 + $0x70] sm:$0xff] %vm327, %v4360
        %4378 = vst.msk [vmem:[%s4362 + $0x78] sm:$0xff] %vm327, %v4361
        %v4379 = vsub.f32 %v4346, %v308
        %v4380 = vsub.f32 %v4347, %v309
        %v4381 = vsub.f32 %v4348, %v310
        %v4382 = vsub.f32 %v4349, %v311
        %v4383 = vsub.f32 %v4350, %v312
        %v4384 = vsub.f32 %v4351, %v313
        %v4385 = vsub.f32 %v4352, %v314
        %v4386 = vsub.f32 %v4353, %v315
        %v4387 = vsub.f32 %v4354, %v316
        %v4388 = vsub.f32 %v4355, %v317
        %v4389 = vsub.f32 %v4356, %v318
        %v4390 = vsub.f32 %v4357, %v319
        %v4391 = vsub.f32 %v4358, %v320
        %v4392 = vsub.f32 %v4359, %v321
        %v4393 = vsub.f32 %v4360, %v322
        %v4394 = vsub.f32 %v4361, %v323
        %v4395 = vmul.f32 %v4379, %v4379
        %v4396 = vmul.f32 %v4380, %v4380
        %v4397 = vmul.f32 %v4381, %v4381
        %v4398 = vmul.f32 %v4382, %v4382
        %v4399 = vmul.f32 %v4383, %v4383
        %v4400 = vmul.f32 %v4384, %v4384
        %v4401 = vmul.f32 %v4385, %v4385
        %v4402 = vmul.f32 %v4386, %v4386
        %v4403 = vmul.f32 %v4387, %v4387
        %v4404 = vmul.f32 %v4388, %v4388
        %v4405 = vmul.f32 %v4389, %v4389
        %v4406 = vmul.f32 %v4390, %v4390
        %v4407 = vmul.f32 %v4391, %v4391
        %v4408 = vmul.f32 %v4392, %v4392
        %v4409 = vmul.f32 %v4393, %v4393
        %v4410 = vmul.f32 %v4394, %v4394
        %v4411 = vadd.f32 %v3346, %v4395
        %v4412 = vadd.f32 %v3347, %v4396
        %v4413 = vadd.f32 %v3348, %v4397
        %v4414 = vadd.f32 %v3349, %v4398
        %v4415 = vadd.f32 %v3350, %v4399
        %v4416 = vadd.f32 %v3351, %v4400
        %v4417 = vadd.f32 %v3352, %v4401
        %v4418 = vadd.f32 %v3353, %v4402
        %v4419 = vadd.f32 %v3354, %v4403
        %v4420 = vadd.f32 %v3355, %v4404
        %v4421 = vadd.f32 %v3356, %v4405
        %v4422 = vadd.f32 %v3357, %v4406
        %v4423 = vadd.f32 %v3358, %v4407
        %v4424 = vadd.f32 %v3359, %v4408
        %v4425 = vadd.f32 %v3360, %v4409
        %v4426 = vadd.f32 %v3361, %v4410
        %4427 = vst.msk [vmem:[%s264] sm:$0xff] %vm579, %v3640
        %4428 = vst.msk [vmem:[%s264 + $0x8] sm:$0xff] %vm579, %v3641
        %4429 = vst.msk [vmem:[%s264 + $0x10] sm:$0xff] %vm579, %v3642
        %4430 = vst.msk [vmem:[%s264 + $0x18] sm:$0xff] %vm579, %v3643
        %4431 = vst.msk [vmem:[%s264 + $0x20] sm:$0xff] %vm579, %v3644
        %4432 = vst.msk [vmem:[%s264 + $0x28] sm:$0xff] %vm579, %v3645
        %4433 = vst.msk [vmem:[%s264 + $0x30] sm:$0xff] %vm579, %v3646
        %4434 = vst.msk [vmem:[%s264 + $0x38] sm:$0xff] %vm579, %v3647
        %4435 = vst.msk [vmem:[%s264 + $0x40] sm:$0xff] %vm579, %v3648
        %4436 = vst.msk [vmem:[%s264 + $0x48] sm:$0xff] %vm579, %v3649
        %4437 = vst.msk [vmem:[%s264 + $0x50] sm:$0xff] %vm579, %v3650
        %4438 = vst.msk [vmem:[%s264 + $0x58] sm:$0xff] %vm579, %v3651
        %4439 = vst.msk [vmem:[%s264 + $0x60] sm:$0xff] %vm579, %v3652
        %4440 = vst.msk [vmem:[%s264 + $0x68] sm:$0xff] %vm579, %v3653
        %4441 = vst.msk [vmem:[%s264 + $0x70] sm:$0xff] %vm579, %v3654
        %4442 = vst.msk [vmem:[%s264 + $0x78] sm:$0xff] %vm579, %v3655
        %s4443 = scalar_lea.vmem %s264, 128 [#allocation3]
        %4444 = vst.msk [vmem:[%s4443] sm:$0xff] %vm579, %v3937
        %4445 = vst.msk [vmem:[%s4443 + $0x8] sm:$0xff] %vm579, %v3938
        %4446 = vst.msk [vmem:[%s4443 + $0x10] sm:$0xff] %vm579, %v3939
        %4447 = vst.msk [vmem:[%s4443 + $0x18] sm:$0xff] %vm579, %v3940
        %4448 = vst.msk [vmem:[%s4443 + $0x20] sm:$0xff] %vm579, %v3941
        %4449 = vst.msk [vmem:[%s4443 + $0x28] sm:$0xff] %vm579, %v3942
        %4450 = vst.msk [vmem:[%s4443 + $0x30] sm:$0xff] %vm579, %v3943
        %4451 = vst.msk [vmem:[%s4443 + $0x38] sm:$0xff] %vm579, %v3944
        %4452 = vst.msk [vmem:[%s4443 + $0x40] sm:$0xff] %vm579, %v3945
        %4453 = vst.msk [vmem:[%s4443 + $0x48] sm:$0xff] %vm579, %v3946
        %4454 = vst.msk [vmem:[%s4443 + $0x50] sm:$0xff] %vm579, %v3947
        %4455 = vst.msk [vmem:[%s4443 + $0x58] sm:$0xff] %vm579, %v3948
        %4456 = vst.msk [vmem:[%s4443 + $0x60] sm:$0xff] %vm579, %v3949
        %4457 = vst.msk [vmem:[%s4443 + $0x68] sm:$0xff] %vm579, %v3950
        %4458 = vst.msk [vmem:[%s4443 + $0x70] sm:$0xff] %vm579, %v3951
        %4459 = vst.msk [vmem:[%s4443 + $0x78] sm:$0xff] %vm579, %v3952
        %s4460 = scalar_lea.vmem %s264, 256 [#allocation3]
        %4461 = vst.msk [vmem:[%s4460] sm:$0xff] %vm579, %v4234
        %4462 = vst.msk [vmem:[%s4460 + $0x8] sm:$0xff] %vm579, %v4235
        %4463 = vst.msk [vmem:[%s4460 + $0x10] sm:$0xff] %vm579, %v4236
        %4464 = vst.msk [vmem:[%s4460 + $0x18] sm:$0xff] %vm579, %v4237
        %4465 = vst.msk [vmem:[%s4460 + $0x20] sm:$0xff] %vm579, %v4238
        %4466 = vst.msk [vmem:[%s4460 + $0x28] sm:$0xff] %vm579, %v4239
        %4467 = vst.msk [vmem:[%s4460 + $0x30] sm:$0xff] %vm579, %v4240
        %4468 = vst.msk [vmem:[%s4460 + $0x38] sm:$0xff] %vm579, %v4241
        %4469 = vst.msk [vmem:[%s4460 + $0x40] sm:$0xff] %vm579, %v4242
        %4470 = vst.msk [vmem:[%s4460 + $0x48] sm:$0xff] %vm579, %v4243
        %4471 = vst.msk [vmem:[%s4460 + $0x50] sm:$0xff] %vm579, %v4244
        %4472 = vst.msk [vmem:[%s4460 + $0x58] sm:$0xff] %vm579, %v4245
        %4473 = vst.msk [vmem:[%s4460 + $0x60] sm:$0xff] %vm579, %v4246
        %4474 = vst.msk [vmem:[%s4460 + $0x68] sm:$0xff] %vm579, %v4247
        %4475 = vst.msk [vmem:[%s4460 + $0x70] sm:$0xff] %vm579, %v4248
        %4476 = vst.msk [vmem:[%s4460 + $0x78] sm:$0xff] %vm579, %v4249
        %v4477 = vsel %vm327, %v4411, 0.0
        %4478 = vadd.xlane.f32.xlu0 %v4477
        %v4479 = vpop.xlane.xlu0 %4478
        %v4480 = vsel %vm327, %v4412, 0.0
        %4481 = vadd.xlane.f32.xlu0 %v4480
        %v4482 = vpop.xlane.xlu0 %4481
        %v4483 = vsel %vm327, %v4413, 0.0
        %4484 = vadd.xlane.f32.xlu0 %v4483
        %v4485 = vpop.xlane.xlu0 %4484
        %v4486 = vsel %vm327, %v4414, 0.0
        %4487 = vadd.xlane.f32.xlu0 %v4486
        %v4488 = vpop.xlane.xlu0 %4487
        %v4489 = vsel %vm327, %v4415, 0.0
        %4490 = vadd.xlane.f32.xlu0 %v4489
        %v4491 = vpop.xlane.xlu0 %4490
        %v4492 = vsel %vm327, %v4416, 0.0
        %4493 = vadd.xlane.f32.xlu0 %v4492
        %v4494 = vpop.xlane.xlu0 %4493
        %v4495 = vsel %vm327, %v4417, 0.0
        %4496 = vadd.xlane.f32.xlu0 %v4495
        %v4497 = vpop.xlane.xlu0 %4496
        %v4498 = vsel %vm327, %v4418, 0.0
        %4499 = vadd.xlane.f32.xlu0 %v4498
        %v4500 = vpop.xlane.xlu0 %4499
        %v4501 = vsel %vm327, %v4419, 0.0
        %4502 = vadd.xlane.f32.xlu0 %v4501
        %v4503 = vpop.xlane.xlu0 %4502
        %v4504 = vsel %vm327, %v4420, 0.0
        %4505 = vadd.xlane.f32.xlu0 %v4504
        %v4506 = vpop.xlane.xlu0 %4505
        %v4507 = vsel %vm327, %v4421, 0.0
        %4508 = vadd.xlane.f32.xlu0 %v4507
        %v4509 = vpop.xlane.xlu0 %4508
        %v4510 = vsel %vm327, %v4422, 0.0
        %4511 = vadd.xlane.f32.xlu0 %v4510
        %v4512 = vpop.xlane.xlu0 %4511
        %v4513 = vsel %vm327, %v4423, 0.0
        %4514 = vadd.xlane.f32.xlu0 %v4513
        %v4515 = vpop.xlane.xlu0 %4514
        %v4516 = vsel %vm327, %v4424, 0.0
        %4517 = vadd.xlane.f32.xlu0 %v4516
        %v4518 = vpop.xlane.xlu0 %4517
        %v4519 = vsel %vm327, %v4425, 0.0
        %4520 = vadd.xlane.f32.xlu0 %v4519
        %v4521 = vpop.xlane.xlu0 %4520
        %v4522 = vsel %vm327, %v4426, 0.0
        %4523 = vadd.xlane.f32.xlu0 %v4522
        %v4524 = vpop.xlane.xlu0 %4523
        %v4525 = vmul.f32 %v4479, 0.03125
        %v4526 = vmul.f32 %v4482, 0.03125
        %v4527 = vmul.f32 %v4485, 0.03125
        %v4528 = vmul.f32 %v4488, 0.03125
        %v4529 = vmul.f32 %v4491, 0.03125
        %v4530 = vmul.f32 %v4494, 0.03125
        %v4531 = vmul.f32 %v4497, 0.03125
        %v4532 = vmul.f32 %v4500, 0.03125
        %v4533 = vmul.f32 %v4503, 0.03125
        %v4534 = vmul.f32 %v4506, 0.03125
        %v4535 = vmul.f32 %v4509, 0.03125
        %v4536 = vmul.f32 %v4512, 0.03125
        %v4537 = vmul.f32 %v4515, 0.03125
        %v4538 = vmul.f32 %v4518, 0.03125
        %v4539 = vmul.f32 %v4521, 0.03125
        %v4540 = vmul.f32 %v4524, 0.03125
        %vm4541 = vcmask 7168
        %4542 = vst.msk [vmem:[%s290] sm:$0xff] %vm4541, %v4525
        %4543 = vst.msk [vmem:[%s290 + $0x8] sm:$0xff] %vm4541, %v4526
        %4544 = vst.msk [vmem:[%s290 + $0x10] sm:$0xff] %vm4541, %v4527
        %4545 = vst.msk [vmem:[%s290 + $0x18] sm:$0xff] %vm4541, %v4528
        %4546 = vst.msk [vmem:[%s290 + $0x20] sm:$0xff] %vm4541, %v4529
        %4547 = vst.msk [vmem:[%s290 + $0x28] sm:$0xff] %vm4541, %v4530
        %4548 = vst.msk [vmem:[%s290 + $0x30] sm:$0xff] %vm4541, %v4531
        %4549 = vst.msk [vmem:[%s290 + $0x38] sm:$0xff] %vm4541, %v4532
        %4550 = vst.msk [vmem:[%s290 + $0x40] sm:$0xff] %vm4541, %v4533
        %4551 = vst.msk [vmem:[%s290 + $0x48] sm:$0xff] %vm4541, %v4534
        %4552 = vst.msk [vmem:[%s290 + $0x50] sm:$0xff] %vm4541, %v4535
        %4553 = vst.msk [vmem:[%s290 + $0x58] sm:$0xff] %vm4541, %v4536
        %4554 = vst.msk [vmem:[%s290 + $0x60] sm:$0xff] %vm4541, %v4537
        %4555 = vst.msk [vmem:[%s290 + $0x68] sm:$0xff] %vm4541, %v4538
        %4556 = vst.msk [vmem:[%s290 + $0x70] sm:$0xff] %vm4541, %v4539
        %4557 = vst.msk [vmem:[%s290 + $0x78] sm:$0xff] %vm4541, %v4540
        %s4558 = sand.u32 %s120, 1
        %s4559 = sand.u32 %s120, 1
        %s4560 = smul.addr %s4559, 640
        %s4561 = scalar_lea.vmem [#allocation2], %s4560
        %s4562 = sand.u32 %s146, 1
        %s4563 = sand.u32 %s146, 1
        %s4564 = smul.addr %s4563, 384
        %s4565 = scalar_lea.vmem [#allocation3], %s4564
        %s4566 = smul.u32 16, %s18
        %p4567 = scmp.lt.s32.totalorder %s4566, 31
        %s4568 = scalar_select %p4567, %s4566, 31
        %s4569 = smul.addr %s4568, 8
        %s4570 = scalar_lea.vmem %s6, %s4569
        // Predicated region
        $region37: #{rim_forward_sequence.1} parent=35 // pred_check
          %p4571 = pneg %p130
        $region38: #{rim_forward_sequence.1} parent=35 // pred_check_branch
          %4573 = sbr.rel (%p4571) target = $region40
        $region39: #{rim_forward_sequence.1} parent=35 // pred_region
          %s4574 = smul.u32 16, %s18
          %s4575 = smul.addr %s4574, 8
          %s4576 = scalar_lea.vmem %s4, %s4575
          // Predicated region
          $region41: #{rim_forward_sequence.1} parent=39 // pred_check
            _
          $region42: #{rim_forward_sequence.1} parent=39 // pred_check_branch
            %4578 = sbr.rel (0) target = $region44
          $region43: #{rim_forward_sequence.1} parent=39 // pred_region
            // Predicated region
            $region45: #{rim_forward_sequence.1} parent=43 // pred_check
              _
            $region46: #{rim_forward_sequence.1} parent=43 // pred_check_branch
              %4580 = sbr.rel (0) target = $region48
            $region47: #{rim_forward_sequence.1} parent=43 // pred_region
              // Predicated region
              $region60: #{rim_forward_sequence.1} parent=47 // pred_check
                _
              $region61: #{rim_forward_sequence.1} parent=47 // pred_check_branch
                %4753 = sbr.rel (0) target = $region63
              $region62: #{rim_forward_sequence.1} parent=47 // pred_region
                loop: start=0, step=1, limit=1
                $region64: #{rim_forward_sequence.1} parent=62 // loop_pre_header
                  _
                $region65: #{rim_forward_sequence.1} parent=62 // loop_header
                  %s4755 = sphi 0, %s4759
                  %p4756 = scmp.ge.s32.totalorder %s4755, 1
                  %s4760 = sphi %s4561, %s4561
                  %s4761 = sphi %s4576, %s4576
                $region66: #{rim_forward_sequence.1} parent=62 // loop_header_branch
                  %4758 = sbr.rel (%p4756) target = $region70
                $region67: #{rim_forward_sequence.1} parent=62 // loop_body
                  %v4762 = vld [vmem:[%s4760] sm:$0xff]
                  %4763 = vst [vmem:[%s4761] sm:$0xff] %v4762
                  %v4764 = vld [vmem:[%s4760 + $0x8] sm:$0xff]
                  %4765 = vst [vmem:[%s4761 + $0x8] sm:$0xff] %v4764
                  %v4766 = vld [vmem:[%s4760 + $0x10] sm:$0xff]
                  %4767 = vst [vmem:[%s4761 + $0x10] sm:$0xff] %v4766
                  %v4768 = vld [vmem:[%s4760 + $0x18] sm:$0xff]
                  %4769 = vst [vmem:[%s4761 + $0x18] sm:$0xff] %v4768
                  %v4770 = vld [vmem:[%s4760 + $0x20] sm:$0xff]
                  %4771 = vst [vmem:[%s4761 + $0x20] sm:$0xff] %v4770
                  %v4772 = vld [vmem:[%s4760 + $0x28] sm:$0xff]
                  %4773 = vst [vmem:[%s4761 + $0x28] sm:$0xff] %v4772
                  %v4774 = vld [vmem:[%s4760 + $0x30] sm:$0xff]
                  %4775 = vst [vmem:[%s4761 + $0x30] sm:$0xff] %v4774
                  %v4776 = vld [vmem:[%s4760 + $0x38] sm:$0xff]
                  %4777 = vst [vmem:[%s4761 + $0x38] sm:$0xff] %v4776
                  %v4778 = vld [vmem:[%s4760 + $0x40] sm:$0xff]
                  %4779 = vst [vmem:[%s4761 + $0x40] sm:$0xff] %v4778
                  %v4780 = vld [vmem:[%s4760 + $0x48] sm:$0xff]
                  %4781 = vst [vmem:[%s4761 + $0x48] sm:$0xff] %v4780
                  %v4782 = vld [vmem:[%s4760 + $0x50] sm:$0xff]
                  %4783 = vst [vmem:[%s4761 + $0x50] sm:$0xff] %v4782
                  %v4784 = vld [vmem:[%s4760 + $0x58] sm:$0xff]
                  %4785 = vst [vmem:[%s4761 + $0x58] sm:$0xff] %v4784
                  %v4786 = vld [vmem:[%s4760 + $0x60] sm:$0xff]
                  %4787 = vst [vmem:[%s4761 + $0x60] sm:$0xff] %v4786
                  %v4788 = vld [vmem:[%s4760 + $0x68] sm:$0xff]
                  %4789 = vst [vmem:[%s4761 + $0x68] sm:$0xff] %v4788
                  %v4790 = vld [vmem:[%s4760 + $0x70] sm:$0xff]
                  %4791 = vst [vmem:[%s4761 + $0x70] sm:$0xff] %v4790
                  %v4792 = vld [vmem:[%s4760 + $0x78] sm:$0xff]
                  %4793 = vst [vmem:[%s4761 + $0x78] sm:$0xff] %v4792
                  %v4794 = vld [vmem:[%s4760 + $0x80] sm:$0xff]
                  %4795 = vst [vmem:[%s4761 + $0x100] sm:$0xff] %v4794
                  %v4796 = vld [vmem:[%s4760 + $0x88] sm:$0xff]
                  %4797 = vst [vmem:[%s4761 + $0x108] sm:$0xff] %v4796
                  %v4798 = vld [vmem:[%s4760 + $0x90] sm:$0xff]
                  %4799 = vst [vmem:[%s4761 + $0x110] sm:$0xff] %v4798
                  %v4800 = vld [vmem:[%s4760 + $0x98] sm:$0xff]
                  %4801 = vst [vmem:[%s4761 + $0x118] sm:$0xff] %v4800
                  %v4802 = vld [vmem:[%s4760 + $0xa0] sm:$0xff]
                  %4803 = vst [vmem:[%s4761 + $0x120] sm:$0xff] %v4802
                  %v4804 = vld [vmem:[%s4760 + $0xa8] sm:$0xff]
                  %4805 = vst [vmem:[%s4761 + $0x128] sm:$0xff] %v4804
                  %v4806 = vld [vmem:[%s4760 + $0xb0] sm:$0xff]
                  %4807 = vst [vmem:[%s4761 + $0x130] sm:$0xff] %v4806
                  %v4808 = vld [vmem:[%s4760 + $0xb8] sm:$0xff]
                  %4809 = vst [vmem:[%s4761 + $0x138] sm:$0xff] %v4808
                  %v4810 = vld [vmem:[%s4760 + $0xc0] sm:$0xff]
                  %4811 = vst [vmem:[%s4761 + $0x140] sm:$0xff] %v4810
                  %v4812 = vld [vmem:[%s4760 + $0xc8] sm:$0xff]
                  %4813 = vst [vmem:[%s4761 + $0x148] sm:$0xff] %v4812
                  %v4814 = vld [vmem:[%s4760 + $0xd0] sm:$0xff]
                  %4815 = vst [vmem:[%s4761 + $0x150] sm:$0xff] %v4814
                  %v4816 = vld [vmem:[%s4760 + $0xd8] sm:$0xff]
                  %4817 = vst [vmem:[%s4761 + $0x158] sm:$0xff] %v4816
                  %v4818 = vld [vmem:[%s4760 + $0xe0] sm:$0xff]
                  %4819 = vst [vmem:[%s4761 + $0x160] sm:$0xff] %v4818
                  %v4820 = vld [vmem:[%s4760 + $0xe8] sm:$0xff]
                  %4821 = vst [vmem:[%s4761 + $0x168] sm:$0xff] %v4820
                  %v4822 = vld [vmem:[%s4760 + $0xf0] sm:$0xff]
                  %4823 = vst [vmem:[%s4761 + $0x170] sm:$0xff] %v4822
                  %v4824 = vld [vmem:[%s4760 + $0xf8] sm:$0xff]
                  %4825 = vst [vmem:[%s4761 + $0x178] sm:$0xff] %v4824
                  %v4826 = vld [vmem:[%s4760 + $0x100] sm:$0xff]
                  %4827 = vst [vmem:[%s4761 + $0x200] sm:$0xff] %v4826
                  %v4828 = vld [vmem:[%s4760 + $0x108] sm:$0xff]
                  %4829 = vst [vmem:[%s4761 + $0x208] sm:$0xff] %v4828
                  %v4830 = vld [vmem:[%s4760 + $0x110] sm:$0xff]
                  %4831 = vst [vmem:[%s4761 + $0x210] sm:$0xff] %v4830
                  %v4832 = vld [vmem:[%s4760 + $0x118] sm:$0xff]
                  %4833 = vst [vmem:[%s4761 + $0x218] sm:$0xff] %v4832
                  %v4834 = vld [vmem:[%s4760 + $0x120] sm:$0xff]
                  %4835 = vst [vmem:[%s4761 + $0x220] sm:$0xff] %v4834
                  %v4836 = vld [vmem:[%s4760 + $0x128] sm:$0xff]
                  %4837 = vst [vmem:[%s4761 + $0x228] sm:$0xff] %v4836
                  %v4838 = vld [vmem:[%s4760 + $0x130] sm:$0xff]
                  %4839 = vst [vmem:[%s4761 + $0x230] sm:$0xff] %v4838
                  %v4840 = vld [vmem:[%s4760 + $0x138] sm:$0xff]
                  %4841 = vst [vmem:[%s4761 + $0x238] sm:$0xff] %v4840
                  %v4842 = vld [vmem:[%s4760 + $0x140] sm:$0xff]
                  %4843 = vst [vmem:[%s4761 + $0x240] sm:$0xff] %v4842
                  %v4844 = vld [vmem:[%s4760 + $0x148] sm:$0xff]
                  %4845 = vst [vmem:[%s4761 + $0x248] sm:$0xff] %v4844
                  %v4846 = vld [vmem:[%s4760 + $0x150] sm:$0xff]
                  %4847 = vst [vmem:[%s4761 + $0x250] sm:$0xff] %v4846
                  %v4848 = vld [vmem:[%s4760 + $0x158] sm:$0xff]
                  %4849 = vst [vmem:[%s4761 + $0x258] sm:$0xff] %v4848
                  %v4850 = vld [vmem:[%s4760 + $0x160] sm:$0xff]
                  %4851 = vst [vmem:[%s4761 + $0x260] sm:$0xff] %v4850
                  %v4852 = vld [vmem:[%s4760 + $0x168] sm:$0xff]
                  %4853 = vst [vmem:[%s4761 + $0x268] sm:$0xff] %v4852
                  %v4854 = vld [vmem:[%s4760 + $0x170] sm:$0xff]
                  %4855 = vst [vmem:[%s4761 + $0x270] sm:$0xff] %v4854
                  %v4856 = vld [vmem:[%s4760 + $0x178] sm:$0xff]
                  %4857 = vst [vmem:[%s4761 + $0x278] sm:$0xff] %v4856
                  %v4858 = vld [vmem:[%s4760 + $0x180] sm:$0xff]
                  %4859 = vst [vmem:[%s4761 + $0x300] sm:$0xff] %v4858
                  %v4860 = vld [vmem:[%s4760 + $0x188] sm:$0xff]
                  %4861 = vst [vmem:[%s4761 + $0x308] sm:$0xff] %v4860
                  %v4862 = vld [vmem:[%s4760 + $0x190] sm:$0xff]
                  %4863 = vst [vmem:[%s4761 + $0x310] sm:$0xff] %v4862
                  %v4864 = vld [vmem:[%s4760 + $0x198] sm:$0xff]
                  %4865 = vst [vmem:[%s4761 + $0x318] sm:$0xff] %v4864
                  %v4866 = vld [vmem:[%s4760 + $0x1a0] sm:$0xff]
                  %4867 = vst [vmem:[%s4761 + $0x320] sm:$0xff] %v4866
                  %v4868 = vld [vmem:[%s4760 + $0x1a8] sm:$0xff]
                  %4869 = vst [vmem:[%s4761 + $0x328] sm:$0xff] %v4868
                  %v4870 = vld [vmem:[%s4760 + $0x1b0] sm:$0xff]
                  %4871 = vst [vmem:[%s4761 + $0x330] sm:$0xff] %v4870
                  %v4872 = vld [vmem:[%s4760 + $0x1b8] sm:$0xff]
                  %4873 = vst [vmem:[%s4761 + $0x338] sm:$0xff] %v4872
                  %v4874 = vld [vmem:[%s4760 + $0x1c0] sm:$0xff]
                  %4875 = vst [vmem:[%s4761 + $0x340] sm:$0xff] %v4874
                  %v4876 = vld [vmem:[%s4760 + $0x1c8] sm:$0xff]
                  %4877 = vst [vmem:[%s4761 + $0x348] sm:$0xff] %v4876
                  %v4878 = vld [vmem:[%s4760 + $0x1d0] sm:$0xff]
                  %4879 = vst [vmem:[%s4761 + $0x350] sm:$0xff] %v4878
                  %v4880 = vld [vmem:[%s4760 + $0x1d8] sm:$0xff]
                  %4881 = vst [vmem:[%s4761 + $0x358] sm:$0xff] %v4880
                  %v4882 = vld [vmem:[%s4760 + $0x1e0] sm:$0xff]
                  %4883 = vst [vmem:[%s4761 + $0x360] sm:$0xff] %v4882
                  %v4884 = vld [vmem:[%s4760 + $0x1e8] sm:$0xff]
                  %4885 = vst [vmem:[%s4761 + $0x368] sm:$0xff] %v4884
                  %v4886 = vld [vmem:[%s4760 + $0x1f0] sm:$0xff]
                  %4887 = vst [vmem:[%s4761 + $0x370] sm:$0xff] %v4886
                  %v4888 = vld [vmem:[%s4760 + $0x1f8] sm:$0xff]
                  %4889 = vst [vmem:[%s4761 + $0x378] sm:$0xff] %v4888
                  %v4890 = vld [vmem:[%s4760 + $0x200] sm:$0xff]
                  %4891 = vst [vmem:[%s4761 + $0x400] sm:$0xff] %v4890
                  %v4892 = vld [vmem:[%s4760 + $0x208] sm:$0xff]
                  %4893 = vst [vmem:[%s4761 + $0x408] sm:$0xff] %v4892
                  %v4894 = vld [vmem:[%s4760 + $0x210] sm:$0xff]
                  %4895 = vst [vmem:[%s4761 + $0x410] sm:$0xff] %v4894
                  %v4896 = vld [vmem:[%s4760 + $0x218] sm:$0xff]
                  %4897 = vst [vmem:[%s4761 + $0x418] sm:$0xff] %v4896
                  %v4898 = vld [vmem:[%s4760 + $0x220] sm:$0xff]
                  %4899 = vst [vmem:[%s4761 + $0x420] sm:$0xff] %v4898
                  %v4900 = vld [vmem:[%s4760 + $0x228] sm:$0xff]
                  %4901 = vst [vmem:[%s4761 + $0x428] sm:$0xff] %v4900
                  %v4902 = vld [vmem:[%s4760 + $0x230] sm:$0xff]
                  %4903 = vst [vmem:[%s4761 + $0x430] sm:$0xff] %v4902
                  %v4904 = vld [vmem:[%s4760 + $0x238] sm:$0xff]
                  %4905 = vst [vmem:[%s4761 + $0x438] sm:$0xff] %v4904
                  %v4906 = vld [vmem:[%s4760 + $0x240] sm:$0xff]
                  %4907 = vst [vmem:[%s4761 + $0x440] sm:$0xff] %v4906
                  %v4908 = vld [vmem:[%s4760 + $0x248] sm:$0xff]
                  %4909 = vst [vmem:[%s4761 + $0x448] sm:$0xff] %v4908
                  %v4910 = vld [vmem:[%s4760 + $0x250] sm:$0xff]
                  %4911 = vst [vmem:[%s4761 + $0x450] sm:$0xff] %v4910
                  %v4912 = vld [vmem:[%s4760 + $0x258] sm:$0xff]
                  %4913 = vst [vmem:[%s4761 + $0x458] sm:$0xff] %v4912
                  %v4914 = vld [vmem:[%s4760 + $0x260] sm:$0xff]
                  %4915 = vst [vmem:[%s4761 + $0x460] sm:$0xff] %v4914
                  %v4916 = vld [vmem:[%s4760 + $0x268] sm:$0xff]
                  %4917 = vst [vmem:[%s4761 + $0x468] sm:$0xff] %v4916
                  %v4918 = vld [vmem:[%s4760 + $0x270] sm:$0xff]
                  %4919 = vst [vmem:[%s4761 + $0x470] sm:$0xff] %v4918
                  %v4920 = vld [vmem:[%s4760 + $0x278] sm:$0xff]
                  %4921 = vst [vmem:[%s4761 + $0x478] sm:$0xff] %v4920
                $region68: #{rim_forward_sequence.1} parent=62 // loop_footer
                  %s4759 = sadd.s32 1, %s4755
                $region69: #{rim_forward_sequence.1} parent=62 // loop_footer_branch
                  %4754 = sbr.rel target = $region65
                $region70: #{rim_forward_sequence.1} parent=62 // loop_exit
                  _
              $region63: #{rim_forward_sequence.1} parent=47 // pred_fallthru
                _
              // Predicated region
              $region71: #{rim_forward_sequence.1} parent=47 // pred_check
                _
              $region72: #{rim_forward_sequence.1} parent=47 // pred_check_branch
                %4923 = sbr.rel target = $region74
              $region73: #{rim_forward_sequence.1} parent=47 // pred_region
                _
              $region74: #{rim_forward_sequence.1} parent=47 // pred_fallthru
                _
            $region48: #{rim_forward_sequence.1} parent=43 // pred_fallthru
              _
            // Predicated region
            $region49: #{rim_forward_sequence.1} parent=43 // pred_check
              _
            $region50: #{rim_forward_sequence.1} parent=43 // pred_check_branch
              %4582 = sbr.rel target = $region52
            $region51: #{rim_forward_sequence.1} parent=43 // pred_region
              loop: start=0, step=1, limit=1
              $region53: #{rim_forward_sequence.1} parent=51 // loop_pre_header
                _
              $region54: #{rim_forward_sequence.1} parent=51 // loop_header
                %s4585 = sphi 0, %s4589
                %p4586 = scmp.ge.s32.totalorder %s4585, 1
                %s4590 = sphi %s4561, %s4561
                %s4591 = sphi %s4576, %s4576
              $region55: #{rim_forward_sequence.1} parent=51 // loop_header_branch
                %4588 = sbr.rel (%p4586) target = $region59
              $region56: #{rim_forward_sequence.1} parent=51 // loop_body
                %v4592 = vld [vmem:[%s4590] sm:$0xff]
                %4593 = vst [vmem:[%s4591] sm:$0xff] %v4592
                %v4594 = vld [vmem:[%s4590 + $0x8] sm:$0xff]
                %4595 = vst [vmem:[%s4591 + $0x8] sm:$0xff] %v4594
                %v4596 = vld [vmem:[%s4590 + $0x10] sm:$0xff]
                %4597 = vst [vmem:[%s4591 + $0x10] sm:$0xff] %v4596
                %v4598 = vld [vmem:[%s4590 + $0x18] sm:$0xff]
                %4599 = vst [vmem:[%s4591 + $0x18] sm:$0xff] %v4598
                %v4600 = vld [vmem:[%s4590 + $0x20] sm:$0xff]
                %4601 = vst [vmem:[%s4591 + $0x20] sm:$0xff] %v4600
                %v4602 = vld [vmem:[%s4590 + $0x28] sm:$0xff]
                %4603 = vst [vmem:[%s4591 + $0x28] sm:$0xff] %v4602
                %v4604 = vld [vmem:[%s4590 + $0x30] sm:$0xff]
                %4605 = vst [vmem:[%s4591 + $0x30] sm:$0xff] %v4604
                %v4606 = vld [vmem:[%s4590 + $0x38] sm:$0xff]
                %4607 = vst [vmem:[%s4591 + $0x38] sm:$0xff] %v4606
                %v4608 = vld [vmem:[%s4590 + $0x40] sm:$0xff]
                %4609 = vst [vmem:[%s4591 + $0x40] sm:$0xff] %v4608
                %v4610 = vld [vmem:[%s4590 + $0x48] sm:$0xff]
                %4611 = vst [vmem:[%s4591 + $0x48] sm:$0xff] %v4610
                %v4612 = vld [vmem:[%s4590 + $0x50] sm:$0xff]
                %4613 = vst [vmem:[%s4591 + $0x50] sm:$0xff] %v4612
                %v4614 = vld [vmem:[%s4590 + $0x58] sm:$0xff]
                %4615 = vst [vmem:[%s4591 + $0x58] sm:$0xff] %v4614
                %v4616 = vld [vmem:[%s4590 + $0x60] sm:$0xff]
                %4617 = vst [vmem:[%s4591 + $0x60] sm:$0xff] %v4616
                %v4618 = vld [vmem:[%s4590 + $0x68] sm:$0xff]
                %4619 = vst [vmem:[%s4591 + $0x68] sm:$0xff] %v4618
                %v4620 = vld [vmem:[%s4590 + $0x70] sm:$0xff]
                %4621 = vst [vmem:[%s4591 + $0x70] sm:$0xff] %v4620
                %v4622 = vld [vmem:[%s4590 + $0x78] sm:$0xff]
                %4623 = vst [vmem:[%s4591 + $0x78] sm:$0xff] %v4622
                %v4624 = vld [vmem:[%s4590 + $0x80] sm:$0xff]
                %4625 = vst [vmem:[%s4591 + $0x100] sm:$0xff] %v4624
                %v4626 = vld [vmem:[%s4590 + $0x88] sm:$0xff]
                %4627 = vst [vmem:[%s4591 + $0x108] sm:$0xff] %v4626
                %v4628 = vld [vmem:[%s4590 + $0x90] sm:$0xff]
                %4629 = vst [vmem:[%s4591 + $0x110] sm:$0xff] %v4628
                %v4630 = vld [vmem:[%s4590 + $0x98] sm:$0xff]
                %4631 = vst [vmem:[%s4591 + $0x118] sm:$0xff] %v4630
                %v4632 = vld [vmem:[%s4590 + $0xa0] sm:$0xff]
                %4633 = vst [vmem:[%s4591 + $0x120] sm:$0xff] %v4632
                %v4634 = vld [vmem:[%s4590 + $0xa8] sm:$0xff]
                %4635 = vst [vmem:[%s4591 + $0x128] sm:$0xff] %v4634
                %v4636 = vld [vmem:[%s4590 + $0xb0] sm:$0xff]
                %4637 = vst [vmem:[%s4591 + $0x130] sm:$0xff] %v4636
                %v4638 = vld [vmem:[%s4590 + $0xb8] sm:$0xff]
                %4639 = vst [vmem:[%s4591 + $0x138] sm:$0xff] %v4638
                %v4640 = vld [vmem:[%s4590 + $0xc0] sm:$0xff]
                %4641 = vst [vmem:[%s4591 + $0x140] sm:$0xff] %v4640
                %v4642 = vld [vmem:[%s4590 + $0xc8] sm:$0xff]
                %4643 = vst [vmem:[%s4591 + $0x148] sm:$0xff] %v4642
                %v4644 = vld [vmem:[%s4590 + $0xd0] sm:$0xff]
                %4645 = vst [vmem:[%s4591 + $0x150] sm:$0xff] %v4644
                %v4646 = vld [vmem:[%s4590 + $0xd8] sm:$0xff]
                %4647 = vst [vmem:[%s4591 + $0x158] sm:$0xff] %v4646
                %v4648 = vld [vmem:[%s4590 + $0xe0] sm:$0xff]
                %4649 = vst [vmem:[%s4591 + $0x160] sm:$0xff] %v4648
                %v4650 = vld [vmem:[%s4590 + $0xe8] sm:$0xff]
                %4651 = vst [vmem:[%s4591 + $0x168] sm:$0xff] %v4650
                %v4652 = vld [vmem:[%s4590 + $0xf0] sm:$0xff]
                %4653 = vst [vmem:[%s4591 + $0x170] sm:$0xff] %v4652
                %v4654 = vld [vmem:[%s4590 + $0xf8] sm:$0xff]
                %4655 = vst [vmem:[%s4591 + $0x178] sm:$0xff] %v4654
                %v4656 = vld [vmem:[%s4590 + $0x100] sm:$0xff]
                %4657 = vst [vmem:[%s4591 + $0x200] sm:$0xff] %v4656
                %v4658 = vld [vmem:[%s4590 + $0x108] sm:$0xff]
                %4659 = vst [vmem:[%s4591 + $0x208] sm:$0xff] %v4658
                %v4660 = vld [vmem:[%s4590 + $0x110] sm:$0xff]
                %4661 = vst [vmem:[%s4591 + $0x210] sm:$0xff] %v4660
                %v4662 = vld [vmem:[%s4590 + $0x118] sm:$0xff]
                %4663 = vst [vmem:[%s4591 + $0x218] sm:$0xff] %v4662
                %v4664 = vld [vmem:[%s4590 + $0x120] sm:$0xff]
                %4665 = vst [vmem:[%s4591 + $0x220] sm:$0xff] %v4664
                %v4666 = vld [vmem:[%s4590 + $0x128] sm:$0xff]
                %4667 = vst [vmem:[%s4591 + $0x228] sm:$0xff] %v4666
                %v4668 = vld [vmem:[%s4590 + $0x130] sm:$0xff]
                %4669 = vst [vmem:[%s4591 + $0x230] sm:$0xff] %v4668
                %v4670 = vld [vmem:[%s4590 + $0x138] sm:$0xff]
                %4671 = vst [vmem:[%s4591 + $0x238] sm:$0xff] %v4670
                %v4672 = vld [vmem:[%s4590 + $0x140] sm:$0xff]
                %4673 = vst [vmem:[%s4591 + $0x240] sm:$0xff] %v4672
                %v4674 = vld [vmem:[%s4590 + $0x148] sm:$0xff]
                %4675 = vst [vmem:[%s4591 + $0x248] sm:$0xff] %v4674
                %v4676 = vld [vmem:[%s4590 + $0x150] sm:$0xff]
                %4677 = vst [vmem:[%s4591 + $0x250] sm:$0xff] %v4676
                %v4678 = vld [vmem:[%s4590 + $0x158] sm:$0xff]
                %4679 = vst [vmem:[%s4591 + $0x258] sm:$0xff] %v4678
                %v4680 = vld [vmem:[%s4590 + $0x160] sm:$0xff]
                %4681 = vst [vmem:[%s4591 + $0x260] sm:$0xff] %v4680
                %v4682 = vld [vmem:[%s4590 + $0x168] sm:$0xff]
                %4683 = vst [vmem:[%s4591 + $0x268] sm:$0xff] %v4682
                %v4684 = vld [vmem:[%s4590 + $0x170] sm:$0xff]
                %4685 = vst [vmem:[%s4591 + $0x270] sm:$0xff] %v4684
                %v4686 = vld [vmem:[%s4590 + $0x178] sm:$0xff]
                %4687 = vst [vmem:[%s4591 + $0x278] sm:$0xff] %v4686
                %v4688 = vld [vmem:[%s4590 + $0x180] sm:$0xff]
                %4689 = vst [vmem:[%s4591 + $0x300] sm:$0xff] %v4688
                %v4690 = vld [vmem:[%s4590 + $0x188] sm:$0xff]
                %4691 = vst [vmem:[%s4591 + $0x308] sm:$0xff] %v4690
                %v4692 = vld [vmem:[%s4590 + $0x190] sm:$0xff]
                %4693 = vst [vmem:[%s4591 + $0x310] sm:$0xff] %v4692
                %v4694 = vld [vmem:[%s4590 + $0x198] sm:$0xff]
                %4695 = vst [vmem:[%s4591 + $0x318] sm:$0xff] %v4694
                %v4696 = vld [vmem:[%s4590 + $0x1a0] sm:$0xff]
                %4697 = vst [vmem:[%s4591 + $0x320] sm:$0xff] %v4696
                %v4698 = vld [vmem:[%s4590 + $0x1a8] sm:$0xff]
                %4699 = vst [vmem:[%s4591 + $0x328] sm:$0xff] %v4698
                %v4700 = vld [vmem:[%s4590 + $0x1b0] sm:$0xff]
                %4701 = vst [vmem:[%s4591 + $0x330] sm:$0xff] %v4700
                %v4702 = vld [vmem:[%s4590 + $0x1b8] sm:$0xff]
                %4703 = vst [vmem:[%s4591 + $0x338] sm:$0xff] %v4702
                %v4704 = vld [vmem:[%s4590 + $0x1c0] sm:$0xff]
                %4705 = vst [vmem:[%s4591 + $0x340] sm:$0xff] %v4704
                %v4706 = vld [vmem:[%s4590 + $0x1c8] sm:$0xff]
                %4707 = vst [vmem:[%s4591 + $0x348] sm:$0xff] %v4706
                %v4708 = vld [vmem:[%s4590 + $0x1d0] sm:$0xff]
                %4709 = vst [vmem:[%s4591 + $0x350] sm:$0xff] %v4708
                %v4710 = vld [vmem:[%s4590 + $0x1d8] sm:$0xff]
                %4711 = vst [vmem:[%s4591 + $0x358] sm:$0xff] %v4710
                %v4712 = vld [vmem:[%s4590 + $0x1e0] sm:$0xff]
                %4713 = vst [vmem:[%s4591 + $0x360] sm:$0xff] %v4712
                %v4714 = vld [vmem:[%s4590 + $0x1e8] sm:$0xff]
                %4715 = vst [vmem:[%s4591 + $0x368] sm:$0xff] %v4714
                %v4716 = vld [vmem:[%s4590 + $0x1f0] sm:$0xff]
                %4717 = vst [vmem:[%s4591 + $0x370] sm:$0xff] %v4716
                %v4718 = vld [vmem:[%s4590 + $0x1f8] sm:$0xff]
                %4719 = vst [vmem:[%s4591 + $0x378] sm:$0xff] %v4718
                %v4720 = vld [vmem:[%s4590 + $0x200] sm:$0xff]
                %4721 = vst [vmem:[%s4591 + $0x400] sm:$0xff] %v4720
                %v4722 = vld [vmem:[%s4590 + $0x208] sm:$0xff]
                %4723 = vst [vmem:[%s4591 + $0x408] sm:$0xff] %v4722
                %v4724 = vld [vmem:[%s4590 + $0x210] sm:$0xff]
                %4725 = vst [vmem:[%s4591 + $0x410] sm:$0xff] %v4724
                %v4726 = vld [vmem:[%s4590 + $0x218] sm:$0xff]
                %4727 = vst [vmem:[%s4591 + $0x418] sm:$0xff] %v4726
                %v4728 = vld [vmem:[%s4590 + $0x220] sm:$0xff]
                %4729 = vst [vmem:[%s4591 + $0x420] sm:$0xff] %v4728
                %v4730 = vld [vmem:[%s4590 + $0x228] sm:$0xff]
                %4731 = vst [vmem:[%s4591 + $0x428] sm:$0xff] %v4730
                %v4732 = vld [vmem:[%s4590 + $0x230] sm:$0xff]
                %4733 = vst [vmem:[%s4591 + $0x430] sm:$0xff] %v4732
                %v4734 = vld [vmem:[%s4590 + $0x238] sm:$0xff]
                %4735 = vst [vmem:[%s4591 + $0x438] sm:$0xff] %v4734
                %v4736 = vld [vmem:[%s4590 + $0x240] sm:$0xff]
                %4737 = vst [vmem:[%s4591 + $0x440] sm:$0xff] %v4736
                %v4738 = vld [vmem:[%s4590 + $0x248] sm:$0xff]
                %4739 = vst [vmem:[%s4591 + $0x448] sm:$0xff] %v4738
                %v4740 = vld [vmem:[%s4590 + $0x250] sm:$0xff]
                %4741 = vst [vmem:[%s4591 + $0x450] sm:$0xff] %v4740
                %v4742 = vld [vmem:[%s4590 + $0x258] sm:$0xff]
                %4743 = vst [vmem:[%s4591 + $0x458] sm:$0xff] %v4742
                %v4744 = vld [vmem:[%s4590 + $0x260] sm:$0xff]
                %4745 = vst [vmem:[%s4591 + $0x460] sm:$0xff] %v4744
                %v4746 = vld [vmem:[%s4590 + $0x268] sm:$0xff]
                %4747 = vst [vmem:[%s4591 + $0x468] sm:$0xff] %v4746
                %v4748 = vld [vmem:[%s4590 + $0x270] sm:$0xff]
                %4749 = vst [vmem:[%s4591 + $0x470] sm:$0xff] %v4748
                %v4750 = vld [vmem:[%s4590 + $0x278] sm:$0xff]
                %4751 = vst [vmem:[%s4591 + $0x478] sm:$0xff] %v4750
              $region57: #{rim_forward_sequence.1} parent=51 // loop_footer
                %s4589 = sadd.s32 1, %s4585
              $region58: #{rim_forward_sequence.1} parent=51 // loop_footer_branch
                %4584 = sbr.rel target = $region54
              $region59: #{rim_forward_sequence.1} parent=51 // loop_exit
                _
            $region52: #{rim_forward_sequence.1} parent=43 // pred_fallthru
              _
          $region44: #{rim_forward_sequence.1} parent=39 // pred_fallthru
            _
          %4924 = vnop
        $region40: #{rim_forward_sequence.1} parent=35 // pred_fallthru
          _
        // Predicated region
        $region75: #{rim_forward_sequence.1} parent=35 // pred_check
          %p4925 = pneg %p156
        $region76: #{rim_forward_sequence.1} parent=35 // pred_check_branch
          %4927 = sbr.rel (%p4925) target = $region78
        $region77: #{rim_forward_sequence.1} parent=35 // pred_region
          %s4928 = smul.u32 16, %s18
          %s4929 = smul.addr %s4928, 8
          %s4930 = scalar_lea.vmem %s5, %s4929
          // Predicated region
          $region79: #{rim_forward_sequence.1} parent=77 // pred_check
            _
          $region80: #{rim_forward_sequence.1} parent=77 // pred_check_branch
            %4932 = sbr.rel (0) target = $region82
          $region81: #{rim_forward_sequence.1} parent=77 // pred_region
            // Predicated region
            $region83: #{rim_forward_sequence.1} parent=81 // pred_check
              _
            $region84: #{rim_forward_sequence.1} parent=81 // pred_check_branch
              %4934 = sbr.rel (0) target = $region86
            $region85: #{rim_forward_sequence.1} parent=81 // pred_region
              // Predicated region
              $region98: #{rim_forward_sequence.1} parent=85 // pred_check
                _
              $region99: #{rim_forward_sequence.1} parent=85 // pred_check_branch
                %5043 = sbr.rel (0) target = $region101
              $region100: #{rim_forward_sequence.1} parent=85 // pred_region
                loop: start=0, step=1, limit=1
                $region102: #{rim_forward_sequence.1} parent=100 // loop_pre_header
                  _
                $region103: #{rim_forward_sequence.1} parent=100 // loop_header
                  %s5045 = sphi 0, %s5049
                  %p5046 = scmp.ge.s32.totalorder %s5045, 1
                  %s5050 = sphi %s4565, %s4565
                  %s5051 = sphi %s4930, %s4930
                $region104: #{rim_forward_sequence.1} parent=100 // loop_header_branch
                  %5048 = sbr.rel (%p5046) target = $region108
                $region105: #{rim_forward_sequence.1} parent=100 // loop_body
                  %v5052 = vld [vmem:[%s5050] sm:$0xff]
                  %5053 = vst [vmem:[%s5051] sm:$0xff] %v5052
                  %v5054 = vld [vmem:[%s5050 + $0x8] sm:$0xff]
                  %5055 = vst [vmem:[%s5051 + $0x8] sm:$0xff] %v5054
                  %v5056 = vld [vmem:[%s5050 + $0x10] sm:$0xff]
                  %5057 = vst [vmem:[%s5051 + $0x10] sm:$0xff] %v5056
                  %v5058 = vld [vmem:[%s5050 + $0x18] sm:$0xff]
                  %5059 = vst [vmem:[%s5051 + $0x18] sm:$0xff] %v5058
                  %v5060 = vld [vmem:[%s5050 + $0x20] sm:$0xff]
                  %5061 = vst [vmem:[%s5051 + $0x20] sm:$0xff] %v5060
                  %v5062 = vld [vmem:[%s5050 + $0x28] sm:$0xff]
                  %5063 = vst [vmem:[%s5051 + $0x28] sm:$0xff] %v5062
                  %v5064 = vld [vmem:[%s5050 + $0x30] sm:$0xff]
                  %5065 = vst [vmem:[%s5051 + $0x30] sm:$0xff] %v5064
                  %v5066 = vld [vmem:[%s5050 + $0x38] sm:$0xff]
                  %5067 = vst [vmem:[%s5051 + $0x38] sm:$0xff] %v5066
                  %v5068 = vld [vmem:[%s5050 + $0x40] sm:$0xff]
                  %5069 = vst [vmem:[%s5051 + $0x40] sm:$0xff] %v5068
                  %v5070 = vld [vmem:[%s5050 + $0x48] sm:$0xff]
                  %5071 = vst [vmem:[%s5051 + $0x48] sm:$0xff] %v5070
                  %v5072 = vld [vmem:[%s5050 + $0x50] sm:$0xff]
                  %5073 = vst [vmem:[%s5051 + $0x50] sm:$0xff] %v5072
                  %v5074 = vld [vmem:[%s5050 + $0x58] sm:$0xff]
                  %5075 = vst [vmem:[%s5051 + $0x58] sm:$0xff] %v5074
                  %v5076 = vld [vmem:[%s5050 + $0x60] sm:$0xff]
                  %5077 = vst [vmem:[%s5051 + $0x60] sm:$0xff] %v5076
                  %v5078 = vld [vmem:[%s5050 + $0x68] sm:$0xff]
                  %5079 = vst [vmem:[%s5051 + $0x68] sm:$0xff] %v5078
                  %v5080 = vld [vmem:[%s5050 + $0x70] sm:$0xff]
                  %5081 = vst [vmem:[%s5051 + $0x70] sm:$0xff] %v5080
                  %v5082 = vld [vmem:[%s5050 + $0x78] sm:$0xff]
                  %5083 = vst [vmem:[%s5051 + $0x78] sm:$0xff] %v5082
                  %v5084 = vld [vmem:[%s5050 + $0x80] sm:$0xff]
                  %5085 = vst [vmem:[%s5051 + $0x100] sm:$0xff] %v5084
                  %v5086 = vld [vmem:[%s5050 + $0x88] sm:$0xff]
                  %5087 = vst [vmem:[%s5051 + $0x108] sm:$0xff] %v5086
                  %v5088 = vld [vmem:[%s5050 + $0x90] sm:$0xff]
                  %5089 = vst [vmem:[%s5051 + $0x110] sm:$0xff] %v5088
                  %v5090 = vld [vmem:[%s5050 + $0x98] sm:$0xff]
                  %5091 = vst [vmem:[%s5051 + $0x118] sm:$0xff] %v5090
                  %v5092 = vld [vmem:[%s5050 + $0xa0] sm:$0xff]
                  %5093 = vst [vmem:[%s5051 + $0x120] sm:$0xff] %v5092
                  %v5094 = vld [vmem:[%s5050 + $0xa8] sm:$0xff]
                  %5095 = vst [vmem:[%s5051 + $0x128] sm:$0xff] %v5094
                  %v5096 = vld [vmem:[%s5050 + $0xb0] sm:$0xff]
                  %5097 = vst [vmem:[%s5051 + $0x130] sm:$0xff] %v5096
                  %v5098 = vld [vmem:[%s5050 + $0xb8] sm:$0xff]
                  %5099 = vst [vmem:[%s5051 + $0x138] sm:$0xff] %v5098
                  %v5100 = vld [vmem:[%s5050 + $0xc0] sm:$0xff]
                  %5101 = vst [vmem:[%s5051 + $0x140] sm:$0xff] %v5100
                  %v5102 = vld [vmem:[%s5050 + $0xc8] sm:$0xff]
                  %5103 = vst [vmem:[%s5051 + $0x148] sm:$0xff] %v5102
                  %v5104 = vld [vmem:[%s5050 + $0xd0] sm:$0xff]
                  %5105 = vst [vmem:[%s5051 + $0x150] sm:$0xff] %v5104
                  %v5106 = vld [vmem:[%s5050 + $0xd8] sm:$0xff]
                  %5107 = vst [vmem:[%s5051 + $0x158] sm:$0xff] %v5106
                  %v5108 = vld [vmem:[%s5050 + $0xe0] sm:$0xff]
                  %5109 = vst [vmem:[%s5051 + $0x160] sm:$0xff] %v5108
                  %v5110 = vld [vmem:[%s5050 + $0xe8] sm:$0xff]
                  %5111 = vst [vmem:[%s5051 + $0x168] sm:$0xff] %v5110
                  %v5112 = vld [vmem:[%s5050 + $0xf0] sm:$0xff]
                  %5113 = vst [vmem:[%s5051 + $0x170] sm:$0xff] %v5112
                  %v5114 = vld [vmem:[%s5050 + $0xf8] sm:$0xff]
                  %5115 = vst [vmem:[%s5051 + $0x178] sm:$0xff] %v5114
                  %v5116 = vld [vmem:[%s5050 + $0x100] sm:$0xff]
                  %5117 = vst [vmem:[%s5051 + $0x200] sm:$0xff] %v5116
                  %v5118 = vld [vmem:[%s5050 + $0x108] sm:$0xff]
                  %5119 = vst [vmem:[%s5051 + $0x208] sm:$0xff] %v5118
                  %v5120 = vld [vmem:[%s5050 + $0x110] sm:$0xff]
                  %5121 = vst [vmem:[%s5051 + $0x210] sm:$0xff] %v5120
                  %v5122 = vld [vmem:[%s5050 + $0x118] sm:$0xff]
                  %5123 = vst [vmem:[%s5051 + $0x218] sm:$0xff] %v5122
                  %v5124 = vld [vmem:[%s5050 + $0x120] sm:$0xff]
                  %5125 = vst [vmem:[%s5051 + $0x220] sm:$0xff] %v5124
                  %v5126 = vld [vmem:[%s5050 + $0x128] sm:$0xff]
                  %5127 = vst [vmem:[%s5051 + $0x228] sm:$0xff] %v5126
                  %v5128 = vld [vmem:[%s5050 + $0x130] sm:$0xff]
                  %5129 = vst [vmem:[%s5051 + $0x230] sm:$0xff] %v5128
                  %v5130 = vld [vmem:[%s5050 + $0x138] sm:$0xff]
                  %5131 = vst [vmem:[%s5051 + $0x238] sm:$0xff] %v5130
                  %v5132 = vld [vmem:[%s5050 + $0x140] sm:$0xff]
                  %5133 = vst [vmem:[%s5051 + $0x240] sm:$0xff] %v5132
                  %v5134 = vld [vmem:[%s5050 + $0x148] sm:$0xff]
                  %5135 = vst [vmem:[%s5051 + $0x248] sm:$0xff] %v5134
                  %v5136 = vld [vmem:[%s5050 + $0x150] sm:$0xff]
                  %5137 = vst [vmem:[%s5051 + $0x250] sm:$0xff] %v5136
                  %v5138 = vld [vmem:[%s5050 + $0x158] sm:$0xff]
                  %5139 = vst [vmem:[%s5051 + $0x258] sm:$0xff] %v5138
                  %v5140 = vld [vmem:[%s5050 + $0x160] sm:$0xff]
                  %5141 = vst [vmem:[%s5051 + $0x260] sm:$0xff] %v5140
                  %v5142 = vld [vmem:[%s5050 + $0x168] sm:$0xff]
                  %5143 = vst [vmem:[%s5051 + $0x268] sm:$0xff] %v5142
                  %v5144 = vld [vmem:[%s5050 + $0x170] sm:$0xff]
                  %5145 = vst [vmem:[%s5051 + $0x270] sm:$0xff] %v5144
                  %v5146 = vld [vmem:[%s5050 + $0x178] sm:$0xff]
                  %5147 = vst [vmem:[%s5051 + $0x278] sm:$0xff] %v5146
                $region106: #{rim_forward_sequence.1} parent=100 // loop_footer
                  %s5049 = sadd.s32 1, %s5045
                $region107: #{rim_forward_sequence.1} parent=100 // loop_footer_branch
                  %5044 = sbr.rel target = $region103
                $region108: #{rim_forward_sequence.1} parent=100 // loop_exit
                  _
              $region101: #{rim_forward_sequence.1} parent=85 // pred_fallthru
                _
              // Predicated region
              $region109: #{rim_forward_sequence.1} parent=85 // pred_check
                _
              $region110: #{rim_forward_sequence.1} parent=85 // pred_check_branch
                %5149 = sbr.rel target = $region112
              $region111: #{rim_forward_sequence.1} parent=85 // pred_region
                _
              $region112: #{rim_forward_sequence.1} parent=85 // pred_fallthru
                _
            $region86: #{rim_forward_sequence.1} parent=81 // pred_fallthru
              _
            // Predicated region
            $region87: #{rim_forward_sequence.1} parent=81 // pred_check
              _
            $region88: #{rim_forward_sequence.1} parent=81 // pred_check_branch
              %4936 = sbr.rel target = $region90
            $region89: #{rim_forward_sequence.1} parent=81 // pred_region
              loop: start=0, step=1, limit=1
              $region91: #{rim_forward_sequence.1} parent=89 // loop_pre_header
                _
              $region92: #{rim_forward_sequence.1} parent=89 // loop_header
                %s4939 = sphi 0, %s4943
                %p4940 = scmp.ge.s32.totalorder %s4939, 1
                %s4944 = sphi %s4565, %s4565
                %s4945 = sphi %s4930, %s4930
              $region93: #{rim_forward_sequence.1} parent=89 // loop_header_branch
                %4942 = sbr.rel (%p4940) target = $region97
              $region94: #{rim_forward_sequence.1} parent=89 // loop_body
                %v4946 = vld [vmem:[%s4944] sm:$0xff]
                %4947 = vst [vmem:[%s4945] sm:$0xff] %v4946
                %v4948 = vld [vmem:[%s4944 + $0x8] sm:$0xff]
                %4949 = vst [vmem:[%s4945 + $0x8] sm:$0xff] %v4948
                %v4950 = vld [vmem:[%s4944 + $0x10] sm:$0xff]
                %4951 = vst [vmem:[%s4945 + $0x10] sm:$0xff] %v4950
                %v4952 = vld [vmem:[%s4944 + $0x18] sm:$0xff]
                %4953 = vst [vmem:[%s4945 + $0x18] sm:$0xff] %v4952
                %v4954 = vld [vmem:[%s4944 + $0x20] sm:$0xff]
                %4955 = vst [vmem:[%s4945 + $0x20] sm:$0xff] %v4954
                %v4956 = vld [vmem:[%s4944 + $0x28] sm:$0xff]
                %4957 = vst [vmem:[%s4945 + $0x28] sm:$0xff] %v4956
                %v4958 = vld [vmem:[%s4944 + $0x30] sm:$0xff]
                %4959 = vst [vmem:[%s4945 + $0x30] sm:$0xff] %v4958
                %v4960 = vld [vmem:[%s4944 + $0x38] sm:$0xff]
                %4961 = vst [vmem:[%s4945 + $0x38] sm:$0xff] %v4960
                %v4962 = vld [vmem:[%s4944 + $0x40] sm:$0xff]
                %4963 = vst [vmem:[%s4945 + $0x40] sm:$0xff] %v4962
                %v4964 = vld [vmem:[%s4944 + $0x48] sm:$0xff]
                %4965 = vst [vmem:[%s4945 + $0x48] sm:$0xff] %v4964
                %v4966 = vld [vmem:[%s4944 + $0x50] sm:$0xff]
                %4967 = vst [vmem:[%s4945 + $0x50] sm:$0xff] %v4966
                %v4968 = vld [vmem:[%s4944 + $0x58] sm:$0xff]
                %4969 = vst [vmem:[%s4945 + $0x58] sm:$0xff] %v4968
                %v4970 = vld [vmem:[%s4944 + $0x60] sm:$0xff]
                %4971 = vst [vmem:[%s4945 + $0x60] sm:$0xff] %v4970
                %v4972 = vld [vmem:[%s4944 + $0x68] sm:$0xff]
                %4973 = vst [vmem:[%s4945 + $0x68] sm:$0xff] %v4972
                %v4974 = vld [vmem:[%s4944 + $0x70] sm:$0xff]
                %4975 = vst [vmem:[%s4945 + $0x70] sm:$0xff] %v4974
                %v4976 = vld [vmem:[%s4944 + $0x78] sm:$0xff]
                %4977 = vst [vmem:[%s4945 + $0x78] sm:$0xff] %v4976
                %v4978 = vld [vmem:[%s4944 + $0x80] sm:$0xff]
                %4979 = vst [vmem:[%s4945 + $0x100] sm:$0xff] %v4978
                %v4980 = vld [vmem:[%s4944 + $0x88] sm:$0xff]
                %4981 = vst [vmem:[%s4945 + $0x108] sm:$0xff] %v4980
                %v4982 = vld [vmem:[%s4944 + $0x90] sm:$0xff]
                %4983 = vst [vmem:[%s4945 + $0x110] sm:$0xff] %v4982
                %v4984 = vld [vmem:[%s4944 + $0x98] sm:$0xff]
                %4985 = vst [vmem:[%s4945 + $0x118] sm:$0xff] %v4984
                %v4986 = vld [vmem:[%s4944 + $0xa0] sm:$0xff]
                %4987 = vst [vmem:[%s4945 + $0x120] sm:$0xff] %v4986
                %v4988 = vld [vmem:[%s4944 + $0xa8] sm:$0xff]
                %4989 = vst [vmem:[%s4945 + $0x128] sm:$0xff] %v4988
                %v4990 = vld [vmem:[%s4944 + $0xb0] sm:$0xff]
                %4991 = vst [vmem:[%s4945 + $0x130] sm:$0xff] %v4990
                %v4992 = vld [vmem:[%s4944 + $0xb8] sm:$0xff]
                %4993 = vst [vmem:[%s4945 + $0x138] sm:$0xff] %v4992
                %v4994 = vld [vmem:[%s4944 + $0xc0] sm:$0xff]
                %4995 = vst [vmem:[%s4945 + $0x140] sm:$0xff] %v4994
                %v4996 = vld [vmem:[%s4944 + $0xc8] sm:$0xff]
                %4997 = vst [vmem:[%s4945 + $0x148] sm:$0xff] %v4996
                %v4998 = vld [vmem:[%s4944 + $0xd0] sm:$0xff]
                %4999 = vst [vmem:[%s4945 + $0x150] sm:$0xff] %v4998
                %v5000 = vld [vmem:[%s4944 + $0xd8] sm:$0xff]
                %5001 = vst [vmem:[%s4945 + $0x158] sm:$0xff] %v5000
                %v5002 = vld [vmem:[%s4944 + $0xe0] sm:$0xff]
                %5003 = vst [vmem:[%s4945 + $0x160] sm:$0xff] %v5002
                %v5004 = vld [vmem:[%s4944 + $0xe8] sm:$0xff]
                %5005 = vst [vmem:[%s4945 + $0x168] sm:$0xff] %v5004
                %v5006 = vld [vmem:[%s4944 + $0xf0] sm:$0xff]
                %5007 = vst [vmem:[%s4945 + $0x170] sm:$0xff] %v5006
                %v5008 = vld [vmem:[%s4944 + $0xf8] sm:$0xff]
                %5009 = vst [vmem:[%s4945 + $0x178] sm:$0xff] %v5008
                %v5010 = vld [vmem:[%s4944 + $0x100] sm:$0xff]
                %5011 = vst [vmem:[%s4945 + $0x200] sm:$0xff] %v5010
                %v5012 = vld [vmem:[%s4944 + $0x108] sm:$0xff]
                %5013 = vst [vmem:[%s4945 + $0x208] sm:$0xff] %v5012
                %v5014 = vld [vmem:[%s4944 + $0x110] sm:$0xff]
                %5015 = vst [vmem:[%s4945 + $0x210] sm:$0xff] %v5014
                %v5016 = vld [vmem:[%s4944 + $0x118] sm:$0xff]
                %5017 = vst [vmem:[%s4945 + $0x218] sm:$0xff] %v5016
                %v5018 = vld [vmem:[%s4944 + $0x120] sm:$0xff]
                %5019 = vst [vmem:[%s4945 + $0x220] sm:$0xff] %v5018
                %v5020 = vld [vmem:[%s4944 + $0x128] sm:$0xff]
                %5021 = vst [vmem:[%s4945 + $0x228] sm:$0xff] %v5020
                %v5022 = vld [vmem:[%s4944 + $0x130] sm:$0xff]
                %5023 = vst [vmem:[%s4945 + $0x230] sm:$0xff] %v5022
                %v5024 = vld [vmem:[%s4944 + $0x138] sm:$0xff]
                %5025 = vst [vmem:[%s4945 + $0x238] sm:$0xff] %v5024
                %v5026 = vld [vmem:[%s4944 + $0x140] sm:$0xff]
                %5027 = vst [vmem:[%s4945 + $0x240] sm:$0xff] %v5026
                %v5028 = vld [vmem:[%s4944 + $0x148] sm:$0xff]
                %5029 = vst [vmem:[%s4945 + $0x248] sm:$0xff] %v5028
                %v5030 = vld [vmem:[%s4944 + $0x150] sm:$0xff]
                %5031 = vst [vmem:[%s4945 + $0x250] sm:$0xff] %v5030
                %v5032 = vld [vmem:[%s4944 + $0x158] sm:$0xff]
                %5033 = vst [vmem:[%s4945 + $0x258] sm:$0xff] %v5032
                %v5034 = vld [vmem:[%s4944 + $0x160] sm:$0xff]
                %5035 = vst [vmem:[%s4945 + $0x260] sm:$0xff] %v5034
                %v5036 = vld [vmem:[%s4944 + $0x168] sm:$0xff]
                %5037 = vst [vmem:[%s4945 + $0x268] sm:$0xff] %v5036
                %v5038 = vld [vmem:[%s4944 + $0x170] sm:$0xff]
                %5039 = vst [vmem:[%s4945 + $0x270] sm:$0xff] %v5038
                %v5040 = vld [vmem:[%s4944 + $0x178] sm:$0xff]
                %5041 = vst [vmem:[%s4945 + $0x278] sm:$0xff] %v5040
              $region95: #{rim_forward_sequence.1} parent=89 // loop_footer
                %s4943 = sadd.s32 1, %s4939
              $region96: #{rim_forward_sequence.1} parent=89 // loop_footer_branch
                %4938 = sbr.rel target = $region92
              $region97: #{rim_forward_sequence.1} parent=89 // loop_exit
                _
            $region90: #{rim_forward_sequence.1} parent=81 // pred_fallthru
              _
          $region82: #{rim_forward_sequence.1} parent=77 // pred_fallthru
            _
          %5150 = vnop
        $region78: #{rim_forward_sequence.1} parent=35 // pred_fallthru
          _
        // Predicated region
        $region113: #{rim_forward_sequence.1} parent=35 // pred_check
          %p5151 = pneg %p182
        $region114: #{rim_forward_sequence.1} parent=35 // pred_check_branch
          %5153 = sbr.rel (%p5151) target = $region116
        $region115: #{rim_forward_sequence.1} parent=35 // pred_region
          %s5154 = smul.u32 16, %s18
        $region116: #{rim_forward_sequence.1} parent=35 // pred_fallthru
          _
      $region36: #{rim_forward_sequence.1} parent=5 // pred_fallthru
        _
      %p5155 = scmp.le.s32.totalorder 2, %s13
      // Predicated region
      $region117: #{rim_forward_sequence.1} parent=5 // pred_check
        %p5156 = pneg %p5155
      $region118: #{rim_forward_sequence.1} parent=5 // pred_check_branch
        %5158 = sbr.rel (%p5156) target = $region120
      $region119: #{rim_forward_sequence.1} parent=5 // pred_region
        %s5159 = ssub.s32 %s13, 2
        // Predicated region
        $region121: #{rim_forward_sequence.1} parent=119 // pred_check
          %p5160 = pneg %p136
        $region122: #{rim_forward_sequence.1} parent=119 // pred_check_branch
          %5162 = sbr.rel (%p5160) target = $region124
        $region123: #{rim_forward_sequence.1} parent=119 // pred_region
          %s5163 = sand.u32 %s121, 1
          %s5164 = sand.u32 %s121, 1
          %s5165 = smul.addr %s5164, 640
          %s5166 = scalar_lea.vmem [#allocation2], %s5165
        $region124: #{rim_forward_sequence.1} parent=119 // pred_fallthru
          _
        // Predicated region
        $region125: #{rim_forward_sequence.1} parent=119 // pred_check
          %p5167 = pneg %p162
        $region126: #{rim_forward_sequence.1} parent=119 // pred_check_branch
          %5169 = sbr.rel (%p5167) target = $region128
        $region127: #{rim_forward_sequence.1} parent=119 // pred_region
          %s5170 = sand.u32 %s147, 1
          %s5171 = sand.u32 %s147, 1
          %s5172 = smul.addr %s5171, 384
          %s5173 = scalar_lea.vmem [#allocation3], %s5172
        $region128: #{rim_forward_sequence.1} parent=119 // pred_fallthru
          _
        // Predicated region
        $region129: #{rim_forward_sequence.1} parent=119 // pred_check
          %p5174 = pneg %p188
        $region130: #{rim_forward_sequence.1} parent=119 // pred_check_branch
          %5176 = sbr.rel (%p5174) target = $region132
        $region131: #{rim_forward_sequence.1} parent=119 // pred_region
          %s5177 = smul.u32 16, %s19
          %p5178 = scmp.lt.s32.totalorder %s5177, 31
          %s5179 = scalar_select %p5178, %s5177, 31
          %s5180 = smul.addr %s5179, 8
          %s5181 = scalar_lea.vmem %s6, %s5180
        $region132: #{rim_forward_sequence.1} parent=119 // pred_fallthru
          _
      $region120: #{rim_forward_sequence.1} parent=5 // pred_fallthru
        _
    $region6: #{rim_forward_sequence.1} parent=1 // loop_footer
      %s17 = sadd.s32 1, %s13
    $region7: #{rim_forward_sequence.1} parent=1 // loop_footer_branch
      %12 = sbr.rel target = $region3
    $region8: #{rim_forward_sequence.1} parent=1 // loop_exit
      _

</llo_original>
